<compile_context>
chip_gen: v7x
topology: tpu7x:2x2x1
jax: 0.10.0
libtpu: 0.0.40
codegen_flags: <defaults>
</compile_context>

<pallas_src>
import functools

import jax
import jax.numpy as jnp
from jax import lax
from jax.experimental import pallas as pl
from jax.experimental.pallas import tpu as pltpu


_VMEM = pl.BlockSpec(memory_space=pltpu.MemorySpace.VMEM)
_LANE = 128
_SUB = 8


def _round_up(n, m):
    return -(-n // m) * m


def _pack_rows(parts):
    """Stack 2-D arrays along rows, padding each to an 8-row boundary.

    Returns (slab, per-part row offsets). Padding rows are zero, so loading a
    slightly longer (aligned) slice of a weight block is numerically harmless.
    """
    padded, offs, off = [], [], 0
    for p in parts:
        rp = _round_up(p.shape[0], _SUB)
        padded.append(jnp.pad(p, ((0, rp - p.shape[0]), (0, 0))))
        offs.append(off)
        off += rp
    return jnp.concatenate(padded, axis=0), offs


# -----------------------------------------------------------------------------
# Fused MQRNN forward kernel
# -----------------------------------------------------------------------------
def make_mqrnn_kernel(S, Bp, H, n_layers, tau, NT, de_tot, din0,
                      lstm_offs, gd_offs, ld1_offs, ld2_offs, ld3_offs):
    """Fused encoder(LSTM stack) + global decoder + local decoder kernel.

    Local-decoder rows are ordered (target, step, padded-batch); the wrapper
    slices the batch padding off and transposes back to (B, NT, tau, NQ)."""
    dm = H
    D2 = (tau + 1) * dm           # per-target global-context width
    L = n_layers

    def kernel(x_ref, embf_ref, ef_ref, *refs):
        lstm_refs = refs[:L]
        gd_ref, ld1_ref, ld2_ref, ld3_ref, o_ref = refs[L:L + 5]

        # ----------------- Encoder: wavefronted stacked LSTM -----------------
        wih, whh, bias = [], [], []
        for l in range(L):
            din = din0 if l == 0 else H
            o0, o1, o2 = lstm_offs[l]
            ref = lstm_refs[l]
            wih.append(ref[o0:o0 + din, :])
            whh.append(ref[o1:o1 + H, :])
            bias.append(ref[o2:o2 + 1, :])

        # Hoisted layer-0 input projection: one (S*Bp, din0)x(din0, 4H) MXU op,
        # kept entirely in registers (no scratch round-trip on the recurrence).
        gx0 = (jnp.dot(x_ref[...], wih[0], preferred_element_type=jnp.float32)
               + bias[0])                                    # (S*Bp, 4H)

        def lstm_step(gates, c_prev, first):
            # One full-width sigmoid (EUP) instead of three 32-lane slices.
            sg = jax.nn.sigmoid(gates)
            g_g = jnp.tanh(gates[:, 2 * H:3 * H])
            i_g = sg[:, 0 * H:1 * H]
            o_g = sg[:, 3 * H:4 * H]
            if first:                        # h == c == 0 exactly at t == 0
                c_new = i_g * g_g            # -> skip the dead f*c term
            else:
                c_new = sg[:, 1 * H:2 * H] * c_prev + i_g * g_g
            return o_g * jnp.tanh(c_new), c_new

        h = [None] * L
        c = [None] * L
        # Wavefront schedule: at wave w, layer l handles time t = w - l.
        # Layers are visited high->low so layer l reads layer l-1's h from the
        # previous wave before it is overwritten this wave.  The per-layer
        # serial recurrences overlap instead of running back-to-back.
        for w in range(S + L - 1):
            for l in reversed(range(L)):
                t = w - l
                if not (0 <= t < S):
                    continue
                if l == 0:
                    gates = gx0[t * Bp:(t + 1) * Bp, :]
                    if t > 0:
                        gates = gates + jnp.dot(
                            h[0], whh[0], preferred_element_type=jnp.float32)
                else:
                    gates = jnp.dot(h[l - 1], wih[l],
                                    preferred_element_type=jnp.float32)
                    if t > 0:
                        # adjacent dots -> MRB in-place accumulation on v7x
                        gates = gates + jnp.dot(
                            h[l], whh[l], preferred_element_type=jnp.float32)
                    gates = gates + bias[l]
                h[l], c[l] = lstm_step(gates, c[l], first=(t == 0))
        h_last = h[L - 1]                                    # (Bp, H)

        # --------- GlobalDecoder linear (row-split weights, no concat) -------
        gwh = gd_ref[gd_offs[0]:gd_offs[0] + dm, :]
        gwe = gd_ref[gd_offs[1]:gd_offs[1] + tau * de_tot, :]
        gb = gd_ref[gd_offs[2]:gd_offs[2] + 1, :]
        gc = (jnp.dot(h_last, gwh, preferred_element_type=jnp.float32)
              + jnp.dot(embf_ref[...], gwe, preferred_element_type=jnp.float32)
              + gb)                                          # (Bp, NT*D2)

        # --------------- LocalDecoder, rows ordered (nt, t, b) ---------------
        w1a = ld1_ref[ld1_offs[0]:ld1_offs[0] + dm, :]
        w1t = ld1_ref[ld1_offs[1]:ld1_offs[1] + dm, :]
        w1e = ld1_ref[ld1_offs[2]:ld1_offs[2] + de_tot, :]
        b1 = ld1_ref[ld1_offs[3]:ld1_offs[3] + 1, :]
        w2 = ld2_ref[ld2_offs[0]:ld2_offs[0] + 2 * dm, :]
        b2 = ld2_ref[ld2_offs[1]:ld2_offs[1] + 1, :]
        w3 = ld3_ref[ld3_offs[0]:ld3_offs[0] + dm, :]
        b3 = ld3_ref[ld3_offs[1]:ld3_offs[1] + 1, :]

        # c_t genuinely varies per (nt, t, b): build the (R, dm) slab by
        # 8-aligned register concats (no scratch, no masked scatter stores).
        ct_rows = jnp.concatenate(
            [gc[:, nt * D2 + (t + 1) * dm: nt * D2 + (t + 2) * dm]
             for nt in range(NT) for t in range(tau)], axis=0)       # (R, dm)

        # c_a repeats over tau -> matmul only NT*Bp unique rows, then replicate.
        ca_unique = jnp.concatenate(
            [gc[:, nt * D2: nt * D2 + dm] for nt in range(NT)], axis=0)
        ca_part = jnp.dot(ca_unique, w1a,
                          preferred_element_type=jnp.float32)        # (NT*Bp, 2dm)
        ca_full = jnp.concatenate(
            [ca_part[nt * Bp:(nt + 1) * Bp, :]
             for nt in range(NT) for _ in range(tau)], axis=0)       # (R, 2dm)

        # embedded future repeats over targets -> matmul tau*Bp unique rows.
        ef_part = jnp.dot(ef_ref[...], w1e,
                          preferred_element_type=jnp.float32)        # (tau*Bp, 2dm)
        ef_full = jnp.concatenate([ef_part] * NT, axis=0)            # (R, 2dm)

        h1 = (jnp.dot(ct_rows, w1t, preferred_element_type=jnp.float32)
              + ca_full + ef_full + b1)                              # (R, 2dm)
        h2 = jnp.dot(h1, w2, preferred_element_type=jnp.float32) + b2  # (R, dm)
        # Lane-dense 128-wide output slab (w3/b3 zero-padded); the NQ valid
        # columns are sliced off in the wrapper.
        o_ref[...] = (jnp.dot(h2, w3, preferred_element_type=jnp.float32)
                      + b3)                                          # (R, 128)

    return kernel


# -----------------------------------------------------------------------------
# Pallas forward (embedding gathers + layout glue in JAX, one fused kernel)
# -----------------------------------------------------------------------------
def mqrnn_forward_pallas(params, conti, cate, future, cfg):
    B, S, _ = conti.shape
    tau = cfg["tau"]
    dm = cfg["d_model"]
    NT = cfg["num_targets"]
    NQ = cfg["num_quantiles"]
    L = cfg["n_layers"]
    n_cate = len(cfg["n_embedding"])
    d_emb = cfg["d_embedding"]
    de_tot = n_cate * d_emb
    din0 = cfg["d_input"] + de_tot
    din0_k = _round_up(din0, _SUB)
    Bp = _round_up(B, _SUB)               # sublane-pad batch (free at vreg level)
    R = NT * tau * Bp

    # ---- embedding gathers + layout glue (XLA) ----
    enc_embs = [jnp.take(tbl, cate[:, :, i], axis=0)
                for i, tbl in enumerate(params["enc_emb"])]          # (B,S,d_emb)
    emb_out = jnp.stack(enc_embs, axis=-2).reshape(B, S, de_tot)
    x = jnp.concatenate([conti, emb_out], axis=-1)                   # (B,S,din0)
    x_tm = jnp.transpose(x, (1, 0, 2))                               # time-major
    x_tm = jnp.pad(x_tm, ((0, 0), (0, Bp - B), (0, din0_k - din0)))
    x_tm = x_tm.reshape(S * Bp, din0_k)

    f_embs = [jnp.take(tbl, future[:, :, i], axis=0)
              for i, tbl in enumerate(params["gd_emb"])]             # (B,tau,d_emb)
    emb_output_ = jnp.stack(f_embs, axis=-2)                         # (B,tau,n_cate,d_emb)
    emb_flat = jnp.pad(emb_output_.reshape(B, tau * de_tot),
                       ((0, Bp - B), (0, 0)))                        # (Bp, tau*de_tot)
    ef_bt = jnp.pad(emb_output_.reshape(B, tau, de_tot),
                    ((0, Bp - B), (0, 0), (0, 0)))
    ef_unique = jnp.transpose(ef_bt, (1, 0, 2)).reshape(tau * Bp, de_tot)

    # ---- pack weights into a handful of row slabs (one DMA each) ----
    lstm_slabs, lstm_offs = [], []
    for (w_ih_t, w_hh_t, bias) in params["lstm"]:
        slab, offs = _pack_rows([w_ih_t, w_hh_t, bias])
        lstm_slabs.append(slab)
        lstm_offs.append(offs)

    gd_w_t, gd_b = params["gd_lin"]                  # (dm+tau*de_tot, NT*(tau+1)*dm)
    gd_slab, gd_offs = _pack_rows([gd_w_t[:dm, :], gd_w_t[dm:, :], gd_b])

    w1_t, b1, w2_t, b2, w3_t, b3 = params["ld_lin"]
    ld1_slab, ld1_offs = _pack_rows(
        [w1_t[:dm, :], w1_t[dm:2 * dm, :], w1_t[2 * dm:, :], b1])
    ld2_slab, ld2_offs = _pack_rows([w2_t, b2])
    ld3_slab, ld3_offs = _pack_rows(
        [jnp.pad(w3_t, ((0, 0), (0, _LANE - NQ))),
         jnp.pad(b3, ((0, 0), (0, _LANE - NQ)))])

    kernel = make_mqrnn_kernel(S, Bp, dm, L, tau, NT, de_tot, din0_k,
                               lstm_offs, gd_offs, ld1_offs, ld2_offs, ld3_offs)

    inputs = [x_tm, emb_flat, ef_unique, *lstm_slabs,
              gd_slab, ld1_slab, ld2_slab, ld3_slab]

    in_bytes = sum(int(a.size) * a.dtype.itemsize for a in inputs)
    out_bytes = R * _LANE * 4
    flops = 2 * (
        S * Bp * din0_k * 4 * dm                      # hoisted layer-0 proj
        + (L - 1) * S * Bp * dm * 4 * dm              # layer>0 input proj
        + L * (S - 1) * Bp * dm * 4 * dm              # hidden->hidden
        + Bp * (dm + tau * de_tot) * NT * (tau + 1) * dm   # global decoder
        + R * dm * 2 * dm                             # local L1, c_t term
        + NT * Bp * dm * 2 * dm                       # local L1, c_a (dedup)
        + tau * Bp * de_tot * 2 * dm                  # local L1, ef (dedup)
        + R * 2 * dm * dm + R * dm * _LANE)           # local L2 & L3
    transcendentals = L * S * Bp * 6 * dm
    vmem_limit = min(64 << 20,
                     max(16 << 20, 2 * (in_bytes + out_bytes) + (2 << 20)))

    out_pad = pl.pallas_call(
        kernel,
        out_shape=jax.ShapeDtypeStruct((R, _LANE), jnp.float32),
        in_specs=[_VMEM] * len(inputs),
        out_specs=_VMEM,
        compiler_params=pltpu.CompilerParams(vmem_limit_bytes=vmem_limit),
        cost_estimate=pl.CostEstimate(flops=flops,
                                      transcendentals=transcendentals,
                                      bytes_accessed=in_bytes + out_bytes),
    )(*inputs)

    out = out_pad[:, :NQ].reshape(NT, tau, Bp, NQ)[:, :, :B, :]
    return jnp.transpose(out, (2, 0, 1, 3))                          # (B,NT,tau,NQ)


# -----------------------------------------------------------------------------
# Pure-JAX reference (matches the PyTorch module math)
# -----------------------------------------------------------------------------
def lstm_layer_ref(x_tm, w_ih_t, w_hh_t, bias):
    S, B, _ = x_tm.shape
    H = w_hh_t.shape[0]

    def step(carry, x_t):
        h, c = carry
        gates = x_t @ w_ih_t + h @ w_hh_t + bias
        i_g = jax.nn.sigmoid(gates[:, :H])
        f_g = jax.nn.sigmoid(gates[:, H:2 * H])
        g_g = jnp.tanh(gates[:, 2 * H:3 * H])
        o_g = jax.nn.sigmoid(gates[:, 3 * H:4 * H])
        c_new = f_g * c + i_g * g_g
        h_new = o_g * jnp.tanh(c_new)
        return (h_new, c_new), h_new

    init = (jnp.zeros((B, H), jnp.float32), jnp.zeros((B, H), jnp.float32))
    (h_fin, c_fin), seq = lax.scan(step, init, x_tm)
    return seq, h_fin, c_fin


def mqrnn_forward_ref(params, conti, cate, future, cfg):
    B, S, _ = conti.shape
    tau = cfg["tau"]
    d_model = cfg["d_model"]
    NT = cfg["num_targets"]
    NQ = cfg["num_quantiles"]
    n_cate = len(cfg["n_embedding"])
    d_emb = cfg["d_embedding"]

    enc_embs = [jnp.take(tbl, cate[:, :, i], axis=0)
                for i, tbl in enumerate(params["enc_emb"])]
    emb_out = jnp.stack(enc_embs, axis=-2).reshape(B, S, n_cate * d_emb)
    x = jnp.concatenate([conti, emb_out], axis=-1)
    h_in = jnp.transpose(x, (1, 0, 2))
    h_last = None
    for layer in range(cfg["n_layers"]):
        w_ih_t, w_hh_t, bias = params["lstm"][layer]
        seq_out, h_fin, _ = lstm_layer_ref(h_in, w_ih_t, w_hh_t, bias)
        h_in = seq_out
        h_last = h_fin

    f_embs = [jnp.take(tbl, future[:, :, i], axis=0)
              for i, tbl in enumerate(params["gd_emb"])]
    emb_output_ = jnp.stack(f_embs, axis=-2)
    emb_flat = emb_output_.reshape(B, -1)
    xg = jnp.concatenate([h_last, emb_flat], axis=-1)
    gd_w_t, gd_b = params["gd_lin"]
    gc_flat = xg @ gd_w_t + gd_b
    global_context = gc_flat.reshape(B, NT, (tau + 1) * d_model)
    embedded_future = emb_output_.reshape(B, tau, n_cate * d_emb)

    c_a = jnp.broadcast_to(global_context[..., :d_model][:, :, None, :],
                           (B, NT, tau, d_model))
    c_t = global_context[..., d_model:].reshape(B, NT, tau, d_model)
    ef = jnp.broadcast_to(embedded_future[:, None, :, :],
                          (B, NT, tau, n_cate * d_emb))
    xl = jnp.concatenate([c_a, c_t, ef], axis=-1).reshape(B * NT * tau, -1)

    w1_t, b1, w2_t, b2, w3_t, b3 = params["ld_lin"]
    h1 = xl @ w1_t + b1
    h2 = h1 @ w2_t + b2
    out = h2 @ w3_t + b3
    return out.reshape(B, NT, tau, NQ)


# -----------------------------------------------------------------------------
# Deterministic parameter initialization (shapes follow the nn.Module __init__)
# -----------------------------------------------------------------------------
def init_params(key, cfg):
    d_input = cfg["d_input"]
    d_emb = cfg["d_embedding"]
    n_embedding = cfg["n_embedding"]
    d_model = cfg["d_model"]
    tau = cfg["tau"]
    NT = cfg["num_targets"]
    NQ = cfg["num_quantiles"]
    n_layers = cfg["n_layers"]
    n_cate = len(n_embedding)

    def nxt():
        nonlocal key
        key, sub = jax.random.split(key)
        return sub

    def unif(shape, fan_in):
        k = 1.0 / jnp.sqrt(jnp.float32(fan_in))
        return jax.random.uniform(nxt(), shape, jnp.float32, -k, k)

    params = {}
    params["enc_emb"] = [jax.random.normal(nxt(), (n, d_emb), jnp.float32)
                         for n in n_embedding]
    d_in0 = d_input + n_cate * d_emb
    lstm = []
    for layer in range(n_layers):
        din = d_in0 if layer == 0 else d_model
        w_ih = unif((4 * d_model, din), d_model)
        w_hh = unif((4 * d_model, d_model), d_model)
        b_ih = unif((4 * d_model,), d_model)
        b_hh = unif((4 * d_model,), d_model)
        lstm.append((w_ih.T, w_hh.T, (b_ih + b_hh)[None, :]))
    params["lstm"] = lstm
    params["gd_emb"] = [jax.random.normal(nxt(), (n, d_emb), jnp.float32)
                        for n in n_embedding]
    din_g = d_model + tau * d_emb * n_cate
    dout_g = (tau + 1) * d_model
    ws, bs = [], []
    for _ in range(NT):
        ws.append(unif((dout_g, din_g), din_g))
        bs.append(unif((dout_g,), din_g))
    w_all = jnp.concatenate(ws, axis=0)                # (NT*dout_g, din_g)
    b_all = jnp.concatenate(bs, axis=0)[None, :]       # (1, NT*dout_g)
    params["gd_lin"] = (w_all.T, b_all)
    f_in = 2 * d_model + d_emb * n_cate
    w1 = unif((2 * d_model, f_in), f_in)
    b1 = unif((2 * d_model,), f_in)[None, :]
    w2 = unif((d_model, 2 * d_model), 2 * d_model)
    b2 = unif((d_model,), 2 * d_model)[None, :]
    w3 = unif((NQ, d_model), d_model)
    b3 = unif((NQ,), d_model)[None, :]
    params["ld_lin"] = (w1.T, b1, w2.T, b2, w3.T, b3)
    return params


# -----------------------------------------------------------------------------
# Main
# -----------------------------------------------------------------------------
if __name__ == "__main__":
    cfg = dict(
        d_input=4,
        d_embedding=4,
        n_embedding=[10, 20],
        d_model=32,
        tau=4,
        num_targets=2,
        num_quantiles=3,
        n_layers=2,
        dr=0.0,   # dropout disabled -> deterministic forward
    )
    B, S = 2, 8
    n_cate = len(cfg["n_embedding"])

    key = jax.random.PRNGKey(0)
    kp, kc, kcat, kfut = jax.random.split(key, 4)
    params = init_params(kp, cfg)

    conti = jax.random.normal(kc, (B, S, cfg["d_input"]), jnp.float32)
    cate = jnp.stack(
        [jax.random.randint(jax.random.fold_in(kcat, i), (B, S), 0, n)
         for i, n in enumerate(cfg["n_embedding"])], axis=-1).astype(jnp.int32)
    future = jnp.stack(
        [jax.random.randint(jax.random.fold_in(kfut, i), (B, cfg["tau"]), 0, n)
         for i, n in enumerate(cfg["n_embedding"])], axis=-1).astype(jnp.int32)

    fwd_pallas = jax.jit(functools.partial(mqrnn_forward_pallas, params, cfg=cfg))
    fwd_ref = jax.jit(functools.partial(mqrnn_forward_ref, params, cfg=cfg))

    out = jax.block_until_ready(fwd_pallas(conti, cate, future))
    ref = jax.block_until_ready(fwd_ref(conti, cate, future))

    assert out.shape == (B, cfg["num_targets"], cfg["tau"], cfg["num_quantiles"])
    assert jnp.allclose(out, ref, atol=1e-4, rtol=1e-3), (
        f"max abs diff {jnp.max(jnp.abs(out - ref))}")

    print("KERNEL_OK")
</pallas_src>

<mosaic_0001>
module attributes {stable_mosaic.version = 11 : i64} {
  func.func @kernel(%arg0: memref<64x16xf32, #tpu.memory_space<vmem>>, %arg1: memref<8x32xf32, #tpu.memory_space<vmem>>, %arg2: memref<32x8xf32, #tpu.memory_space<vmem>>, %arg3: memref<56x128xf32, #tpu.memory_space<vmem>>, %arg4: memref<72x128xf32, #tpu.memory_space<vmem>>, %arg5: memref<72x320xf32, #tpu.memory_space<vmem>>, %arg6: memref<80x64xf32, #tpu.memory_space<vmem>>, %arg7: memref<72x32xf32, #tpu.memory_space<vmem>>, %arg8: memref<40x128xf32, #tpu.memory_space<vmem>>, %arg9: memref<64x128xf32, #tpu.memory_space<vmem>>) attributes {dimension_semantics = [], scalar_prefetch = 0 : i64, scratch_operands = 0 : i64, tpu.core_type = #tpu.core_type<tc>} {
    %c0 = arith.constant 0 : index
    %c0_0 = arith.constant 0 : index
    %0 = vector.load %arg3[%c0, %c0_0] : memref<56x128xf32, #tpu.memory_space<vmem>>, vector<16x128xf32>
    %c16 = arith.constant 16 : index
    %c0_1 = arith.constant 0 : index
    %1 = vector.load %arg3[%c16, %c0_1] : memref<56x128xf32, #tpu.memory_space<vmem>>, vector<32x128xf32>
    %c48 = arith.constant 48 : index
    %c0_2 = arith.constant 0 : index
    %2 = vector.load %arg3[%c48, %c0_2] : memref<56x128xf32, #tpu.memory_space<vmem>>, vector<1x128xf32>
    %c0_3 = arith.constant 0 : index
    %c0_4 = arith.constant 0 : index
    %3 = vector.load %arg4[%c0_3, %c0_4] : memref<72x128xf32, #tpu.memory_space<vmem>>, vector<32x128xf32>
    %c32 = arith.constant 32 : index
    %c0_5 = arith.constant 0 : index
    %4 = vector.load %arg4[%c32, %c0_5] : memref<72x128xf32, #tpu.memory_space<vmem>>, vector<32x128xf32>
    %c64 = arith.constant 64 : index
    %c0_6 = arith.constant 0 : index
    %5 = vector.load %arg4[%c64, %c0_6] : memref<72x128xf32, #tpu.memory_space<vmem>>, vector<1x128xf32>
    %c0_7 = arith.constant 0 : index
    %c0_8 = arith.constant 0 : index
    %6 = vector.load %arg0[%c0_7, %c0_8] : memref<64x16xf32, #tpu.memory_space<vmem>>, vector<64x16xf32>
    %cst = arith.constant dense<0.000000e+00> : vector<64x128xf32>
    %7 = tpu.matmul %6, %0, %cst {dimension_numbers = #tpu.dot_dimension_numbers<[1], [0], [0], [1], [0, 0, 1, 1], [], []>} : vector<64x16xf32>, vector<16x128xf32>, vector<64x128xf32> -> vector<64x128xf32>
    %8 = vector.broadcast %2 : vector<1x128xf32> to vector<64x128xf32>
    %9 = arith.addf %7, %8 : vector<64x128xf32>
    %10 = vector.extract_strided_slice %9 {offsets = [0, 0], sizes = [8, 128], strides = [1, 1]} : vector<64x128xf32> to vector<8x128xf32>
    %11 = arith.negf %10 : vector<8x128xf32>
    %12 = math.exp %11 : vector<8x128xf32>
    %cst_9 = arith.constant 1.000000e+00 : f32
    %13 = vector.broadcast %cst_9 : f32 to vector<8x128xf32>
    %14 = arith.addf %13, %12 : vector<8x128xf32>
    %15 = arith.divf %13, %14 : vector<8x128xf32>
    %16 = vector.extract_strided_slice %10 {offsets = [0, 64], sizes = [8, 32], strides = [1, 1]} : vector<8x128xf32> to vector<8x32xf32>
    %17 = math.tanh %16 : vector<8x32xf32>
    %18 = vector.extract_strided_slice %15 {offsets = [0, 0], sizes = [8, 32], strides = [1, 1]} : vector<8x128xf32> to vector<8x32xf32>
    %19 = vector.extract_strided_slice %15 {offsets = [0, 96], sizes = [8, 32], strides = [1, 1]} : vector<8x128xf32> to vector<8x32xf32>
    %20 = arith.mulf %18, %17 : vector<8x32xf32>
    %21 = math.tanh %20 : vector<8x32xf32>
    %22 = arith.mulf %19, %21 : vector<8x32xf32>
    %cst_10 = arith.constant dense<0.000000e+00> : vector<8x128xf32>
    %23 = tpu.matmul %22, %3, %cst_10 {dimension_numbers = #tpu.dot_dimension_numbers<[1], [0], [0], [1], [0, 0, 1, 1], [], []>} : vector<8x32xf32>, vector<32x128xf32>, vector<8x128xf32> -> vector<8x128xf32>
    %24 = vector.broadcast %5 : vector<1x128xf32> to vector<8x128xf32>
    %25 = arith.addf %23, %24 : vector<8x128xf32>
    %26 = arith.negf %25 : vector<8x128xf32>
    %27 = math.exp %26 : vector<8x128xf32>
    %cst_11 = arith.constant 1.000000e+00 : f32
    %28 = vector.broadcast %cst_11 : f32 to vector<8x128xf32>
    %29 = arith.addf %28, %27 : vector<8x128xf32>
    %30 = arith.divf %28, %29 : vector<8x128xf32>
    %31 = vector.extract_strided_slice %25 {offsets = [0, 64], sizes = [8, 32], strides = [1, 1]} : vector<8x128xf32> to vector<8x32xf32>
    %32 = math.tanh %31 : vector<8x32xf32>
    %33 = vector.extract_strided_slice %30 {offsets = [0, 0], sizes = [8, 32], strides = [1, 1]} : vector<8x128xf32> to vector<8x32xf32>
    %34 = vector.extract_strided_slice %30 {offsets = [0, 96], sizes = [8, 32], strides = [1, 1]} : vector<8x128xf32> to vector<8x32xf32>
    %35 = arith.mulf %33, %32 : vector<8x32xf32>
    %36 = math.tanh %35 : vector<8x32xf32>
    %37 = arith.mulf %34, %36 : vector<8x32xf32>
    %38 = vector.extract_strided_slice %9 {offsets = [8, 0], sizes = [8, 128], strides = [1, 1]} : vector<64x128xf32> to vector<8x128xf32>
    %cst_12 = arith.constant dense<0.000000e+00> : vector<8x128xf32>
    %39 = tpu.matmul %22, %1, %cst_12 {dimension_numbers = #tpu.dot_dimension_numbers<[1], [0], [0], [1], [0, 0, 1, 1], [], []>} : vector<8x32xf32>, vector<32x128xf32>, vector<8x128xf32> -> vector<8x128xf32>
    %40 = arith.addf %38, %39 : vector<8x128xf32>
    %41 = arith.negf %40 : vector<8x128xf32>
    %42 = math.exp %41 : vector<8x128xf32>
    %cst_13 = arith.constant 1.000000e+00 : f32
    %43 = vector.broadcast %cst_13 : f32 to vector<8x128xf32>
    %44 = arith.addf %43, %42 : vector<8x128xf32>
    %45 = arith.divf %43, %44 : vector<8x128xf32>
    %46 = vector.extract_strided_slice %40 {offsets = [0, 64], sizes = [8, 32], strides = [1, 1]} : vector<8x128xf32> to vector<8x32xf32>
    %47 = math.tanh %46 : vector<8x32xf32>
    %48 = vector.extract_strided_slice %45 {offsets = [0, 0], sizes = [8, 32], strides = [1, 1]} : vector<8x128xf32> to vector<8x32xf32>
    %49 = vector.extract_strided_slice %45 {offsets = [0, 96], sizes = [8, 32], strides = [1, 1]} : vector<8x128xf32> to vector<8x32xf32>
    %50 = vector.extract_strided_slice %45 {offsets = [0, 32], sizes = [8, 32], strides = [1, 1]} : vector<8x128xf32> to vector<8x32xf32>
    %51 = arith.mulf %50, %20 : vector<8x32xf32>
    %52 = arith.mulf %48, %47 : vector<8x32xf32>
    %53 = arith.addf %51, %52 : vector<8x32xf32>
    %54 = math.tanh %53 : vector<8x32xf32>
    %55 = arith.mulf %49, %54 : vector<8x32xf32>
    %cst_14 = arith.constant dense<0.000000e+00> : vector<8x128xf32>
    %56 = tpu.matmul %55, %3, %cst_14 {dimension_numbers = #tpu.dot_dimension_numbers<[1], [0], [0], [1], [0, 0, 1, 1], [], []>} : vector<8x32xf32>, vector<32x128xf32>, vector<8x128xf32> -> vector<8x128xf32>
    %cst_15 = arith.constant dense<0.000000e+00> : vector<8x128xf32>
    %57 = tpu.matmul %37, %4, %cst_15 {dimension_numbers = #tpu.dot_dimension_numbers<[1], [0], [0], [1], [0, 0, 1, 1], [], []>} : vector<8x32xf32>, vector<32x128xf32>, vector<8x128xf32> -> vector<8x128xf32>
    %58 = arith.addf %56, %57 : vector<8x128xf32>
    %59 = vector.broadcast %5 : vector<1x128xf32> to vector<8x128xf32>
    %60 = arith.addf %58, %59 : vector<8x128xf32>
    %61 = arith.negf %60 : vector<8x128xf32>
    %62 = math.exp %61 : vector<8x128xf32>
    %cst_16 = arith.constant 1.000000e+00 : f32
    %63 = vector.broadcast %cst_16 : f32 to vector<8x128xf32>
    %64 = arith.addf %63, %62 : vector<8x128xf32>
    %65 = arith.divf %63, %64 : vector<8x128xf32>
    %66 = vector.extract_strided_slice %60 {offsets = [0, 64], sizes = [8, 32], strides = [1, 1]} : vector<8x128xf32> to vector<8x32xf32>
    %67 = math.tanh %66 : vector<8x32xf32>
    %68 = vector.extract_strided_slice %65 {offsets = [0, 0], sizes = [8, 32], strides = [1, 1]} : vector<8x128xf32> to vector<8x32xf32>
    %69 = vector.extract_strided_slice %65 {offsets = [0, 96], sizes = [8, 32], strides = [1, 1]} : vector<8x128xf32> to vector<8x32xf32>
    %70 = vector.extract_strided_slice %65 {offsets = [0, 32], sizes = [8, 32], strides = [1, 1]} : vector<8x128xf32> to vector<8x32xf32>
    %71 = arith.mulf %70, %35 : vector<8x32xf32>
    %72 = arith.mulf %68, %67 : vector<8x32xf32>
    %73 = arith.addf %71, %72 : vector<8x32xf32>
    %74 = math.tanh %73 : vector<8x32xf32>
    %75 = arith.mulf %69, %74 : vector<8x32xf32>
    %76 = vector.extract_strided_slice %9 {offsets = [16, 0], sizes = [8, 128], strides = [1, 1]} : vector<64x128xf32> to vector<8x128xf32>
    %cst_17 = arith.constant dense<0.000000e+00> : vector<8x128xf32>
    %77 = tpu.matmul %55, %1, %cst_17 {dimension_numbers = #tpu.dot_dimension_numbers<[1], [0], [0], [1], [0, 0, 1, 1], [], []>} : vector<8x32xf32>, vector<32x128xf32>, vector<8x128xf32> -> vector<8x128xf32>
    %78 = arith.addf %76, %77 : vector<8x128xf32>
    %79 = arith.negf %78 : vector<8x128xf32>
    %80 = math.exp %79 : vector<8x128xf32>
    %cst_18 = arith.constant 1.000000e+00 : f32
    %81 = vector.broadcast %cst_18 : f32 to vector<8x128xf32>
    %82 = arith.addf %81, %80 : vector<8x128xf32>
    %83 = arith.divf %81, %82 : vector<8x128xf32>
    %84 = vector.extract_strided_slice %78 {offsets = [0, 64], sizes = [8, 32], strides = [1, 1]} : vector<8x128xf32> to vector<8x32xf32>
    %85 = math.tanh %84 : vector<8x32xf32>
    %86 = vector.extract_strided_slice %83 {offsets = [0, 0], sizes = [8, 32], strides = [1, 1]} : vector<8x128xf32> to vector<8x32xf32>
    %87 = vector.extract_strided_slice %83 {offsets = [0, 96], sizes = [8, 32], strides = [1, 1]} : vector<8x128xf32> to vector<8x32xf32>
    %88 = vector.extract_strided_slice %83 {offsets = [0, 32], sizes = [8, 32], strides = [1, 1]} : vector<8x128xf32> to vector<8x32xf32>
    %89 = arith.mulf %88, %53 : vector<8x32xf32>
    %90 = arith.mulf %86, %85 : vector<8x32xf32>
    %91 = arith.addf %89, %90 : vector<8x32xf32>
    %92 = math.tanh %91 : vector<8x32xf32>
    %93 = arith.mulf %87, %92 : vector<8x32xf32>
    %cst_19 = arith.constant dense<0.000000e+00> : vector<8x128xf32>
    %94 = tpu.matmul %93, %3, %cst_19 {dimension_numbers = #tpu.dot_dimension_numbers<[1], [0], [0], [1], [0, 0, 1, 1], [], []>} : vector<8x32xf32>, vector<32x128xf32>, vector<8x128xf32> -> vector<8x128xf32>
    %cst_20 = arith.constant dense<0.000000e+00> : vector<8x128xf32>
    %95 = tpu.matmul %75, %4, %cst_20 {dimension_numbers = #tpu.dot_dimension_numbers<[1], [0], [0], [1], [0, 0, 1, 1], [], []>} : vector<8x32xf32>, vector<32x128xf32>, vector<8x128xf32> -> vector<8x128xf32>
    %96 = arith.addf %94, %95 : vector<8x128xf32>
    %97 = vector.broadcast %5 : vector<1x128xf32> to vector<8x128xf32>
    %98 = arith.addf %96, %97 : vector<8x128xf32>
    %99 = arith.negf %98 : vector<8x128xf32>
    %100 = math.exp %99 : vector<8x128xf32>
    %cst_21 = arith.constant 1.000000e+00 : f32
    %101 = vector.broadcast %cst_21 : f32 to vector<8x128xf32>
    %102 = arith.addf %101, %100 : vector<8x128xf32>
    %103 = arith.divf %101, %102 : vector<8x128xf32>
    %104 = vector.extract_strided_slice %98 {offsets = [0, 64], sizes = [8, 32], strides = [1, 1]} : vector<8x128xf32> to vector<8x32xf32>
    %105 = math.tanh %104 : vector<8x32xf32>
    %106 = vector.extract_strided_slice %103 {offsets = [0, 0], sizes = [8, 32], strides = [1, 1]} : vector<8x128xf32> to vector<8x32xf32>
    %107 = vector.extract_strided_slice %103 {offsets = [0, 96], sizes = [8, 32], strides = [1, 1]} : vector<8x128xf32> to vector<8x32xf32>
    %108 = vector.extract_strided_slice %103 {offsets = [0, 32], sizes = [8, 32], strides = [1, 1]} : vector<8x128xf32> to vector<8x32xf32>
    %109 = arith.mulf %108, %73 : vector<8x32xf32>
    %110 = arith.mulf %106, %105 : vector<8x32xf32>
    %111 = arith.addf %109, %110 : vector<8x32xf32>
    %112 = math.tanh %111 : vector<8x32xf32>
    %113 = arith.mulf %107, %112 : vector<8x32xf32>
    %114 = vector.extract_strided_slice %9 {offsets = [24, 0], sizes = [8, 128], strides = [1, 1]} : vector<64x128xf32> to vector<8x128xf32>
    %cst_22 = arith.constant dense<0.000000e+00> : vector<8x128xf32>
    %115 = tpu.matmul %93, %1, %cst_22 {dimension_numbers = #tpu.dot_dimension_numbers<[1], [0], [0], [1], [0, 0, 1, 1], [], []>} : vector<8x32xf32>, vector<32x128xf32>, vector<8x128xf32> -> vector<8x128xf32>
    %116 = arith.addf %114, %115 : vector<8x128xf32>
    %117 = arith.negf %116 : vector<8x128xf32>
    %118 = math.exp %117 : vector<8x128xf32>
    %cst_23 = arith.constant 1.000000e+00 : f32
    %119 = vector.broadcast %cst_23 : f32 to vector<8x128xf32>
    %120 = arith.addf %119, %118 : vector<8x128xf32>
    %121 = arith.divf %119, %120 : vector<8x128xf32>
    %122 = vector.extract_strided_slice %116 {offsets = [0, 64], sizes = [8, 32], strides = [1, 1]} : vector<8x128xf32> to vector<8x32xf32>
    %123 = math.tanh %122 : vector<8x32xf32>
    %124 = vector.extract_strided_slice %121 {offsets = [0, 0], sizes = [8, 32], strides = [1, 1]} : vector<8x128xf32> to vector<8x32xf32>
    %125 = vector.extract_strided_slice %121 {offsets = [0, 96], sizes = [8, 32], strides = [1, 1]} : vector<8x128xf32> to vector<8x32xf32>
    %126 = vector.extract_strided_slice %121 {offsets = [0, 32], sizes = [8, 32], strides = [1, 1]} : vector<8x128xf32> to vector<8x32xf32>
    %127 = arith.mulf %126, %91 : vector<8x32xf32>
    %128 = arith.mulf %124, %123 : vector<8x32xf32>
    %129 = arith.addf %127, %128 : vector<8x32xf32>
    %130 = math.tanh %129 : vector<8x32xf32>
    %131 = arith.mulf %125, %130 : vector<8x32xf32>
    %cst_24 = arith.constant dense<0.000000e+00> : vector<8x128xf32>
    %132 = tpu.matmul %131, %3, %cst_24 {dimension_numbers = #tpu.dot_dimension_numbers<[1], [0], [0], [1], [0, 0, 1, 1], [], []>} : vector<8x32xf32>, vector<32x128xf32>, vector<8x128xf32> -> vector<8x128xf32>
    %cst_25 = arith.constant dense<0.000000e+00> : vector<8x128xf32>
    %133 = tpu.matmul %113, %4, %cst_25 {dimension_numbers = #tpu.dot_dimension_numbers<[1], [0], [0], [1], [0, 0, 1, 1], [], []>} : vector<8x32xf32>, vector<32x128xf32>, vector<8x128xf32> -> vector<8x128xf32>
    %134 = arith.addf %132, %133 : vector<8x128xf32>
    %135 = vector.broadcast %5 : vector<1x128xf32> to vector<8x128xf32>
    %136 = arith.addf %134, %135 : vector<8x128xf32>
    %137 = arith.negf %136 : vector<8x128xf32>
    %138 = math.exp %137 : vector<8x128xf32>
    %cst_26 = arith.constant 1.000000e+00 : f32
    %139 = vector.broadcast %cst_26 : f32 to vector<8x128xf32>
    %140 = arith.addf %139, %138 : vector<8x128xf32>
    %141 = arith.divf %139, %140 : vector<8x128xf32>
    %142 = vector.extract_strided_slice %136 {offsets = [0, 64], sizes = [8, 32], strides = [1, 1]} : vector<8x128xf32> to vector<8x32xf32>
    %143 = math.tanh %142 : vector<8x32xf32>
    %144 = vector.extract_strided_slice %141 {offsets = [0, 0], sizes = [8, 32], strides = [1, 1]} : vector<8x128xf32> to vector<8x32xf32>
    %145 = vector.extract_strided_slice %141 {offsets = [0, 96], sizes = [8, 32], strides = [1, 1]} : vector<8x128xf32> to vector<8x32xf32>
    %146 = vector.extract_strided_slice %141 {offsets = [0, 32], sizes = [8, 32], strides = [1, 1]} : vector<8x128xf32> to vector<8x32xf32>
    %147 = arith.mulf %146, %111 : vector<8x32xf32>
    %148 = arith.mulf %144, %143 : vector<8x32xf32>
    %149 = arith.addf %147, %148 : vector<8x32xf32>
    %150 = math.tanh %149 : vector<8x32xf32>
    %151 = arith.mulf %145, %150 : vector<8x32xf32>
    %152 = vector.extract_strided_slice %9 {offsets = [32, 0], sizes = [8, 128], strides = [1, 1]} : vector<64x128xf32> to vector<8x128xf32>
    %cst_27 = arith.constant dense<0.000000e+00> : vector<8x128xf32>
    %153 = tpu.matmul %131, %1, %cst_27 {dimension_numbers = #tpu.dot_dimension_numbers<[1], [0], [0], [1], [0, 0, 1, 1], [], []>} : vector<8x32xf32>, vector<32x128xf32>, vector<8x128xf32> -> vector<8x128xf32>
    %154 = arith.addf %152, %153 : vector<8x128xf32>
    %155 = arith.negf %154 : vector<8x128xf32>
    %156 = math.exp %155 : vector<8x128xf32>
    %cst_28 = arith.constant 1.000000e+00 : f32
    %157 = vector.broadcast %cst_28 : f32 to vector<8x128xf32>
    %158 = arith.addf %157, %156 : vector<8x128xf32>
    %159 = arith.divf %157, %158 : vector<8x128xf32>
    %160 = vector.extract_strided_slice %154 {offsets = [0, 64], sizes = [8, 32], strides = [1, 1]} : vector<8x128xf32> to vector<8x32xf32>
    %161 = math.tanh %160 : vector<8x32xf32>
    %162 = vector.extract_strided_slice %159 {offsets = [0, 0], sizes = [8, 32], strides = [1, 1]} : vector<8x128xf32> to vector<8x32xf32>
    %163 = vector.extract_strided_slice %159 {offsets = [0, 96], sizes = [8, 32], strides = [1, 1]} : vector<8x128xf32> to vector<8x32xf32>
    %164 = vector.extract_strided_slice %159 {offsets = [0, 32], sizes = [8, 32], strides = [1, 1]} : vector<8x128xf32> to vector<8x32xf32>
    %165 = arith.mulf %164, %129 : vector<8x32xf32>
    %166 = arith.mulf %162, %161 : vector<8x32xf32>
    %167 = arith.addf %165, %166 : vector<8x32xf32>
    %168 = math.tanh %167 : vector<8x32xf32>
    %169 = arith.mulf %163, %168 : vector<8x32xf32>
    %cst_29 = arith.constant dense<0.000000e+00> : vector<8x128xf32>
    %170 = tpu.matmul %169, %3, %cst_29 {dimension_numbers = #tpu.dot_dimension_numbers<[1], [0], [0], [1], [0, 0, 1, 1], [], []>} : vector<8x32xf32>, vector<32x128xf32>, vector<8x128xf32> -> vector<8x128xf32>
    %cst_30 = arith.constant dense<0.000000e+00> : vector<8x128xf32>
    %171 = tpu.matmul %151, %4, %cst_30 {dimension_numbers = #tpu.dot_dimension_numbers<[1], [0], [0], [1], [0, 0, 1, 1], [], []>} : vector<8x32xf32>, vector<32x128xf32>, vector<8x128xf32> -> vector<8x128xf32>
    %172 = arith.addf %170, %171 : vector<8x128xf32>
    %173 = vector.broadcast %5 : vector<1x128xf32> to vector<8x128xf32>
    %174 = arith.addf %172, %173 : vector<8x128xf32>
    %175 = arith.negf %174 : vector<8x128xf32>
    %176 = math.exp %175 : vector<8x128xf32>
    %cst_31 = arith.constant 1.000000e+00 : f32
    %177 = vector.broadcast %cst_31 : f32 to vector<8x128xf32>
    %178 = arith.addf %177, %176 : vector<8x128xf32>
    %179 = arith.divf %177, %178 : vector<8x128xf32>
    %180 = vector.extract_strided_slice %174 {offsets = [0, 64], sizes = [8, 32], strides = [1, 1]} : vector<8x128xf32> to vector<8x32xf32>
    %181 = math.tanh %180 : vector<8x32xf32>
    %182 = vector.extract_strided_slice %179 {offsets = [0, 0], sizes = [8, 32], strides = [1, 1]} : vector<8x128xf32> to vector<8x32xf32>
    %183 = vector.extract_strided_slice %179 {offsets = [0, 96], sizes = [8, 32], strides = [1, 1]} : vector<8x128xf32> to vector<8x32xf32>
    %184 = vector.extract_strided_slice %179 {offsets = [0, 32], sizes = [8, 32], strides = [1, 1]} : vector<8x128xf32> to vector<8x32xf32>
    %185 = arith.mulf %184, %149 : vector<8x32xf32>
    %186 = arith.mulf %182, %181 : vector<8x32xf32>
    %187 = arith.addf %185, %186 : vector<8x32xf32>
    %188 = math.tanh %187 : vector<8x32xf32>
    %189 = arith.mulf %183, %188 : vector<8x32xf32>
    %190 = vector.extract_strided_slice %9 {offsets = [40, 0], sizes = [8, 128], strides = [1, 1]} : vector<64x128xf32> to vector<8x128xf32>
    %cst_32 = arith.constant dense<0.000000e+00> : vector<8x128xf32>
    %191 = tpu.matmul %169, %1, %cst_32 {dimension_numbers = #tpu.dot_dimension_numbers<[1], [0], [0], [1], [0, 0, 1, 1], [], []>} : vector<8x32xf32>, vector<32x128xf32>, vector<8x128xf32> -> vector<8x128xf32>
    %192 = arith.addf %190, %191 : vector<8x128xf32>
    %193 = arith.negf %192 : vector<8x128xf32>
    %194 = math.exp %193 : vector<8x128xf32>
    %cst_33 = arith.constant 1.000000e+00 : f32
    %195 = vector.broadcast %cst_33 : f32 to vector<8x128xf32>
    %196 = arith.addf %195, %194 : vector<8x128xf32>
    %197 = arith.divf %195, %196 : vector<8x128xf32>
    %198 = vector.extract_strided_slice %192 {offsets = [0, 64], sizes = [8, 32], strides = [1, 1]} : vector<8x128xf32> to vector<8x32xf32>
    %199 = math.tanh %198 : vector<8x32xf32>
    %200 = vector.extract_strided_slice %197 {offsets = [0, 0], sizes = [8, 32], strides = [1, 1]} : vector<8x128xf32> to vector<8x32xf32>
    %201 = vector.extract_strided_slice %197 {offsets = [0, 96], sizes = [8, 32], strides = [1, 1]} : vector<8x128xf32> to vector<8x32xf32>
    %202 = vector.extract_strided_slice %197 {offsets = [0, 32], sizes = [8, 32], strides = [1, 1]} : vector<8x128xf32> to vector<8x32xf32>
    %203 = arith.mulf %202, %167 : vector<8x32xf32>
    %204 = arith.mulf %200, %199 : vector<8x32xf32>
    %205 = arith.addf %203, %204 : vector<8x32xf32>
    %206 = math.tanh %205 : vector<8x32xf32>
    %207 = arith.mulf %201, %206 : vector<8x32xf32>
    %cst_34 = arith.constant dense<0.000000e+00> : vector<8x128xf32>
    %208 = tpu.matmul %207, %3, %cst_34 {dimension_numbers = #tpu.dot_dimension_numbers<[1], [0], [0], [1], [0, 0, 1, 1], [], []>} : vector<8x32xf32>, vector<32x128xf32>, vector<8x128xf32> -> vector<8x128xf32>
    %cst_35 = arith.constant dense<0.000000e+00> : vector<8x128xf32>
    %209 = tpu.matmul %189, %4, %cst_35 {dimension_numbers = #tpu.dot_dimension_numbers<[1], [0], [0], [1], [0, 0, 1, 1], [], []>} : vector<8x32xf32>, vector<32x128xf32>, vector<8x128xf32> -> vector<8x128xf32>
    %210 = arith.addf %208, %209 : vector<8x128xf32>
    %211 = vector.broadcast %5 : vector<1x128xf32> to vector<8x128xf32>
    %212 = arith.addf %210, %211 : vector<8x128xf32>
    %213 = arith.negf %212 : vector<8x128xf32>
    %214 = math.exp %213 : vector<8x128xf32>
    %cst_36 = arith.constant 1.000000e+00 : f32
    %215 = vector.broadcast %cst_36 : f32 to vector<8x128xf32>
    %216 = arith.addf %215, %214 : vector<8x128xf32>
    %217 = arith.divf %215, %216 : vector<8x128xf32>
    %218 = vector.extract_strided_slice %212 {offsets = [0, 64], sizes = [8, 32], strides = [1, 1]} : vector<8x128xf32> to vector<8x32xf32>
    %219 = math.tanh %218 : vector<8x32xf32>
    %220 = vector.extract_strided_slice %217 {offsets = [0, 0], sizes = [8, 32], strides = [1, 1]} : vector<8x128xf32> to vector<8x32xf32>
    %221 = vector.extract_strided_slice %217 {offsets = [0, 96], sizes = [8, 32], strides = [1, 1]} : vector<8x128xf32> to vector<8x32xf32>
    %222 = vector.extract_strided_slice %217 {offsets = [0, 32], sizes = [8, 32], strides = [1, 1]} : vector<8x128xf32> to vector<8x32xf32>
    %223 = arith.mulf %222, %187 : vector<8x32xf32>
    %224 = arith.mulf %220, %219 : vector<8x32xf32>
    %225 = arith.addf %223, %224 : vector<8x32xf32>
    %226 = math.tanh %225 : vector<8x32xf32>
    %227 = arith.mulf %221, %226 : vector<8x32xf32>
    %228 = vector.extract_strided_slice %9 {offsets = [48, 0], sizes = [8, 128], strides = [1, 1]} : vector<64x128xf32> to vector<8x128xf32>
    %cst_37 = arith.constant dense<0.000000e+00> : vector<8x128xf32>
    %229 = tpu.matmul %207, %1, %cst_37 {dimension_numbers = #tpu.dot_dimension_numbers<[1], [0], [0], [1], [0, 0, 1, 1], [], []>} : vector<8x32xf32>, vector<32x128xf32>, vector<8x128xf32> -> vector<8x128xf32>
    %230 = arith.addf %228, %229 : vector<8x128xf32>
    %231 = arith.negf %230 : vector<8x128xf32>
    %232 = math.exp %231 : vector<8x128xf32>
    %cst_38 = arith.constant 1.000000e+00 : f32
    %233 = vector.broadcast %cst_38 : f32 to vector<8x128xf32>
    %234 = arith.addf %233, %232 : vector<8x128xf32>
    %235 = arith.divf %233, %234 : vector<8x128xf32>
    %236 = vector.extract_strided_slice %230 {offsets = [0, 64], sizes = [8, 32], strides = [1, 1]} : vector<8x128xf32> to vector<8x32xf32>
    %237 = math.tanh %236 : vector<8x32xf32>
    %238 = vector.extract_strided_slice %235 {offsets = [0, 0], sizes = [8, 32], strides = [1, 1]} : vector<8x128xf32> to vector<8x32xf32>
    %239 = vector.extract_strided_slice %235 {offsets = [0, 96], sizes = [8, 32], strides = [1, 1]} : vector<8x128xf32> to vector<8x32xf32>
    %240 = vector.extract_strided_slice %235 {offsets = [0, 32], sizes = [8, 32], strides = [1, 1]} : vector<8x128xf32> to vector<8x32xf32>
    %241 = arith.mulf %240, %205 : vector<8x32xf32>
    %242 = arith.mulf %238, %237 : vector<8x32xf32>
    %243 = arith.addf %241, %242 : vector<8x32xf32>
    %244 = math.tanh %243 : vector<8x32xf32>
    %245 = arith.mulf %239, %244 : vector<8x32xf32>
    %cst_39 = arith.constant dense<0.000000e+00> : vector<8x128xf32>
    %246 = tpu.matmul %245, %3, %cst_39 {dimension_numbers = #tpu.dot_dimension_numbers<[1], [0], [0], [1], [0, 0, 1, 1], [], []>} : vector<8x32xf32>, vector<32x128xf32>, vector<8x128xf32> -> vector<8x128xf32>
    %cst_40 = arith.constant dense<0.000000e+00> : vector<8x128xf32>
    %247 = tpu.matmul %227, %4, %cst_40 {dimension_numbers = #tpu.dot_dimension_numbers<[1], [0], [0], [1], [0, 0, 1, 1], [], []>} : vector<8x32xf32>, vector<32x128xf32>, vector<8x128xf32> -> vector<8x128xf32>
    %248 = arith.addf %246, %247 : vector<8x128xf32>
    %249 = vector.broadcast %5 : vector<1x128xf32> to vector<8x128xf32>
    %250 = arith.addf %248, %249 : vector<8x128xf32>
    %251 = arith.negf %250 : vector<8x128xf32>
    %252 = math.exp %251 : vector<8x128xf32>
    %cst_41 = arith.constant 1.000000e+00 : f32
    %253 = vector.broadcast %cst_41 : f32 to vector<8x128xf32>
    %254 = arith.addf %253, %252 : vector<8x128xf32>
    %255 = arith.divf %253, %254 : vector<8x128xf32>
    %256 = vector.extract_strided_slice %250 {offsets = [0, 64], sizes = [8, 32], strides = [1, 1]} : vector<8x128xf32> to vector<8x32xf32>
    %257 = math.tanh %256 : vector<8x32xf32>
    %258 = vector.extract_strided_slice %255 {offsets = [0, 0], sizes = [8, 32], strides = [1, 1]} : vector<8x128xf32> to vector<8x32xf32>
    %259 = vector.extract_strided_slice %255 {offsets = [0, 96], sizes = [8, 32], strides = [1, 1]} : vector<8x128xf32> to vector<8x32xf32>
    %260 = vector.extract_strided_slice %255 {offsets = [0, 32], sizes = [8, 32], strides = [1, 1]} : vector<8x128xf32> to vector<8x32xf32>
    %261 = arith.mulf %260, %225 : vector<8x32xf32>
    %262 = arith.mulf %258, %257 : vector<8x32xf32>
    %263 = arith.addf %261, %262 : vector<8x32xf32>
    %264 = math.tanh %263 : vector<8x32xf32>
    %265 = arith.mulf %259, %264 : vector<8x32xf32>
    %266 = vector.extract_strided_slice %9 {offsets = [56, 0], sizes = [8, 128], strides = [1, 1]} : vector<64x128xf32> to vector<8x128xf32>
    %cst_42 = arith.constant dense<0.000000e+00> : vector<8x128xf32>
    %267 = tpu.matmul %245, %1, %cst_42 {dimension_numbers = #tpu.dot_dimension_numbers<[1], [0], [0], [1], [0, 0, 1, 1], [], []>} : vector<8x32xf32>, vector<32x128xf32>, vector<8x128xf32> -> vector<8x128xf32>
    %268 = arith.addf %266, %267 : vector<8x128xf32>
    %269 = arith.negf %268 : vector<8x128xf32>
    %270 = math.exp %269 : vector<8x128xf32>
    %cst_43 = arith.constant 1.000000e+00 : f32
    %271 = vector.broadcast %cst_43 : f32 to vector<8x128xf32>
    %272 = arith.addf %271, %270 : vector<8x128xf32>
    %273 = arith.divf %271, %272 : vector<8x128xf32>
    %274 = vector.extract_strided_slice %268 {offsets = [0, 64], sizes = [8, 32], strides = [1, 1]} : vector<8x128xf32> to vector<8x32xf32>
    %275 = math.tanh %274 : vector<8x32xf32>
    %276 = vector.extract_strided_slice %273 {offsets = [0, 0], sizes = [8, 32], strides = [1, 1]} : vector<8x128xf32> to vector<8x32xf32>
    %277 = vector.extract_strided_slice %273 {offsets = [0, 96], sizes = [8, 32], strides = [1, 1]} : vector<8x128xf32> to vector<8x32xf32>
    %278 = vector.extract_strided_slice %273 {offsets = [0, 32], sizes = [8, 32], strides = [1, 1]} : vector<8x128xf32> to vector<8x32xf32>
    %279 = arith.mulf %278, %243 : vector<8x32xf32>
    %280 = arith.mulf %276, %275 : vector<8x32xf32>
    %281 = arith.addf %279, %280 : vector<8x32xf32>
    %282 = math.tanh %281 : vector<8x32xf32>
    %283 = arith.mulf %277, %282 : vector<8x32xf32>
    %cst_44 = arith.constant dense<0.000000e+00> : vector<8x128xf32>
    %284 = tpu.matmul %283, %3, %cst_44 {dimension_numbers = #tpu.dot_dimension_numbers<[1], [0], [0], [1], [0, 0, 1, 1], [], []>} : vector<8x32xf32>, vector<32x128xf32>, vector<8x128xf32> -> vector<8x128xf32>
    %cst_45 = arith.constant dense<0.000000e+00> : vector<8x128xf32>
    %285 = tpu.matmul %265, %4, %cst_45 {dimension_numbers = #tpu.dot_dimension_numbers<[1], [0], [0], [1], [0, 0, 1, 1], [], []>} : vector<8x32xf32>, vector<32x128xf32>, vector<8x128xf32> -> vector<8x128xf32>
    %286 = arith.addf %284, %285 : vector<8x128xf32>
    %287 = vector.broadcast %5 : vector<1x128xf32> to vector<8x128xf32>
    %288 = arith.addf %286, %287 : vector<8x128xf32>
    %289 = arith.negf %288 : vector<8x128xf32>
    %290 = math.exp %289 : vector<8x128xf32>
    %cst_46 = arith.constant 1.000000e+00 : f32
    %291 = vector.broadcast %cst_46 : f32 to vector<8x128xf32>
    %292 = arith.addf %291, %290 : vector<8x128xf32>
    %293 = arith.divf %291, %292 : vector<8x128xf32>
    %294 = vector.extract_strided_slice %288 {offsets = [0, 64], sizes = [8, 32], strides = [1, 1]} : vector<8x128xf32> to vector<8x32xf32>
    %295 = math.tanh %294 : vector<8x32xf32>
    %296 = vector.extract_strided_slice %293 {offsets = [0, 0], sizes = [8, 32], strides = [1, 1]} : vector<8x128xf32> to vector<8x32xf32>
    %297 = vector.extract_strided_slice %293 {offsets = [0, 96], sizes = [8, 32], strides = [1, 1]} : vector<8x128xf32> to vector<8x32xf32>
    %298 = vector.extract_strided_slice %293 {offsets = [0, 32], sizes = [8, 32], strides = [1, 1]} : vector<8x128xf32> to vector<8x32xf32>
    %299 = arith.mulf %298, %263 : vector<8x32xf32>
    %300 = arith.mulf %296, %295 : vector<8x32xf32>
    %301 = arith.addf %299, %300 : vector<8x32xf32>
    %302 = math.tanh %301 : vector<8x32xf32>
    %303 = arith.mulf %297, %302 : vector<8x32xf32>
    %c0_47 = arith.constant 0 : index
    %c0_48 = arith.constant 0 : index
    %304 = vector.load %arg5[%c0_47, %c0_48] : memref<72x320xf32, #tpu.memory_space<vmem>>, vector<32x320xf32>
    %c32_49 = arith.constant 32 : index
    %c0_50 = arith.constant 0 : index
    %305 = vector.load %arg5[%c32_49, %c0_50] : memref<72x320xf32, #tpu.memory_space<vmem>>, vector<32x320xf32>
    %c64_51 = arith.constant 64 : index
    %c0_52 = arith.constant 0 : index
    %306 = vector.load %arg5[%c64_51, %c0_52] : memref<72x320xf32, #tpu.memory_space<vmem>>, vector<1x320xf32>
    %cst_53 = arith.constant dense<0.000000e+00> : vector<8x320xf32>
    %307 = tpu.matmul %303, %304, %cst_53 {dimension_numbers = #tpu.dot_dimension_numbers<[1], [0], [0], [1], [0, 0, 1, 1], [], []>} : vector<8x32xf32>, vector<32x320xf32>, vector<8x320xf32> -> vector<8x320xf32>
    %c0_54 = arith.constant 0 : index
    %c0_55 = arith.constant 0 : index
    %308 = vector.load %arg1[%c0_54, %c0_55] : memref<8x32xf32, #tpu.memory_space<vmem>>, vector<8x32xf32>
    %cst_56 = arith.constant dense<0.000000e+00> : vector<8x320xf32>
    %309 = tpu.matmul %308, %305, %cst_56 {dimension_numbers = #tpu.dot_dimension_numbers<[1], [0], [0], [1], [0, 0, 1, 1], [], []>} : vector<8x32xf32>, vector<32x320xf32>, vector<8x320xf32> -> vector<8x320xf32>
    %310 = arith.addf %307, %309 : vector<8x320xf32>
    %311 = vector.broadcast %306 : vector<1x320xf32> to vector<8x320xf32>
    %312 = arith.addf %310, %311 : vector<8x320xf32>
    %c0_57 = arith.constant 0 : index
    %c0_58 = arith.constant 0 : index
    %313 = vector.load %arg6[%c0_57, %c0_58] : memref<80x64xf32, #tpu.memory_space<vmem>>, vector<32x64xf32>
    %c32_59 = arith.constant 32 : index
    %c0_60 = arith.constant 0 : index
    %314 = vector.load %arg6[%c32_59, %c0_60] : memref<80x64xf32, #tpu.memory_space<vmem>>, vector<32x64xf32>
    %c64_61 = arith.constant 64 : index
    %c0_62 = arith.constant 0 : index
    %315 = vector.load %arg6[%c64_61, %c0_62] : memref<80x64xf32, #tpu.memory_space<vmem>>, vector<8x64xf32>
    %c72 = arith.constant 72 : index
    %c0_63 = arith.constant 0 : index
    %316 = vector.load %arg6[%c72, %c0_63] : memref<80x64xf32, #tpu.memory_space<vmem>>, vector<1x64xf32>
    %c0_64 = arith.constant 0 : index
    %c0_65 = arith.constant 0 : index
    %317 = vector.load %arg7[%c0_64, %c0_65] : memref<72x32xf32, #tpu.memory_space<vmem>>, vector<64x32xf32>
    %c64_66 = arith.constant 64 : index
    %c0_67 = arith.constant 0 : index
    %318 = vector.load %arg7[%c64_66, %c0_67] : memref<72x32xf32, #tpu.memory_space<vmem>>, vector<1x32xf32>
    %c0_68 = arith.constant 0 : index
    %c0_69 = arith.constant 0 : index
    %319 = vector.load %arg8[%c0_68, %c0_69] : memref<40x128xf32, #tpu.memory_space<vmem>>, vector<32x128xf32>
    %c32_70 = arith.constant 32 : index
    %c0_71 = arith.constant 0 : index
    %320 = vector.load %arg8[%c32_70, %c0_71] : memref<40x128xf32, #tpu.memory_space<vmem>>, vector<1x128xf32>
    %321 = vector.extract_strided_slice %312 {offsets = [0, 32], sizes = [8, 32], strides = [1, 1]} : vector<8x320xf32> to vector<8x32xf32>
    %322 = vector.extract_strided_slice %312 {offsets = [0, 64], sizes = [8, 32], strides = [1, 1]} : vector<8x320xf32> to vector<8x32xf32>
    %323 = vector.extract_strided_slice %312 {offsets = [0, 96], sizes = [8, 32], strides = [1, 1]} : vector<8x320xf32> to vector<8x32xf32>
    %324 = vector.extract_strided_slice %312 {offsets = [0, 128], sizes = [8, 32], strides = [1, 1]} : vector<8x320xf32> to vector<8x32xf32>
    %325 = vector.extract_strided_slice %312 {offsets = [0, 192], sizes = [8, 32], strides = [1, 1]} : vector<8x320xf32> to vector<8x32xf32>
    %326 = vector.extract_strided_slice %312 {offsets = [0, 224], sizes = [8, 32], strides = [1, 1]} : vector<8x320xf32> to vector<8x32xf32>
    %327 = vector.extract_strided_slice %312 {offsets = [0, 256], sizes = [8, 32], strides = [1, 1]} : vector<8x320xf32> to vector<8x32xf32>
    %328 = vector.extract_strided_slice %312 {offsets = [0, 288], sizes = [8, 32], strides = [1, 1]} : vector<8x320xf32> to vector<8x32xf32>
    %329 = tpu.concatenate %321, %322, %323, %324, %325, %326, %327, %328 in 0 : vector<8x32xf32>, vector<8x32xf32>, vector<8x32xf32>, vector<8x32xf32>, vector<8x32xf32>, vector<8x32xf32>, vector<8x32xf32>, vector<8x32xf32> -> vector<64x32xf32>
    %330 = vector.extract_strided_slice %312 {offsets = [0, 0], sizes = [8, 32], strides = [1, 1]} : vector<8x320xf32> to vector<8x32xf32>
    %331 = vector.extract_strided_slice %312 {offsets = [0, 160], sizes = [8, 32], strides = [1, 1]} : vector<8x320xf32> to vector<8x32xf32>
    %332 = tpu.concatenate %330, %331 in 0 : vector<8x32xf32>, vector<8x32xf32> -> vector<16x32xf32>
    %cst_72 = arith.constant dense<0.000000e+00> : vector<16x64xf32>
    %333 = tpu.matmul %332, %313, %cst_72 {dimension_numbers = #tpu.dot_dimension_numbers<[1], [0], [0], [1], [0, 0, 1, 1], [], []>} : vector<16x32xf32>, vector<32x64xf32>, vector<16x64xf32> -> vector<16x64xf32>
    %334 = vector.extract_strided_slice %333 {offsets = [0, 0], sizes = [8, 64], strides = [1, 1]} : vector<16x64xf32> to vector<8x64xf32>
    %335 = vector.extract_strided_slice %333 {offsets = [0, 0], sizes = [8, 64], strides = [1, 1]} : vector<16x64xf32> to vector<8x64xf32>
    %336 = vector.extract_strided_slice %333 {offsets = [0, 0], sizes = [8, 64], strides = [1, 1]} : vector<16x64xf32> to vector<8x64xf32>
    %337 = vector.extract_strided_slice %333 {offsets = [0, 0], sizes = [8, 64], strides = [1, 1]} : vector<16x64xf32> to vector<8x64xf32>
    %338 = vector.extract_strided_slice %333 {offsets = [8, 0], sizes = [8, 64], strides = [1, 1]} : vector<16x64xf32> to vector<8x64xf32>
    %339 = vector.extract_strided_slice %333 {offsets = [8, 0], sizes = [8, 64], strides = [1, 1]} : vector<16x64xf32> to vector<8x64xf32>
    %340 = vector.extract_strided_slice %333 {offsets = [8, 0], sizes = [8, 64], strides = [1, 1]} : vector<16x64xf32> to vector<8x64xf32>
    %341 = vector.extract_strided_slice %333 {offsets = [8, 0], sizes = [8, 64], strides = [1, 1]} : vector<16x64xf32> to vector<8x64xf32>
    %342 = tpu.concatenate %334, %335, %336, %337, %338, %339, %340, %341 in 0 : vector<8x64xf32>, vector<8x64xf32>, vector<8x64xf32>, vector<8x64xf32>, vector<8x64xf32>, vector<8x64xf32>, vector<8x64xf32>, vector<8x64xf32> -> vector<64x64xf32>
    %c0_73 = arith.constant 0 : index
    %c0_74 = arith.constant 0 : index
    %343 = vector.load %arg2[%c0_73, %c0_74] : memref<32x8xf32, #tpu.memory_space<vmem>>, vector<32x8xf32>
    %cst_75 = arith.constant dense<0.000000e+00> : vector<32x64xf32>
    %344 = tpu.matmul %343, %315, %cst_75 {dimension_numbers = #tpu.dot_dimension_numbers<[1], [0], [0], [1], [0, 0, 1, 1], [], []>} : vector<32x8xf32>, vector<8x64xf32>, vector<32x64xf32> -> vector<32x64xf32>
    %345 = tpu.concatenate %344, %344 in 0 : vector<32x64xf32>, vector<32x64xf32> -> vector<64x64xf32>
    %cst_76 = arith.constant dense<0.000000e+00> : vector<64x64xf32>
    %346 = tpu.matmul %329, %314, %cst_76 {dimension_numbers = #tpu.dot_dimension_numbers<[1], [0], [0], [1], [0, 0, 1, 1], [], []>} : vector<64x32xf32>, vector<32x64xf32>, vector<64x64xf32> -> vector<64x64xf32>
    %347 = arith.addf %346, %342 : vector<64x64xf32>
    %348 = arith.addf %347, %345 : vector<64x64xf32>
    %349 = vector.broadcast %316 : vector<1x64xf32> to vector<64x64xf32>
    %350 = arith.addf %348, %349 : vector<64x64xf32>
    %cst_77 = arith.constant dense<0.000000e+00> : vector<64x32xf32>
    %351 = tpu.matmul %350, %317, %cst_77 {dimension_numbers = #tpu.dot_dimension_numbers<[1], [0], [0], [1], [0, 0, 1, 1], [], []>} : vector<64x64xf32>, vector<64x32xf32>, vector<64x32xf32> -> vector<64x32xf32>
    %352 = vector.broadcast %318 : vector<1x32xf32> to vector<64x32xf32>
    %353 = arith.addf %351, %352 : vector<64x32xf32>
    %cst_78 = arith.constant dense<0.000000e+00> : vector<64x128xf32>
    %354 = tpu.matmul %353, %319, %cst_78 {dimension_numbers = #tpu.dot_dimension_numbers<[1], [0], [0], [1], [0, 0, 1, 1], [], []>} : vector<64x32xf32>, vector<32x128xf32>, vector<64x128xf32> -> vector<64x128xf32>
    %355 = vector.broadcast %320 : vector<1x128xf32> to vector<64x128xf32>
    %356 = arith.addf %354, %355 : vector<64x128xf32>
    %c0_79 = arith.constant 0 : index
    %c0_80 = arith.constant 0 : index
    %357 = vector.load %arg9[%c0_79, %c0_80] : memref<64x128xf32, #tpu.memory_space<vmem>>, vector<64x128xf32>
    tpu.vector_store %arg9[%c0_79, %c0_80], %356 {strides = array<i32>} : memref<64x128xf32, #tpu.memory_space<vmem>>, vector<64x128xf32>,
    return
  }
}

</mosaic_0001>

<llo_original>
// kernel: mqrnn_forward_pallas.1
$region0: #{mqrnn_forward_pallas.1}
  #allocation0 [shape = 'u32[]', space=smem, size = 0x4, offset = 0x4, fixed_abs, tag = 'smem constant byte address 0x4 - core index']
  #allocation1 [shape = 'u32[144,128]{1,0:T(1,128)}', space=vmem, size = 0x12000, scoped, tag = 'internal scratch']
  %s0 = inlined_call_operand.vmem [shape: f32[64,16], index: 0, kind: input, shape index: {}]
  %s1 = inlined_call_operand.vmem [shape: f32[8,32], index: 1, kind: input, shape index: {}]
  %s2 = inlined_call_operand.vmem [shape: f32[32,8], index: 2, kind: input, shape index: {}]
  %s3 = inlined_call_operand.vmem [shape: f32[56,128], index: 3, kind: input, shape index: {}]
  %s4 = inlined_call_operand.vmem [shape: f32[72,128], index: 4, kind: input, shape index: {}]
  %s5 = inlined_call_operand.vmem [shape: f32[72,320], index: 5, kind: input, shape index: {}]
  %s6 = inlined_call_operand.vmem [shape: f32[80,64], index: 6, kind: input, shape index: {}]
  %s7 = inlined_call_operand.vmem [shape: f32[72,32], index: 7, kind: input, shape index: {}]
  %s8 = inlined_call_operand.vmem [shape: f32[40,128], index: 8, kind: input, shape index: {}]
  %s9 = inlined_call_operand.vmem [shape: f32[64,128], index: 9, kind: output, shape index: {}]
  %s10 = sld [smem:[#allocation0]]
  $region46: #{mqrnn_forward_pallas.1} parent=0
    _
  %s12 = ssub.s32 1, %s10
  %s13 = scalar_select 0, %s12, %s10
  // Predicated region
  $region2: #{mqrnn_forward_pallas.1} parent=0 // pred_check
    _
  $region3: #{mqrnn_forward_pallas.1} parent=0 // pred_check_branch
    %15 = sbr.rel (0) target = $region5
  $region4: #{mqrnn_forward_pallas.1} parent=0 // pred_region
    _
  $region5: #{mqrnn_forward_pallas.1} parent=0 // pred_fallthru
    _
  // Predicated region
  $region6: #{mqrnn_forward_pallas.1} parent=0 // pred_check
    _
  $region7: #{mqrnn_forward_pallas.1} parent=0 // pred_check_branch
    %17 = sbr.rel (0) target = $region9
  $region8: #{mqrnn_forward_pallas.1} parent=0 // pred_region
    _
  $region9: #{mqrnn_forward_pallas.1} parent=0 // pred_fallthru
    _
  // Predicated region
  $region10: #{mqrnn_forward_pallas.1} parent=0 // pred_check
    _
  $region11: #{mqrnn_forward_pallas.1} parent=0 // pred_check_branch
    %19 = sbr.rel (0) target = $region13
  $region12: #{mqrnn_forward_pallas.1} parent=0 // pred_region
    _
  $region13: #{mqrnn_forward_pallas.1} parent=0 // pred_fallthru
    _
  // Predicated region
  $region14: #{mqrnn_forward_pallas.1} parent=0 // pred_check
    _
  $region15: #{mqrnn_forward_pallas.1} parent=0 // pred_check_branch
    %21 = sbr.rel (0) target = $region17
  $region16: #{mqrnn_forward_pallas.1} parent=0 // pred_region
    _
  $region17: #{mqrnn_forward_pallas.1} parent=0 // pred_fallthru
    _
  // Predicated region
  $region18: #{mqrnn_forward_pallas.1} parent=0 // pred_check
    _
  $region19: #{mqrnn_forward_pallas.1} parent=0 // pred_check_branch
    %23 = sbr.rel (0) target = $region21
  $region20: #{mqrnn_forward_pallas.1} parent=0 // pred_region
    _
  $region21: #{mqrnn_forward_pallas.1} parent=0 // pred_fallthru
    _
  // Predicated region
  $region22: #{mqrnn_forward_pallas.1} parent=0 // pred_check
    _
  $region23: #{mqrnn_forward_pallas.1} parent=0 // pred_check_branch
    %25 = sbr.rel (0) target = $region25
  $region24: #{mqrnn_forward_pallas.1} parent=0 // pred_region
    _
  $region25: #{mqrnn_forward_pallas.1} parent=0 // pred_fallthru
    _
  // Predicated region
  $region26: #{mqrnn_forward_pallas.1} parent=0 // pred_check
    _
  $region27: #{mqrnn_forward_pallas.1} parent=0 // pred_check_branch
    %27 = sbr.rel (0) target = $region29
  $region28: #{mqrnn_forward_pallas.1} parent=0 // pred_region
    _
  $region29: #{mqrnn_forward_pallas.1} parent=0 // pred_fallthru
    _
  // Predicated region
  $region30: #{mqrnn_forward_pallas.1} parent=0 // pred_check
    _
  $region31: #{mqrnn_forward_pallas.1} parent=0 // pred_check_branch
    %29 = sbr.rel (0) target = $region33
  $region32: #{mqrnn_forward_pallas.1} parent=0 // pred_region
    _
  $region33: #{mqrnn_forward_pallas.1} parent=0 // pred_fallthru
    _
  // Predicated region
  $region34: #{mqrnn_forward_pallas.1} parent=0 // pred_check
    _
  $region35: #{mqrnn_forward_pallas.1} parent=0 // pred_check_branch
    %31 = sbr.rel (0) target = $region37
  $region36: #{mqrnn_forward_pallas.1} parent=0 // pred_region
    _
  $region37: #{mqrnn_forward_pallas.1} parent=0 // pred_fallthru
    _
  %v32 = vld [vmem:[%s3] sm:$0xff]
  %v33 = vld [vmem:[%s3 + $0x8] sm:$0xff]
  %v34 = vld [vmem:[%s3 + $0x10] sm:$0xff]
  %v35 = vld [vmem:[%s3 + $0x18] sm:$0xff]
  %v36 = vld [vmem:[%s3 + $0x20] sm:$0xff]
  %v37 = vld [vmem:[%s3 + $0x28] sm:$0xff]
  %v38 = vld [vmem:[%s3 + $0x30] sm:$0x1]
  %v39 = vld [vmem:[%s4] sm:$0xff]
  %v40 = vld [vmem:[%s4 + $0x8] sm:$0xff]
  %v41 = vld [vmem:[%s4 + $0x10] sm:$0xff]
  %v42 = vld [vmem:[%s4 + $0x18] sm:$0xff]
  %v43 = vld [vmem:[%s4 + $0x20] sm:$0xff]
  %v44 = vld [vmem:[%s4 + $0x28] sm:$0xff]
  %v45 = vld [vmem:[%s4 + $0x30] sm:$0xff]
  %v46 = vld [vmem:[%s4 + $0x38] sm:$0xff]
  %v47 = vld [vmem:[%s4 + $0x40] sm:$0x1]
  %v48 = vld [vmem:[%s0] sm:$0xff]
  %v49 = vld [vmem:[%s0 + $0x8] sm:$0xff]
  %v50 = vld [vmem:[%s0 + $0x10] sm:$0xff]
  %v51 = vld [vmem:[%s0 + $0x18] sm:$0xff]
  %v52 = vld [vmem:[%s0 + $0x20] sm:$0xff]
  %v53 = vld [vmem:[%s0 + $0x28] sm:$0xff]
  %v54 = vld [vmem:[%s0 + $0x30] sm:$0xff]
  %v55 = vld [vmem:[%s0 + $0x38] sm:$0xff]
  %v56 = vlaneseq
  %v57 = vshrl.u32 %v56, 7
  %v58 = vsub.s32 0, %v57
  %v59 = vrot.slane %v38, %v58
  %vm60 = vcmask 130048
  %v62 = vsel %vm60, %v48, 0
  %v65 = vsel %vm60, %v49, 0
  %v68 = vsel %vm60, %v50, 0
  %v71 = vsel %vm60, %v51, 0
  %v74 = vsel %vm60, %v52, 0
  %v77 = vsel %vm60, %v53, 0
  %v80 = vsel %vm60, %v54, 0
  %v83 = vsel %vm60, %v55, 0
  %85 = vmatprep.subr.mxu0 0.0
  %86 = vmatpush1.msra.mxu0 %v32
  %87 = vmatprep.subr.mxu0 0.0
  %88 = vmatpush1.msra.mxu0 %v33
  %89 = vmatprep.subr.mxu0 0.0
  %90 = vmatpush1.msra.mxu0 0.0
  %91 = vmatprep.subr.mxu0 0.0
  %92 = vmatpush1.msra.mxu0 0.0
  %93 = vmatprep.subr.mxu0 0.0
  %94 = vmatpush1.msra.mxu0 0.0
  %95 = vmatprep.subr.mxu0 0.0
  %96 = vmatpush1.msra.mxu0 0.0
  %97 = vmatprep.subr.mxu0 0.0
  %98 = vmatpush1.msra.mxu0 0.0
  %99 = vmatprep.subr.mxu0 0.0
  %100 = vmatpush1.msra.mxu0 0.0
  %101 = vmatprep.subr.mxu0 0.0
  %102 = vmatpush1.msra.mxu0 0.0
  %103 = vmatprep.subr.mxu0 0.0
  %104 = vmatpush1.msra.mxu0 0.0
  %105 = vmatprep.subr.mxu0 0.0
  %106 = vmatpush1.msra.mxu0 0.0
  %107 = vmatprep.subr.mxu0 0.0
  %108 = vmatpush1.msra.mxu0 0.0
  %109 = vmatprep.subr.mxu0 0.0
  %110 = vmatpush1.msra.mxu0 0.0
  %111 = vmatprep.subr.mxu0 0.0
  %112 = vmatpush1.msra.mxu0 0.0
  %113 = vmatprep.subr.mxu0 0.0
  %114 = vmatpush1.msra.mxu0 0.0
  %115 = vmatprep.subr.mxu0 0.0
  %116 = vmatpush1.msra.mxu0 0.0
  %117 = vmatprep.subr.mxu0 0.0
  %118 = vmatpush1.msra.mxu0 0.0
  %119 = vmatprep.subr.mxu0 0.0
  %120 = vmatpush1.msra.mxu0 0.0
  %121 = vmatprep.subr.mxu0 0.0
  %122 = vmatpush1.msra.mxu0 0.0
  %123 = vmatprep.subr.mxu0 0.0
  %124 = vmatpush1.msra.mxu0 0.0
  %125 = vmatprep.subr.mxu0 0.0
  %126 = vmatpush1.msra.mxu0 0.0
  %127 = vmatprep.subr.mxu0 0.0
  %128 = vmatpush1.msra.mxu0 0.0
  %129 = vmatprep.subr.mxu0 0.0
  %130 = vmatpush1.msra.mxu0 0.0
  %131 = vmatprep.subr.mxu0 0.0
  %132 = vmatpush1.msra.mxu0 0.0
  %133 = vmatprep.subr.mxu0 0.0
  %134 = vmatpush1.msra.mxu0 0.0
  %135 = vmatprep.subr.mxu0 0.0
  %136 = vmatpush1.msra.mxu0 0.0
  %137 = vmatprep.subr.mxu0 0.0
  %138 = vmatpush1.msra.mxu0 0.0
  %139 = vmatprep.subr.mxu0 0.0
  %140 = vmatpush1.msra.mxu0 0.0
  %141 = vmatprep.subr.mxu0 0.0
  %142 = vmatpush1.msra.mxu0 0.0
  %143 = vmatprep.subr.mxu0 0.0
  %144 = vmatpush1.msra.mxu0 0.0
  %145 = vmatprep.subr.mxu0 0.0
  %146 = vmatpush1.msra.mxu0 0.0
  %147 = vmatprep.subr.mxu0 0.0
  %148 = vmatpush1.msra.mxu0 0.0
  %149 = vmatprep.mubr.f32.mxu0 0.0
  %150 = vmatmul.mubr.f32.gmra.mrb[0].mxu0 %v62
  %v151 = vpop.f32.mrb[0].mxu0
  %v152 = vadd.f32 %v59, %v151
  %v153 = vpop.f32.mrb[0].mxu0
  %154 = vmatprep.mubr.f32.mxu0 0.0
  %155 = vmatmul.mubr.f32.gmra.mrb[0].mxu0 %v65
  %v156 = vpop.f32.mrb[0].mxu0
  %v157 = vadd.f32 %v59, %v156
  %v158 = vpop.f32.mrb[0].mxu0
  %159 = vmatprep.mubr.f32.mxu0 0.0
  %160 = vmatmul.mubr.f32.gmra.mrb[0].mxu0 %v68
  %v161 = vpop.f32.mrb[0].mxu0
  %v162 = vadd.f32 %v59, %v161
  %v163 = vpop.f32.mrb[0].mxu0
  %164 = vmatprep.mubr.f32.mxu0 0.0
  %165 = vmatmul.mubr.f32.gmra.mrb[0].mxu0 %v71
  %v166 = vpop.f32.mrb[0].mxu0
  %v167 = vadd.f32 %v59, %v166
  %v168 = vpop.f32.mrb[0].mxu0
  %169 = vmatprep.mubr.f32.mxu0 0.0
  %170 = vmatmul.mubr.f32.gmra.mrb[0].mxu0 %v74
  %v171 = vpop.f32.mrb[0].mxu0
  %v172 = vadd.f32 %v59, %v171
  %v173 = vpop.f32.mrb[0].mxu0
  %174 = vmatprep.mubr.f32.mxu0 0.0
  %175 = vmatmul.mubr.f32.gmra.mrb[0].mxu0 %v77
  %v176 = vpop.f32.mrb[0].mxu0
  %v177 = vadd.f32 %v59, %v176
  %v178 = vpop.f32.mrb[0].mxu0
  %179 = vmatprep.mubr.f32.mxu0 0.0
  %180 = vmatmul.mubr.f32.gmra.mrb[0].mxu0 %v80
  %v181 = vpop.f32.mrb[0].mxu0
  %v182 = vadd.f32 %v59, %v181
  %v183 = vpop.f32.mrb[0].mxu0
  %184 = vmatprep.mubr.f32.mxu0 0.0
  %185 = vmatmul.mubr.f32.gmra.mrb[0].mxu0 %v83
  %v186 = vpop.f32.mrb[0].mxu0
  %v187 = vadd.f32 %v59, %v186
  %v188 = vpop.f32.mrb[0].mxu0
  %189 = vdwg.mxu0
  %v190 = vxor.u32 %v152, 2147483648
  %v191 = vmul.f32 %v190, 1.442695
  %v192 = vpow.pop %v191
  %v193 = vadd.f32 %v192, 1.0
  %v194 = vrcp.pop %v193
  %v195 = vmul.f32 1.0, %v194
  %v196 = vtanh.pop %v152
  %198 = vrot.lane.b32.xlu0 %v196, 64
  %v199 = vpop.permute.xlu0 %198
  %v201 = vmul.f32 %v195, %v199
  %v202 = vtanh.pop %v201
  %204 = vrot.lane.b32.xlu0 %v202, 96
  %v205 = vpop.permute.xlu0 %204
  %v207 = vmul.f32 %v195, %v205
  %v208 = vlaneseq
  %v209 = vshrl.u32 %v208, 7
  %v210 = vsub.s32 0, %v209
  %v211 = vrot.slane %v47, %v210
  %213 = vrot.lane.b32.xlu0 %v207, 32
  %v214 = vpop.permute.xlu0 %213
  %vm215 = vcmask 261120
  %v216 = vsel %vm215, %v214, 0
  %218 = vmatprep.subr.mxu0 0.0
  %219 = vmatpush1.msra.mxu0 %v39
  %220 = vmatprep.subr.mxu0 0.0
  %221 = vmatpush1.msra.mxu0 %v40
  %222 = vmatprep.subr.mxu0 0.0
  %223 = vmatpush1.msra.mxu0 %v41
  %224 = vmatprep.subr.mxu0 0.0
  %225 = vmatpush1.msra.mxu0 %v42
  %226 = vmatprep.subr.mxu0 0.0
  %227 = vmatpush1.msra.mxu0 0.0
  %228 = vmatprep.subr.mxu0 0.0
  %229 = vmatpush1.msra.mxu0 0.0
  %230 = vmatprep.subr.mxu0 0.0
  %231 = vmatpush1.msra.mxu0 0.0
  %232 = vmatprep.subr.mxu0 0.0
  %233 = vmatpush1.msra.mxu0 0.0
  %234 = vmatprep.subr.mxu0 0.0
  %235 = vmatpush1.msra.mxu0 0.0
  %236 = vmatprep.subr.mxu0 0.0
  %237 = vmatpush1.msra.mxu0 0.0
  %238 = vmatprep.subr.mxu0 0.0
  %239 = vmatpush1.msra.mxu0 0.0
  %240 = vmatprep.subr.mxu0 0.0
  %241 = vmatpush1.msra.mxu0 0.0
  %242 = vmatprep.subr.mxu0 0.0
  %243 = vmatpush1.msra.mxu0 0.0
  %244 = vmatprep.subr.mxu0 0.0
  %245 = vmatpush1.msra.mxu0 0.0
  %246 = vmatprep.subr.mxu0 0.0
  %247 = vmatpush1.msra.mxu0 0.0
  %248 = vmatprep.subr.mxu0 0.0
  %249 = vmatpush1.msra.mxu0 0.0
  %250 = vmatprep.subr.mxu0 0.0
  %251 = vmatpush1.msra.mxu0 0.0
  %252 = vmatprep.subr.mxu0 0.0
  %253 = vmatpush1.msra.mxu0 0.0
  %254 = vmatprep.subr.mxu0 0.0
  %255 = vmatpush1.msra.mxu0 0.0
  %256 = vmatprep.subr.mxu0 0.0
  %257 = vmatpush1.msra.mxu0 0.0
  %258 = vmatprep.subr.mxu0 0.0
  %259 = vmatpush1.msra.mxu0 0.0
  %260 = vmatprep.subr.mxu0 0.0
  %261 = vmatpush1.msra.mxu0 0.0
  %262 = vmatprep.subr.mxu0 0.0
  %263 = vmatpush1.msra.mxu0 0.0
  %264 = vmatprep.subr.mxu0 0.0
  %265 = vmatpush1.msra.mxu0 0.0
  %266 = vmatprep.subr.mxu0 0.0
  %267 = vmatpush1.msra.mxu0 0.0
  %268 = vmatprep.subr.mxu0 0.0
  %269 = vmatpush1.msra.mxu0 0.0
  %270 = vmatprep.subr.mxu0 0.0
  %271 = vmatpush1.msra.mxu0 0.0
  %272 = vmatprep.subr.mxu0 0.0
  %273 = vmatpush1.msra.mxu0 0.0
  %274 = vmatprep.subr.mxu0 0.0
  %275 = vmatpush1.msra.mxu0 0.0
  %276 = vmatprep.subr.mxu0 0.0
  %277 = vmatpush1.msra.mxu0 0.0
  %278 = vmatprep.subr.mxu0 0.0
  %279 = vmatpush1.msra.mxu0 0.0
  %280 = vmatprep.subr.mxu0 0.0
  %281 = vmatpush1.msra.mxu0 0.0
  %282 = vmatprep.mubr.f32.mxu0 0.0
  %283 = vmatmul.mubr.f32.gmra.mrb[0].mxu0 %v216
  %v284 = vpop.f32.mrb[0].mxu0
  %v285 = vadd.f32 %v211, %v284
  %v286 = vpop.f32.mrb[0].mxu0
  %287 = vdwg.mxu0
  %v288 = vxor.u32 %v285, 2147483648
  %v289 = vmul.f32 %v288, 1.442695
  %v290 = vpow.pop %v289
  %v291 = vadd.f32 %v290, 1.0
  %v292 = vrcp.pop %v291
  %v293 = vmul.f32 1.0, %v292
  %v294 = vtanh.pop %v285
  %296 = vrot.lane.b32.xlu0 %v294, 64
  %v297 = vpop.permute.xlu0 %296
  %v299 = vmul.f32 %v293, %v297
  %v300 = vtanh.pop %v299
  %302 = vrot.lane.b32.xlu0 %v300, 96
  %v303 = vpop.permute.xlu0 %302
  %v305 = vmul.f32 %v293, %v303
  %306 = vmatprep.subr.mxu0 0.0
  %307 = vmatpush1.msra.mxu0 %v34
  %308 = vmatprep.subr.mxu0 0.0
  %309 = vmatpush1.msra.mxu0 %v35
  %310 = vmatprep.subr.mxu0 0.0
  %311 = vmatpush1.msra.mxu0 %v36
  %312 = vmatprep.subr.mxu0 0.0
  %313 = vmatpush1.msra.mxu0 %v37
  %314 = vmatprep.subr.mxu0 0.0
  %315 = vmatpush1.msra.mxu0 0.0
  %316 = vmatprep.subr.mxu0 0.0
  %317 = vmatpush1.msra.mxu0 0.0
  %318 = vmatprep.subr.mxu0 0.0
  %319 = vmatpush1.msra.mxu0 0.0
  %320 = vmatprep.subr.mxu0 0.0
  %321 = vmatpush1.msra.mxu0 0.0
  %322 = vmatprep.subr.mxu0 0.0
  %323 = vmatpush1.msra.mxu0 0.0
  %324 = vmatprep.subr.mxu0 0.0
  %325 = vmatpush1.msra.mxu0 0.0
  %326 = vmatprep.subr.mxu0 0.0
  %327 = vmatpush1.msra.mxu0 0.0
  %328 = vmatprep.subr.mxu0 0.0
  %329 = vmatpush1.msra.mxu0 0.0
  %330 = vmatprep.subr.mxu0 0.0
  %331 = vmatpush1.msra.mxu0 0.0
  %332 = vmatprep.subr.mxu0 0.0
  %333 = vmatpush1.msra.mxu0 0.0
  %334 = vmatprep.subr.mxu0 0.0
  %335 = vmatpush1.msra.mxu0 0.0
  %336 = vmatprep.subr.mxu0 0.0
  %337 = vmatpush1.msra.mxu0 0.0
  %338 = vmatprep.subr.mxu0 0.0
  %339 = vmatpush1.msra.mxu0 0.0
  %340 = vmatprep.subr.mxu0 0.0
  %341 = vmatpush1.msra.mxu0 0.0
  %342 = vmatprep.subr.mxu0 0.0
  %343 = vmatpush1.msra.mxu0 0.0
  %344 = vmatprep.subr.mxu0 0.0
  %345 = vmatpush1.msra.mxu0 0.0
  %346 = vmatprep.subr.mxu0 0.0
  %347 = vmatpush1.msra.mxu0 0.0
  %348 = vmatprep.subr.mxu0 0.0
  %349 = vmatpush1.msra.mxu0 0.0
  %350 = vmatprep.subr.mxu0 0.0
  %351 = vmatpush1.msra.mxu0 0.0
  %352 = vmatprep.subr.mxu0 0.0
  %353 = vmatpush1.msra.mxu0 0.0
  %354 = vmatprep.subr.mxu0 0.0
  %355 = vmatpush1.msra.mxu0 0.0
  %356 = vmatprep.subr.mxu0 0.0
  %357 = vmatpush1.msra.mxu0 0.0
  %358 = vmatprep.subr.mxu0 0.0
  %359 = vmatpush1.msra.mxu0 0.0
  %360 = vmatprep.subr.mxu0 0.0
  %361 = vmatpush1.msra.mxu0 0.0
  %362 = vmatprep.subr.mxu0 0.0
  %363 = vmatpush1.msra.mxu0 0.0
  %364 = vmatprep.subr.mxu0 0.0
  %365 = vmatpush1.msra.mxu0 0.0
  %366 = vmatprep.subr.mxu0 0.0
  %367 = vmatpush1.msra.mxu0 0.0
  %368 = vmatprep.subr.mxu0 0.0
  %369 = vmatpush1.msra.mxu0 0.0
  %370 = vmatprep.mubr.f32.mxu0 0.0
  %371 = vmatmul.mubr.f32.gmra.mrb[0].mxu0 %v216
  %v372 = vpop.f32.mrb[0].mxu0
  %v373 = vadd.f32 0.0, %v372
  %v374 = vpop.f32.mrb[0].mxu0
  %375 = vdwg.mxu0
  %v376 = vadd.f32 %v157, %v373
  %v377 = vxor.u32 %v376, 2147483648
  %v378 = vmul.f32 %v377, 1.442695
  %v379 = vpow.pop %v378
  %v380 = vadd.f32 %v379, 1.0
  %v381 = vrcp.pop %v380
  %v382 = vmul.f32 1.0, %v381
  %v383 = vtanh.pop %v376
  %385 = vrot.lane.b32.xlu0 %v201, 32
  %v386 = vpop.permute.xlu0 %385
  %v388 = vmul.f32 %v382, %v386
  %390 = vrot.lane.b32.xlu0 %v383, 64
  %v391 = vpop.permute.xlu0 %390
  %v393 = vmul.f32 %v382, %v391
  %395 = vrot.lane.b32.xlu0 %v393, 32
  %v396 = vpop.permute.xlu0 %395
  %v398 = vadd.f32 %v388, %v396
  %v399 = vtanh.pop %v398
  %401 = vrot.lane.b32.xlu0 %v399, 64
  %v402 = vpop.permute.xlu0 %401
  %v404 = vmul.f32 %v382, %v402
  %406 = vrot.lane.b32.xlu0 %v305, 32
  %v407 = vpop.permute.xlu0 %406
  %v408 = vsel %vm215, %v407, 0
  %410 = vmatprep.subr.mxu0 0.0
  %411 = vmatpush1.msra.mxu0 %v43
  %412 = vmatprep.subr.mxu0 0.0
  %413 = vmatpush1.msra.mxu0 %v44
  %414 = vmatprep.subr.mxu0 0.0
  %415 = vmatpush1.msra.mxu0 %v45
  %416 = vmatprep.subr.mxu0 0.0
  %417 = vmatpush1.msra.mxu0 %v46
  %418 = vmatprep.subr.mxu0 0.0
  %419 = vmatpush1.msra.mxu0 0.0
  %420 = vmatprep.subr.mxu0 0.0
  %421 = vmatpush1.msra.mxu0 0.0
  %422 = vmatprep.subr.mxu0 0.0
  %423 = vmatpush1.msra.mxu0 0.0
  %424 = vmatprep.subr.mxu0 0.0
  %425 = vmatpush1.msra.mxu0 0.0
  %426 = vmatprep.subr.mxu0 0.0
  %427 = vmatpush1.msra.mxu0 0.0
  %428 = vmatprep.subr.mxu0 0.0
  %429 = vmatpush1.msra.mxu0 0.0
  %430 = vmatprep.subr.mxu0 0.0
  %431 = vmatpush1.msra.mxu0 0.0
  %432 = vmatprep.subr.mxu0 0.0
  %433 = vmatpush1.msra.mxu0 0.0
  %434 = vmatprep.subr.mxu0 0.0
  %435 = vmatpush1.msra.mxu0 0.0
  %436 = vmatprep.subr.mxu0 0.0
  %437 = vmatpush1.msra.mxu0 0.0
  %438 = vmatprep.subr.mxu0 0.0
  %439 = vmatpush1.msra.mxu0 0.0
  %440 = vmatprep.subr.mxu0 0.0
  %441 = vmatpush1.msra.mxu0 0.0
  %442 = vmatprep.subr.mxu0 0.0
  %443 = vmatpush1.msra.mxu0 0.0
  %444 = vmatprep.subr.mxu0 0.0
  %445 = vmatpush1.msra.mxu0 0.0
  %446 = vmatprep.subr.mxu0 0.0
  %447 = vmatpush1.msra.mxu0 0.0
  %448 = vmatprep.subr.mxu0 0.0
  %449 = vmatpush1.msra.mxu0 0.0
  %450 = vmatprep.subr.mxu0 0.0
  %451 = vmatpush1.msra.mxu0 0.0
  %452 = vmatprep.subr.mxu0 0.0
  %453 = vmatpush1.msra.mxu0 0.0
  %454 = vmatprep.subr.mxu0 0.0
  %455 = vmatpush1.msra.mxu0 0.0
  %456 = vmatprep.subr.mxu0 0.0
  %457 = vmatpush1.msra.mxu0 0.0
  %458 = vmatprep.subr.mxu0 0.0
  %459 = vmatpush1.msra.mxu0 0.0
  %460 = vmatprep.subr.mxu0 0.0
  %461 = vmatpush1.msra.mxu0 0.0
  %462 = vmatprep.subr.mxu0 0.0
  %463 = vmatpush1.msra.mxu0 0.0
  %464 = vmatprep.subr.mxu0 0.0
  %465 = vmatpush1.msra.mxu0 0.0
  %466 = vmatprep.subr.mxu0 0.0
  %467 = vmatpush1.msra.mxu0 0.0
  %468 = vmatprep.subr.mxu0 0.0
  %469 = vmatpush1.msra.mxu0 0.0
  %470 = vmatprep.subr.mxu0 0.0
  %471 = vmatpush1.msra.mxu0 0.0
  %472 = vmatprep.subr.mxu0 0.0
  %473 = vmatpush1.msra.mxu0 0.0
  %474 = vmatprep.mubr.f32.mxu0 0.0
  %475 = vmatmul.mubr.f32.gmra.mrb[0].mxu0 %v408
  %v476 = vpop.f32.mrb[0].mxu0
  %v477 = vadd.f32 0.0, %v476
  %v478 = vpop.f32.mrb[0].mxu0
  %479 = vdwg.mxu0
  %481 = vrot.lane.b32.xlu0 %v404, 32
  %v482 = vpop.permute.xlu0 %481
  %v483 = vsel %vm215, %v482, 0
  %485 = vmatprep.subr.mxu0 0.0
  %486 = vmatpush1.msra.mxu0 %v39
  %487 = vmatprep.subr.mxu0 0.0
  %488 = vmatpush1.msra.mxu0 %v40
  %489 = vmatprep.subr.mxu0 0.0
  %490 = vmatpush1.msra.mxu0 %v41
  %491 = vmatprep.subr.mxu0 0.0
  %492 = vmatpush1.msra.mxu0 %v42
  %493 = vmatprep.subr.mxu0 0.0
  %494 = vmatpush1.msra.mxu0 0.0
  %495 = vmatprep.subr.mxu0 0.0
  %496 = vmatpush1.msra.mxu0 0.0
  %497 = vmatprep.subr.mxu0 0.0
  %498 = vmatpush1.msra.mxu0 0.0
  %499 = vmatprep.subr.mxu0 0.0
  %500 = vmatpush1.msra.mxu0 0.0
  %501 = vmatprep.subr.mxu0 0.0
  %502 = vmatpush1.msra.mxu0 0.0
  %503 = vmatprep.subr.mxu0 0.0
  %504 = vmatpush1.msra.mxu0 0.0
  %505 = vmatprep.subr.mxu0 0.0
  %506 = vmatpush1.msra.mxu0 0.0
  %507 = vmatprep.subr.mxu0 0.0
  %508 = vmatpush1.msra.mxu0 0.0
  %509 = vmatprep.subr.mxu0 0.0
  %510 = vmatpush1.msra.mxu0 0.0
  %511 = vmatprep.subr.mxu0 0.0
  %512 = vmatpush1.msra.mxu0 0.0
  %513 = vmatprep.subr.mxu0 0.0
  %514 = vmatpush1.msra.mxu0 0.0
  %515 = vmatprep.subr.mxu0 0.0
  %516 = vmatpush1.msra.mxu0 0.0
  %517 = vmatprep.subr.mxu0 0.0
  %518 = vmatpush1.msra.mxu0 0.0
  %519 = vmatprep.subr.mxu0 0.0
  %520 = vmatpush1.msra.mxu0 0.0
  %521 = vmatprep.subr.mxu0 0.0
  %522 = vmatpush1.msra.mxu0 0.0
  %523 = vmatprep.subr.mxu0 0.0
  %524 = vmatpush1.msra.mxu0 0.0
  %525 = vmatprep.subr.mxu0 0.0
  %526 = vmatpush1.msra.mxu0 0.0
  %527 = vmatprep.subr.mxu0 0.0
  %528 = vmatpush1.msra.mxu0 0.0
  %529 = vmatprep.subr.mxu0 0.0
  %530 = vmatpush1.msra.mxu0 0.0
  %531 = vmatprep.subr.mxu0 0.0
  %532 = vmatpush1.msra.mxu0 0.0
  %533 = vmatprep.subr.mxu0 0.0
  %534 = vmatpush1.msra.mxu0 0.0
  %535 = vmatprep.subr.mxu0 0.0
  %536 = vmatpush1.msra.mxu0 0.0
  %537 = vmatprep.subr.mxu0 0.0
  %538 = vmatpush1.msra.mxu0 0.0
  %539 = vmatprep.subr.mxu0 0.0
  %540 = vmatpush1.msra.mxu0 0.0
  %541 = vmatprep.subr.mxu0 0.0
  %542 = vmatpush1.msra.mxu0 0.0
  %543 = vmatprep.subr.mxu0 0.0
  %544 = vmatpush1.msra.mxu0 0.0
  %545 = vmatprep.subr.mxu0 0.0
  %546 = vmatpush1.msra.mxu0 0.0
  %547 = vmatprep.subr.mxu0 0.0
  %548 = vmatpush1.msra.mxu0 0.0
  %549 = vmatprep.mubr.f32.mxu0 0.0
  %550 = vmatmul.mubr.f32.gmra.mrb[0].mxu0 %v483
  %v551 = vpop.f32.mrb[0].mxu0
  %v552 = vadd.f32 %v477, %v551
  %v553 = vpop.f32.mrb[0].mxu0
  %554 = vdwg.mxu0
  %v555 = vadd.f32 %v552, %v211
  %v556 = vxor.u32 %v555, 2147483648
  %v557 = vmul.f32 %v556, 1.442695
  %v558 = vpow.pop %v557
  %v559 = vadd.f32 %v558, 1.0
  %v560 = vrcp.pop %v559
  %v561 = vmul.f32 1.0, %v560
  %v562 = vtanh.pop %v555
  %564 = vrot.lane.b32.xlu0 %v299, 32
  %v565 = vpop.permute.xlu0 %564
  %v567 = vmul.f32 %v561, %v565
  %569 = vrot.lane.b32.xlu0 %v562, 64
  %v570 = vpop.permute.xlu0 %569
  %v572 = vmul.f32 %v561, %v570
  %574 = vrot.lane.b32.xlu0 %v572, 32
  %v575 = vpop.permute.xlu0 %574
  %v577 = vadd.f32 %v567, %v575
  %v578 = vtanh.pop %v577
  %580 = vrot.lane.b32.xlu0 %v578, 64
  %v581 = vpop.permute.xlu0 %580
  %v583 = vmul.f32 %v561, %v581
  %584 = vmatprep.subr.mxu0 0.0
  %585 = vmatpush1.msra.mxu0 %v34
  %586 = vmatprep.subr.mxu0 0.0
  %587 = vmatpush1.msra.mxu0 %v35
  %588 = vmatprep.subr.mxu0 0.0
  %589 = vmatpush1.msra.mxu0 %v36
  %590 = vmatprep.subr.mxu0 0.0
  %591 = vmatpush1.msra.mxu0 %v37
  %592 = vmatprep.subr.mxu0 0.0
  %593 = vmatpush1.msra.mxu0 0.0
  %594 = vmatprep.subr.mxu0 0.0
  %595 = vmatpush1.msra.mxu0 0.0
  %596 = vmatprep.subr.mxu0 0.0
  %597 = vmatpush1.msra.mxu0 0.0
  %598 = vmatprep.subr.mxu0 0.0
  %599 = vmatpush1.msra.mxu0 0.0
  %600 = vmatprep.subr.mxu0 0.0
  %601 = vmatpush1.msra.mxu0 0.0
  %602 = vmatprep.subr.mxu0 0.0
  %603 = vmatpush1.msra.mxu0 0.0
  %604 = vmatprep.subr.mxu0 0.0
  %605 = vmatpush1.msra.mxu0 0.0
  %606 = vmatprep.subr.mxu0 0.0
  %607 = vmatpush1.msra.mxu0 0.0
  %608 = vmatprep.subr.mxu0 0.0
  %609 = vmatpush1.msra.mxu0 0.0
  %610 = vmatprep.subr.mxu0 0.0
  %611 = vmatpush1.msra.mxu0 0.0
  %612 = vmatprep.subr.mxu0 0.0
  %613 = vmatpush1.msra.mxu0 0.0
  %614 = vmatprep.subr.mxu0 0.0
  %615 = vmatpush1.msra.mxu0 0.0
  %616 = vmatprep.subr.mxu0 0.0
  %617 = vmatpush1.msra.mxu0 0.0
  %618 = vmatprep.subr.mxu0 0.0
  %619 = vmatpush1.msra.mxu0 0.0
  %620 = vmatprep.subr.mxu0 0.0
  %621 = vmatpush1.msra.mxu0 0.0
  %622 = vmatprep.subr.mxu0 0.0
  %623 = vmatpush1.msra.mxu0 0.0
  %624 = vmatprep.subr.mxu0 0.0
  %625 = vmatpush1.msra.mxu0 0.0
  %626 = vmatprep.subr.mxu0 0.0
  %627 = vmatpush1.msra.mxu0 0.0
  %628 = vmatprep.subr.mxu0 0.0
  %629 = vmatpush1.msra.mxu0 0.0
  %630 = vmatprep.subr.mxu0 0.0
  %631 = vmatpush1.msra.mxu0 0.0
  %632 = vmatprep.subr.mxu0 0.0
  %633 = vmatpush1.msra.mxu0 0.0
  %634 = vmatprep.subr.mxu0 0.0
  %635 = vmatpush1.msra.mxu0 0.0
  %636 = vmatprep.subr.mxu0 0.0
  %637 = vmatpush1.msra.mxu0 0.0
  %638 = vmatprep.subr.mxu0 0.0
  %639 = vmatpush1.msra.mxu0 0.0
  %640 = vmatprep.subr.mxu0 0.0
  %641 = vmatpush1.msra.mxu0 0.0
  %642 = vmatprep.subr.mxu0 0.0
  %643 = vmatpush1.msra.mxu0 0.0
  %644 = vmatprep.subr.mxu0 0.0
  %645 = vmatpush1.msra.mxu0 0.0
  %646 = vmatprep.subr.mxu0 0.0
  %647 = vmatpush1.msra.mxu0 0.0
  %648 = vmatprep.mubr.f32.mxu0 0.0
  %649 = vmatmul.mubr.f32.gmra.mrb[0].mxu0 %v483
  %v650 = vpop.f32.mrb[0].mxu0
  %v651 = vadd.f32 0.0, %v650
  %v652 = vpop.f32.mrb[0].mxu0
  %653 = vdwg.mxu0
  %v654 = vadd.f32 %v162, %v651
  %v655 = vxor.u32 %v654, 2147483648
  %v656 = vmul.f32 %v655, 1.442695
  %v657 = vpow.pop %v656
  %v658 = vadd.f32 %v657, 1.0
  %v659 = vrcp.pop %v658
  %v660 = vmul.f32 1.0, %v659
  %v661 = vtanh.pop %v654
  %v662 = vmul.f32 %v660, %v398
  %664 = vrot.lane.b32.xlu0 %v661, 64
  %v665 = vpop.permute.xlu0 %664
  %v667 = vmul.f32 %v660, %v665
  %669 = vrot.lane.b32.xlu0 %v667, 32
  %v670 = vpop.permute.xlu0 %669
  %v672 = vadd.f32 %v662, %v670
  %v673 = vtanh.pop %v672
  %675 = vrot.lane.b32.xlu0 %v673, 64
  %v676 = vpop.permute.xlu0 %675
  %v678 = vmul.f32 %v660, %v676
  %680 = vrot.lane.b32.xlu0 %v583, 32
  %v681 = vpop.permute.xlu0 %680
  %v682 = vsel %vm215, %v681, 0
  %684 = vmatprep.subr.mxu0 0.0
  %685 = vmatpush1.msra.mxu0 %v43
  %686 = vmatprep.subr.mxu0 0.0
  %687 = vmatpush1.msra.mxu0 %v44
  %688 = vmatprep.subr.mxu0 0.0
  %689 = vmatpush1.msra.mxu0 %v45
  %690 = vmatprep.subr.mxu0 0.0
  %691 = vmatpush1.msra.mxu0 %v46
  %692 = vmatprep.subr.mxu0 0.0
  %693 = vmatpush1.msra.mxu0 0.0
  %694 = vmatprep.subr.mxu0 0.0
  %695 = vmatpush1.msra.mxu0 0.0
  %696 = vmatprep.subr.mxu0 0.0
  %697 = vmatpush1.msra.mxu0 0.0
  %698 = vmatprep.subr.mxu0 0.0
  %699 = vmatpush1.msra.mxu0 0.0
  %700 = vmatprep.subr.mxu0 0.0
  %701 = vmatpush1.msra.mxu0 0.0
  %702 = vmatprep.subr.mxu0 0.0
  %703 = vmatpush1.msra.mxu0 0.0
  %704 = vmatprep.subr.mxu0 0.0
  %705 = vmatpush1.msra.mxu0 0.0
  %706 = vmatprep.subr.mxu0 0.0
  %707 = vmatpush1.msra.mxu0 0.0
  %708 = vmatprep.subr.mxu0 0.0
  %709 = vmatpush1.msra.mxu0 0.0
  %710 = vmatprep.subr.mxu0 0.0
  %711 = vmatpush1.msra.mxu0 0.0
  %712 = vmatprep.subr.mxu0 0.0
  %713 = vmatpush1.msra.mxu0 0.0
  %714 = vmatprep.subr.mxu0 0.0
  %715 = vmatpush1.msra.mxu0 0.0
  %716 = vmatprep.subr.mxu0 0.0
  %717 = vmatpush1.msra.mxu0 0.0
  %718 = vmatprep.subr.mxu0 0.0
  %719 = vmatpush1.msra.mxu0 0.0
  %720 = vmatprep.subr.mxu0 0.0
  %721 = vmatpush1.msra.mxu0 0.0
  %722 = vmatprep.subr.mxu0 0.0
  %723 = vmatpush1.msra.mxu0 0.0
  %724 = vmatprep.subr.mxu0 0.0
  %725 = vmatpush1.msra.mxu0 0.0
  %726 = vmatprep.subr.mxu0 0.0
  %727 = vmatpush1.msra.mxu0 0.0
  %728 = vmatprep.subr.mxu0 0.0
  %729 = vmatpush1.msra.mxu0 0.0
  %730 = vmatprep.subr.mxu0 0.0
  %731 = vmatpush1.msra.mxu0 0.0
  %732 = vmatprep.subr.mxu0 0.0
  %733 = vmatpush1.msra.mxu0 0.0
  %734 = vmatprep.subr.mxu0 0.0
  %735 = vmatpush1.msra.mxu0 0.0
  %736 = vmatprep.subr.mxu0 0.0
  %737 = vmatpush1.msra.mxu0 0.0
  %738 = vmatprep.subr.mxu0 0.0
  %739 = vmatpush1.msra.mxu0 0.0
  %740 = vmatprep.subr.mxu0 0.0
  %741 = vmatpush1.msra.mxu0 0.0
  %742 = vmatprep.subr.mxu0 0.0
  %743 = vmatpush1.msra.mxu0 0.0
  %744 = vmatprep.subr.mxu0 0.0
  %745 = vmatpush1.msra.mxu0 0.0
  %746 = vmatprep.subr.mxu0 0.0
  %747 = vmatpush1.msra.mxu0 0.0
  %748 = vmatprep.mubr.f32.mxu0 0.0
  %749 = vmatmul.mubr.f32.gmra.mrb[0].mxu0 %v682
  %v750 = vpop.f32.mrb[0].mxu0
  %v751 = vadd.f32 0.0, %v750
  %v752 = vpop.f32.mrb[0].mxu0
  %753 = vdwg.mxu0
  %755 = vrot.lane.b32.xlu0 %v678, 32
  %v756 = vpop.permute.xlu0 %755
  %v757 = vsel %vm215, %v756, 0
  %759 = vmatprep.subr.mxu0 0.0
  %760 = vmatpush1.msra.mxu0 %v39
  %761 = vmatprep.subr.mxu0 0.0
  %762 = vmatpush1.msra.mxu0 %v40
  %763 = vmatprep.subr.mxu0 0.0
  %764 = vmatpush1.msra.mxu0 %v41
  %765 = vmatprep.subr.mxu0 0.0
  %766 = vmatpush1.msra.mxu0 %v42
  %767 = vmatprep.subr.mxu0 0.0
  %768 = vmatpush1.msra.mxu0 0.0
  %769 = vmatprep.subr.mxu0 0.0
  %770 = vmatpush1.msra.mxu0 0.0
  %771 = vmatprep.subr.mxu0 0.0
  %772 = vmatpush1.msra.mxu0 0.0
  %773 = vmatprep.subr.mxu0 0.0
  %774 = vmatpush1.msra.mxu0 0.0
  %775 = vmatprep.subr.mxu0 0.0
  %776 = vmatpush1.msra.mxu0 0.0
  %777 = vmatprep.subr.mxu0 0.0
  %778 = vmatpush1.msra.mxu0 0.0
  %779 = vmatprep.subr.mxu0 0.0
  %780 = vmatpush1.msra.mxu0 0.0
  %781 = vmatprep.subr.mxu0 0.0
  %782 = vmatpush1.msra.mxu0 0.0
  %783 = vmatprep.subr.mxu0 0.0
  %784 = vmatpush1.msra.mxu0 0.0
  %785 = vmatprep.subr.mxu0 0.0
  %786 = vmatpush1.msra.mxu0 0.0
  %787 = vmatprep.subr.mxu0 0.0
  %788 = vmatpush1.msra.mxu0 0.0
  %789 = vmatprep.subr.mxu0 0.0
  %790 = vmatpush1.msra.mxu0 0.0
  %791 = vmatprep.subr.mxu0 0.0
  %792 = vmatpush1.msra.mxu0 0.0
  %793 = vmatprep.subr.mxu0 0.0
  %794 = vmatpush1.msra.mxu0 0.0
  %795 = vmatprep.subr.mxu0 0.0
  %796 = vmatpush1.msra.mxu0 0.0
  %797 = vmatprep.subr.mxu0 0.0
  %798 = vmatpush1.msra.mxu0 0.0
  %799 = vmatprep.subr.mxu0 0.0
  %800 = vmatpush1.msra.mxu0 0.0
  %801 = vmatprep.subr.mxu0 0.0
  %802 = vmatpush1.msra.mxu0 0.0
  %803 = vmatprep.subr.mxu0 0.0
  %804 = vmatpush1.msra.mxu0 0.0
  %805 = vmatprep.subr.mxu0 0.0
  %806 = vmatpush1.msra.mxu0 0.0
  %807 = vmatprep.subr.mxu0 0.0
  %808 = vmatpush1.msra.mxu0 0.0
  %809 = vmatprep.subr.mxu0 0.0
  %810 = vmatpush1.msra.mxu0 0.0
  %811 = vmatprep.subr.mxu0 0.0
  %812 = vmatpush1.msra.mxu0 0.0
  %813 = vmatprep.subr.mxu0 0.0
  %814 = vmatpush1.msra.mxu0 0.0
  %815 = vmatprep.subr.mxu0 0.0
  %816 = vmatpush1.msra.mxu0 0.0
  %817 = vmatprep.subr.mxu0 0.0
  %818 = vmatpush1.msra.mxu0 0.0
  %819 = vmatprep.subr.mxu0 0.0
  %820 = vmatpush1.msra.mxu0 0.0
  %821 = vmatprep.subr.mxu0 0.0
  %822 = vmatpush1.msra.mxu0 0.0
  %823 = vmatprep.mubr.f32.mxu0 0.0
  %824 = vmatmul.mubr.f32.gmra.mrb[0].mxu0 %v757
  %v825 = vpop.f32.mrb[0].mxu0
  %v826 = vadd.f32 %v751, %v825
  %v827 = vpop.f32.mrb[0].mxu0
  %828 = vdwg.mxu0
  %v829 = vadd.f32 %v826, %v211
  %v830 = vxor.u32 %v829, 2147483648
  %v831 = vmul.f32 %v830, 1.442695
  %v832 = vpow.pop %v831
  %v833 = vadd.f32 %v832, 1.0
  %v834 = vrcp.pop %v833
  %v835 = vmul.f32 1.0, %v834
  %v836 = vtanh.pop %v829
  %v837 = vmul.f32 %v835, %v577
  %839 = vrot.lane.b32.xlu0 %v836, 64
  %v840 = vpop.permute.xlu0 %839
  %v842 = vmul.f32 %v835, %v840
  %844 = vrot.lane.b32.xlu0 %v842, 32
  %v845 = vpop.permute.xlu0 %844
  %v847 = vadd.f32 %v837, %v845
  %v848 = vtanh.pop %v847
  %850 = vrot.lane.b32.xlu0 %v848, 64
  %v851 = vpop.permute.xlu0 %850
  %v853 = vmul.f32 %v835, %v851
  %854 = vmatprep.subr.mxu0 0.0
  %855 = vmatpush1.msra.mxu0 %v34
  %856 = vmatprep.subr.mxu0 0.0
  %857 = vmatpush1.msra.mxu0 %v35
  %858 = vmatprep.subr.mxu0 0.0
  %859 = vmatpush1.msra.mxu0 %v36
  %860 = vmatprep.subr.mxu0 0.0
  %861 = vmatpush1.msra.mxu0 %v37
  %862 = vmatprep.subr.mxu0 0.0
  %863 = vmatpush1.msra.mxu0 0.0
  %864 = vmatprep.subr.mxu0 0.0
  %865 = vmatpush1.msra.mxu0 0.0
  %866 = vmatprep.subr.mxu0 0.0
  %867 = vmatpush1.msra.mxu0 0.0
  %868 = vmatprep.subr.mxu0 0.0
  %869 = vmatpush1.msra.mxu0 0.0
  %870 = vmatprep.subr.mxu0 0.0
  %871 = vmatpush1.msra.mxu0 0.0
  %872 = vmatprep.subr.mxu0 0.0
  %873 = vmatpush1.msra.mxu0 0.0
  %874 = vmatprep.subr.mxu0 0.0
  %875 = vmatpush1.msra.mxu0 0.0
  %876 = vmatprep.subr.mxu0 0.0
  %877 = vmatpush1.msra.mxu0 0.0
  %878 = vmatprep.subr.mxu0 0.0
  %879 = vmatpush1.msra.mxu0 0.0
  %880 = vmatprep.subr.mxu0 0.0
  %881 = vmatpush1.msra.mxu0 0.0
  %882 = vmatprep.subr.mxu0 0.0
  %883 = vmatpush1.msra.mxu0 0.0
  %884 = vmatprep.subr.mxu0 0.0
  %885 = vmatpush1.msra.mxu0 0.0
  %886 = vmatprep.subr.mxu0 0.0
  %887 = vmatpush1.msra.mxu0 0.0
  %888 = vmatprep.subr.mxu0 0.0
  %889 = vmatpush1.msra.mxu0 0.0
  %890 = vmatprep.subr.mxu0 0.0
  %891 = vmatpush1.msra.mxu0 0.0
  %892 = vmatprep.subr.mxu0 0.0
  %893 = vmatpush1.msra.mxu0 0.0
  %894 = vmatprep.subr.mxu0 0.0
  %895 = vmatpush1.msra.mxu0 0.0
  %896 = vmatprep.subr.mxu0 0.0
  %897 = vmatpush1.msra.mxu0 0.0
  %898 = vmatprep.subr.mxu0 0.0
  %899 = vmatpush1.msra.mxu0 0.0
  %900 = vmatprep.subr.mxu0 0.0
  %901 = vmatpush1.msra.mxu0 0.0
  %902 = vmatprep.subr.mxu0 0.0
  %903 = vmatpush1.msra.mxu0 0.0
  %904 = vmatprep.subr.mxu0 0.0
  %905 = vmatpush1.msra.mxu0 0.0
  %906 = vmatprep.subr.mxu0 0.0
  %907 = vmatpush1.msra.mxu0 0.0
  %908 = vmatprep.subr.mxu0 0.0
  %909 = vmatpush1.msra.mxu0 0.0
  %910 = vmatprep.subr.mxu0 0.0
  %911 = vmatpush1.msra.mxu0 0.0
  %912 = vmatprep.subr.mxu0 0.0
  %913 = vmatpush1.msra.mxu0 0.0
  %914 = vmatprep.subr.mxu0 0.0
  %915 = vmatpush1.msra.mxu0 0.0
  %916 = vmatprep.subr.mxu0 0.0
  %917 = vmatpush1.msra.mxu0 0.0
  %918 = vmatprep.mubr.f32.mxu0 0.0
  %919 = vmatmul.mubr.f32.gmra.mrb[0].mxu0 %v757
  %v920 = vpop.f32.mrb[0].mxu0
  %v921 = vadd.f32 0.0, %v920
  %v922 = vpop.f32.mrb[0].mxu0
  %923 = vdwg.mxu0
  %v924 = vadd.f32 %v167, %v921
  %v925 = vxor.u32 %v924, 2147483648
  %v926 = vmul.f32 %v925, 1.442695
  %v927 = vpow.pop %v926
  %v928 = vadd.f32 %v927, 1.0
  %v929 = vrcp.pop %v928
  %v930 = vmul.f32 1.0, %v929
  %v931 = vtanh.pop %v924
  %v932 = vmul.f32 %v930, %v672
  %934 = vrot.lane.b32.xlu0 %v931, 64
  %v935 = vpop.permute.xlu0 %934
  %v937 = vmul.f32 %v930, %v935
  %939 = vrot.lane.b32.xlu0 %v937, 32
  %v940 = vpop.permute.xlu0 %939
  %v942 = vadd.f32 %v932, %v940
  %v943 = vtanh.pop %v942
  %945 = vrot.lane.b32.xlu0 %v943, 64
  %v946 = vpop.permute.xlu0 %945
  %v948 = vmul.f32 %v930, %v946
  %950 = vrot.lane.b32.xlu0 %v853, 32
  %v951 = vpop.permute.xlu0 %950
  %v952 = vsel %vm215, %v951, 0
  %954 = vmatprep.subr.mxu0 0.0
  %955 = vmatpush1.msra.mxu0 %v43
  %956 = vmatprep.subr.mxu0 0.0
  %957 = vmatpush1.msra.mxu0 %v44
  %958 = vmatprep.subr.mxu0 0.0
  %959 = vmatpush1.msra.mxu0 %v45
  %960 = vmatprep.subr.mxu0 0.0
  %961 = vmatpush1.msra.mxu0 %v46
  %962 = vmatprep.subr.mxu0 0.0
  %963 = vmatpush1.msra.mxu0 0.0
  %964 = vmatprep.subr.mxu0 0.0
  %965 = vmatpush1.msra.mxu0 0.0
  %966 = vmatprep.subr.mxu0 0.0
  %967 = vmatpush1.msra.mxu0 0.0
  %968 = vmatprep.subr.mxu0 0.0
  %969 = vmatpush1.msra.mxu0 0.0
  %970 = vmatprep.subr.mxu0 0.0
  %971 = vmatpush1.msra.mxu0 0.0
  %972 = vmatprep.subr.mxu0 0.0
  %973 = vmatpush1.msra.mxu0 0.0
  %974 = vmatprep.subr.mxu0 0.0
  %975 = vmatpush1.msra.mxu0 0.0
  %976 = vmatprep.subr.mxu0 0.0
  %977 = vmatpush1.msra.mxu0 0.0
  %978 = vmatprep.subr.mxu0 0.0
  %979 = vmatpush1.msra.mxu0 0.0
  %980 = vmatprep.subr.mxu0 0.0
  %981 = vmatpush1.msra.mxu0 0.0
  %982 = vmatprep.subr.mxu0 0.0
  %983 = vmatpush1.msra.mxu0 0.0
  %984 = vmatprep.subr.mxu0 0.0
  %985 = vmatpush1.msra.mxu0 0.0
  %986 = vmatprep.subr.mxu0 0.0
  %987 = vmatpush1.msra.mxu0 0.0
  %988 = vmatprep.subr.mxu0 0.0
  %989 = vmatpush1.msra.mxu0 0.0
  %990 = vmatprep.subr.mxu0 0.0
  %991 = vmatpush1.msra.mxu0 0.0
  %992 = vmatprep.subr.mxu0 0.0
  %993 = vmatpush1.msra.mxu0 0.0
  %994 = vmatprep.subr.mxu0 0.0
  %995 = vmatpush1.msra.mxu0 0.0
  %996 = vmatprep.subr.mxu0 0.0
  %997 = vmatpush1.msra.mxu0 0.0
  %998 = vmatprep.subr.mxu0 0.0
  %999 = vmatpush1.msra.mxu0 0.0
  %1000 = vmatprep.subr.mxu0 0.0
  %1001 = vmatpush1.msra.mxu0 0.0
  %1002 = vmatprep.subr.mxu0 0.0
  %1003 = vmatpush1.msra.mxu0 0.0
  %1004 = vmatprep.subr.mxu0 0.0
  %1005 = vmatpush1.msra.mxu0 0.0
  %1006 = vmatprep.subr.mxu0 0.0
  %1007 = vmatpush1.msra.mxu0 0.0
  %1008 = vmatprep.subr.mxu0 0.0
  %1009 = vmatpush1.msra.mxu0 0.0
  %1010 = vmatprep.subr.mxu0 0.0
  %1011 = vmatpush1.msra.mxu0 0.0
  %1012 = vmatprep.subr.mxu0 0.0
  %1013 = vmatpush1.msra.mxu0 0.0
  %1014 = vmatprep.subr.mxu0 0.0
  %1015 = vmatpush1.msra.mxu0 0.0
  %1016 = vmatprep.subr.mxu0 0.0
  %1017 = vmatpush1.msra.mxu0 0.0
  %1018 = vmatprep.mubr.f32.mxu0 0.0
  %1019 = vmatmul.mubr.f32.gmra.mrb[0].mxu0 %v952
  %v1020 = vpop.f32.mrb[0].mxu0
  %v1021 = vadd.f32 0.0, %v1020
  %v1022 = vpop.f32.mrb[0].mxu0
  %1023 = vdwg.mxu0
  %1025 = vrot.lane.b32.xlu0 %v948, 32
  %v1026 = vpop.permute.xlu0 %1025
  %v1027 = vsel %vm215, %v1026, 0
  %1029 = vmatprep.subr.mxu0 0.0
  %1030 = vmatpush1.msra.mxu0 %v39
  %1031 = vmatprep.subr.mxu0 0.0
  %1032 = vmatpush1.msra.mxu0 %v40
  %1033 = vmatprep.subr.mxu0 0.0
  %1034 = vmatpush1.msra.mxu0 %v41
  %1035 = vmatprep.subr.mxu0 0.0
  %1036 = vmatpush1.msra.mxu0 %v42
  %1037 = vmatprep.subr.mxu0 0.0
  %1038 = vmatpush1.msra.mxu0 0.0
  %1039 = vmatprep.subr.mxu0 0.0
  %1040 = vmatpush1.msra.mxu0 0.0
  %1041 = vmatprep.subr.mxu0 0.0
  %1042 = vmatpush1.msra.mxu0 0.0
  %1043 = vmatprep.subr.mxu0 0.0
  %1044 = vmatpush1.msra.mxu0 0.0
  %1045 = vmatprep.subr.mxu0 0.0
  %1046 = vmatpush1.msra.mxu0 0.0
  %1047 = vmatprep.subr.mxu0 0.0
  %1048 = vmatpush1.msra.mxu0 0.0
  %1049 = vmatprep.subr.mxu0 0.0
  %1050 = vmatpush1.msra.mxu0 0.0
  %1051 = vmatprep.subr.mxu0 0.0
  %1052 = vmatpush1.msra.mxu0 0.0
  %1053 = vmatprep.subr.mxu0 0.0
  %1054 = vmatpush1.msra.mxu0 0.0
  %1055 = vmatprep.subr.mxu0 0.0
  %1056 = vmatpush1.msra.mxu0 0.0
  %1057 = vmatprep.subr.mxu0 0.0
  %1058 = vmatpush1.msra.mxu0 0.0
  %1059 = vmatprep.subr.mxu0 0.0
  %1060 = vmatpush1.msra.mxu0 0.0
  %1061 = vmatprep.subr.mxu0 0.0
  %1062 = vmatpush1.msra.mxu0 0.0
  %1063 = vmatprep.subr.mxu0 0.0
  %1064 = vmatpush1.msra.mxu0 0.0
  %1065 = vmatprep.subr.mxu0 0.0
  %1066 = vmatpush1.msra.mxu0 0.0
  %1067 = vmatprep.subr.mxu0 0.0
  %1068 = vmatpush1.msra.mxu0 0.0
  %1069 = vmatprep.subr.mxu0 0.0
  %1070 = vmatpush1.msra.mxu0 0.0
  %1071 = vmatprep.subr.mxu0 0.0
  %1072 = vmatpush1.msra.mxu0 0.0
  %1073 = vmatprep.subr.mxu0 0.0
  %1074 = vmatpush1.msra.mxu0 0.0
  %1075 = vmatprep.subr.mxu0 0.0
  %1076 = vmatpush1.msra.mxu0 0.0
  %1077 = vmatprep.subr.mxu0 0.0
  %1078 = vmatpush1.msra.mxu0 0.0
  %1079 = vmatprep.subr.mxu0 0.0
  %1080 = vmatpush1.msra.mxu0 0.0
  %1081 = vmatprep.subr.mxu0 0.0
  %1082 = vmatpush1.msra.mxu0 0.0
  %1083 = vmatprep.subr.mxu0 0.0
  %1084 = vmatpush1.msra.mxu0 0.0
  %1085 = vmatprep.subr.mxu0 0.0
  %1086 = vmatpush1.msra.mxu0 0.0
  %1087 = vmatprep.subr.mxu0 0.0
  %1088 = vmatpush1.msra.mxu0 0.0
  %1089 = vmatprep.subr.mxu0 0.0
  %1090 = vmatpush1.msra.mxu0 0.0
  %1091 = vmatprep.subr.mxu0 0.0
  %1092 = vmatpush1.msra.mxu0 0.0
  %1093 = vmatprep.mubr.f32.mxu0 0.0
  %1094 = vmatmul.mubr.f32.gmra.mrb[0].mxu0 %v1027
  %v1095 = vpop.f32.mrb[0].mxu0
  %v1096 = vadd.f32 %v1021, %v1095
  %v1097 = vpop.f32.mrb[0].mxu0
  %1098 = vdwg.mxu0
  %v1099 = vadd.f32 %v1096, %v211
  %v1100 = vxor.u32 %v1099, 2147483648
  %v1101 = vmul.f32 %v1100, 1.442695
  %v1102 = vpow.pop %v1101
  %v1103 = vadd.f32 %v1102, 1.0
  %v1104 = vrcp.pop %v1103
  %v1105 = vmul.f32 1.0, %v1104
  %v1106 = vtanh.pop %v1099
  %v1107 = vmul.f32 %v1105, %v847
  %1109 = vrot.lane.b32.xlu0 %v1106, 64
  %v1110 = vpop.permute.xlu0 %1109
  %v1112 = vmul.f32 %v1105, %v1110
  %1114 = vrot.lane.b32.xlu0 %v1112, 32
  %v1115 = vpop.permute.xlu0 %1114
  %v1117 = vadd.f32 %v1107, %v1115
  %v1118 = vtanh.pop %v1117
  %1120 = vrot.lane.b32.xlu0 %v1118, 64
  %v1121 = vpop.permute.xlu0 %1120
  %v1123 = vmul.f32 %v1105, %v1121
  %1124 = vmatprep.subr.mxu0 0.0
  %1125 = vmatpush1.msra.mxu0 %v34
  %1126 = vmatprep.subr.mxu0 0.0
  %1127 = vmatpush1.msra.mxu0 %v35
  %1128 = vmatprep.subr.mxu0 0.0
  %1129 = vmatpush1.msra.mxu0 %v36
  %1130 = vmatprep.subr.mxu0 0.0
  %1131 = vmatpush1.msra.mxu0 %v37
  %1132 = vmatprep.subr.mxu0 0.0
  %1133 = vmatpush1.msra.mxu0 0.0
  %1134 = vmatprep.subr.mxu0 0.0
  %1135 = vmatpush1.msra.mxu0 0.0
  %1136 = vmatprep.subr.mxu0 0.0
  %1137 = vmatpush1.msra.mxu0 0.0
  %1138 = vmatprep.subr.mxu0 0.0
  %1139 = vmatpush1.msra.mxu0 0.0
  %1140 = vmatprep.subr.mxu0 0.0
  %1141 = vmatpush1.msra.mxu0 0.0
  %1142 = vmatprep.subr.mxu0 0.0
  %1143 = vmatpush1.msra.mxu0 0.0
  %1144 = vmatprep.subr.mxu0 0.0
  %1145 = vmatpush1.msra.mxu0 0.0
  %1146 = vmatprep.subr.mxu0 0.0
  %1147 = vmatpush1.msra.mxu0 0.0
  %1148 = vmatprep.subr.mxu0 0.0
  %1149 = vmatpush1.msra.mxu0 0.0
  %1150 = vmatprep.subr.mxu0 0.0
  %1151 = vmatpush1.msra.mxu0 0.0
  %1152 = vmatprep.subr.mxu0 0.0
  %1153 = vmatpush1.msra.mxu0 0.0
  %1154 = vmatprep.subr.mxu0 0.0
  %1155 = vmatpush1.msra.mxu0 0.0
  %1156 = vmatprep.subr.mxu0 0.0
  %1157 = vmatpush1.msra.mxu0 0.0
  %1158 = vmatprep.subr.mxu0 0.0
  %1159 = vmatpush1.msra.mxu0 0.0
  %1160 = vmatprep.subr.mxu0 0.0
  %1161 = vmatpush1.msra.mxu0 0.0
  %1162 = vmatprep.subr.mxu0 0.0
  %1163 = vmatpush1.msra.mxu0 0.0
  %1164 = vmatprep.subr.mxu0 0.0
  %1165 = vmatpush1.msra.mxu0 0.0
  %1166 = vmatprep.subr.mxu0 0.0
  %1167 = vmatpush1.msra.mxu0 0.0
  %1168 = vmatprep.subr.mxu0 0.0
  %1169 = vmatpush1.msra.mxu0 0.0
  %1170 = vmatprep.subr.mxu0 0.0
  %1171 = vmatpush1.msra.mxu0 0.0
  %1172 = vmatprep.subr.mxu0 0.0
  %1173 = vmatpush1.msra.mxu0 0.0
  %1174 = vmatprep.subr.mxu0 0.0
  %1175 = vmatpush1.msra.mxu0 0.0
  %1176 = vmatprep.subr.mxu0 0.0
  %1177 = vmatpush1.msra.mxu0 0.0
  %1178 = vmatprep.subr.mxu0 0.0
  %1179 = vmatpush1.msra.mxu0 0.0
  %1180 = vmatprep.subr.mxu0 0.0
  %1181 = vmatpush1.msra.mxu0 0.0
  %1182 = vmatprep.subr.mxu0 0.0
  %1183 = vmatpush1.msra.mxu0 0.0
  %1184 = vmatprep.subr.mxu0 0.0
  %1185 = vmatpush1.msra.mxu0 0.0
  %1186 = vmatprep.subr.mxu0 0.0
  %1187 = vmatpush1.msra.mxu0 0.0
  %1188 = vmatprep.mubr.f32.mxu0 0.0
  %1189 = vmatmul.mubr.f32.gmra.mrb[0].mxu0 %v1027
  %v1190 = vpop.f32.mrb[0].mxu0
  %v1191 = vadd.f32 0.0, %v1190
  %v1192 = vpop.f32.mrb[0].mxu0
  %1193 = vdwg.mxu0
  %v1194 = vadd.f32 %v172, %v1191
  %v1195 = vxor.u32 %v1194, 2147483648
  %v1196 = vmul.f32 %v1195, 1.442695
  %v1197 = vpow.pop %v1196
  %v1198 = vadd.f32 %v1197, 1.0
  %v1199 = vrcp.pop %v1198
  %v1200 = vmul.f32 1.0, %v1199
  %v1201 = vtanh.pop %v1194
  %v1202 = vmul.f32 %v1200, %v942
  %1204 = vrot.lane.b32.xlu0 %v1201, 64
  %v1205 = vpop.permute.xlu0 %1204
  %v1207 = vmul.f32 %v1200, %v1205
  %1209 = vrot.lane.b32.xlu0 %v1207, 32
  %v1210 = vpop.permute.xlu0 %1209
  %v1212 = vadd.f32 %v1202, %v1210
  %v1213 = vtanh.pop %v1212
  %1215 = vrot.lane.b32.xlu0 %v1213, 64
  %v1216 = vpop.permute.xlu0 %1215
  %v1218 = vmul.f32 %v1200, %v1216
  %1220 = vrot.lane.b32.xlu0 %v1123, 32
  %v1221 = vpop.permute.xlu0 %1220
  %v1222 = vsel %vm215, %v1221, 0
  %1224 = vmatprep.subr.mxu0 0.0
  %1225 = vmatpush1.msra.mxu0 %v43
  %1226 = vmatprep.subr.mxu0 0.0
  %1227 = vmatpush1.msra.mxu0 %v44
  %1228 = vmatprep.subr.mxu0 0.0
  %1229 = vmatpush1.msra.mxu0 %v45
  %1230 = vmatprep.subr.mxu0 0.0
  %1231 = vmatpush1.msra.mxu0 %v46
  %1232 = vmatprep.subr.mxu0 0.0
  %1233 = vmatpush1.msra.mxu0 0.0
  %1234 = vmatprep.subr.mxu0 0.0
  %1235 = vmatpush1.msra.mxu0 0.0
  %1236 = vmatprep.subr.mxu0 0.0
  %1237 = vmatpush1.msra.mxu0 0.0
  %1238 = vmatprep.subr.mxu0 0.0
  %1239 = vmatpush1.msra.mxu0 0.0
  %1240 = vmatprep.subr.mxu0 0.0
  %1241 = vmatpush1.msra.mxu0 0.0
  %1242 = vmatprep.subr.mxu0 0.0
  %1243 = vmatpush1.msra.mxu0 0.0
  %1244 = vmatprep.subr.mxu0 0.0
  %1245 = vmatpush1.msra.mxu0 0.0
  %1246 = vmatprep.subr.mxu0 0.0
  %1247 = vmatpush1.msra.mxu0 0.0
  %1248 = vmatprep.subr.mxu0 0.0
  %1249 = vmatpush1.msra.mxu0 0.0
  %1250 = vmatprep.subr.mxu0 0.0
  %1251 = vmatpush1.msra.mxu0 0.0
  %1252 = vmatprep.subr.mxu0 0.0
  %1253 = vmatpush1.msra.mxu0 0.0
  %1254 = vmatprep.subr.mxu0 0.0
  %1255 = vmatpush1.msra.mxu0 0.0
  %1256 = vmatprep.subr.mxu0 0.0
  %1257 = vmatpush1.msra.mxu0 0.0
  %1258 = vmatprep.subr.mxu0 0.0
  %1259 = vmatpush1.msra.mxu0 0.0
  %1260 = vmatprep.subr.mxu0 0.0
  %1261 = vmatpush1.msra.mxu0 0.0
  %1262 = vmatprep.subr.mxu0 0.0
  %1263 = vmatpush1.msra.mxu0 0.0
  %1264 = vmatprep.subr.mxu0 0.0
  %1265 = vmatpush1.msra.mxu0 0.0
  %1266 = vmatprep.subr.mxu0 0.0
  %1267 = vmatpush1.msra.mxu0 0.0
  %1268 = vmatprep.subr.mxu0 0.0
  %1269 = vmatpush1.msra.mxu0 0.0
  %1270 = vmatprep.subr.mxu0 0.0
  %1271 = vmatpush1.msra.mxu0 0.0
  %1272 = vmatprep.subr.mxu0 0.0
  %1273 = vmatpush1.msra.mxu0 0.0
  %1274 = vmatprep.subr.mxu0 0.0
  %1275 = vmatpush1.msra.mxu0 0.0
  %1276 = vmatprep.subr.mxu0 0.0
  %1277 = vmatpush1.msra.mxu0 0.0
  %1278 = vmatprep.subr.mxu0 0.0
  %1279 = vmatpush1.msra.mxu0 0.0
  %1280 = vmatprep.subr.mxu0 0.0
  %1281 = vmatpush1.msra.mxu0 0.0
  %1282 = vmatprep.subr.mxu0 0.0
  %1283 = vmatpush1.msra.mxu0 0.0
  %1284 = vmatprep.subr.mxu0 0.0
  %1285 = vmatpush1.msra.mxu0 0.0
  %1286 = vmatprep.subr.mxu0 0.0
  %1287 = vmatpush1.msra.mxu0 0.0
  %1288 = vmatprep.mubr.f32.mxu0 0.0
  %1289 = vmatmul.mubr.f32.gmra.mrb[0].mxu0 %v1222
  %v1290 = vpop.f32.mrb[0].mxu0
  %v1291 = vadd.f32 0.0, %v1290
  %v1292 = vpop.f32.mrb[0].mxu0
  %1293 = vdwg.mxu0
  %1295 = vrot.lane.b32.xlu0 %v1218, 32
  %v1296 = vpop.permute.xlu0 %1295
  %v1297 = vsel %vm215, %v1296, 0
  %1299 = vmatprep.subr.mxu0 0.0
  %1300 = vmatpush1.msra.mxu0 %v39
  %1301 = vmatprep.subr.mxu0 0.0
  %1302 = vmatpush1.msra.mxu0 %v40
  %1303 = vmatprep.subr.mxu0 0.0
  %1304 = vmatpush1.msra.mxu0 %v41
  %1305 = vmatprep.subr.mxu0 0.0
  %1306 = vmatpush1.msra.mxu0 %v42
  %1307 = vmatprep.subr.mxu0 0.0
  %1308 = vmatpush1.msra.mxu0 0.0
  %1309 = vmatprep.subr.mxu0 0.0
  %1310 = vmatpush1.msra.mxu0 0.0
  %1311 = vmatprep.subr.mxu0 0.0
  %1312 = vmatpush1.msra.mxu0 0.0
  %1313 = vmatprep.subr.mxu0 0.0
  %1314 = vmatpush1.msra.mxu0 0.0
  %1315 = vmatprep.subr.mxu0 0.0
  %1316 = vmatpush1.msra.mxu0 0.0
  %1317 = vmatprep.subr.mxu0 0.0
  %1318 = vmatpush1.msra.mxu0 0.0
  %1319 = vmatprep.subr.mxu0 0.0
  %1320 = vmatpush1.msra.mxu0 0.0
  %1321 = vmatprep.subr.mxu0 0.0
  %1322 = vmatpush1.msra.mxu0 0.0
  %1323 = vmatprep.subr.mxu0 0.0
  %1324 = vmatpush1.msra.mxu0 0.0
  %1325 = vmatprep.subr.mxu0 0.0
  %1326 = vmatpush1.msra.mxu0 0.0
  %1327 = vmatprep.subr.mxu0 0.0
  %1328 = vmatpush1.msra.mxu0 0.0
  %1329 = vmatprep.subr.mxu0 0.0
  %1330 = vmatpush1.msra.mxu0 0.0
  %1331 = vmatprep.subr.mxu0 0.0
  %1332 = vmatpush1.msra.mxu0 0.0
  %1333 = vmatprep.subr.mxu0 0.0
  %1334 = vmatpush1.msra.mxu0 0.0
  %1335 = vmatprep.subr.mxu0 0.0
  %1336 = vmatpush1.msra.mxu0 0.0
  %1337 = vmatprep.subr.mxu0 0.0
  %1338 = vmatpush1.msra.mxu0 0.0
  %1339 = vmatprep.subr.mxu0 0.0
  %1340 = vmatpush1.msra.mxu0 0.0
  %1341 = vmatprep.subr.mxu0 0.0
  %1342 = vmatpush1.msra.mxu0 0.0
  %1343 = vmatprep.subr.mxu0 0.0
  %1344 = vmatpush1.msra.mxu0 0.0
  %1345 = vmatprep.subr.mxu0 0.0
  %1346 = vmatpush1.msra.mxu0 0.0
  %1347 = vmatprep.subr.mxu0 0.0
  %1348 = vmatpush1.msra.mxu0 0.0
  %1349 = vmatprep.subr.mxu0 0.0
  %1350 = vmatpush1.msra.mxu0 0.0
  %1351 = vmatprep.subr.mxu0 0.0
  %1352 = vmatpush1.msra.mxu0 0.0
  %1353 = vmatprep.subr.mxu0 0.0
  %1354 = vmatpush1.msra.mxu0 0.0
  %1355 = vmatprep.subr.mxu0 0.0
  %1356 = vmatpush1.msra.mxu0 0.0
  %1357 = vmatprep.subr.mxu0 0.0
  %1358 = vmatpush1.msra.mxu0 0.0
  %1359 = vmatprep.subr.mxu0 0.0
  %1360 = vmatpush1.msra.mxu0 0.0
  %1361 = vmatprep.subr.mxu0 0.0
  %1362 = vmatpush1.msra.mxu0 0.0
  %1363 = vmatprep.mubr.f32.mxu0 0.0
  %1364 = vmatmul.mubr.f32.gmra.mrb[0].mxu0 %v1297
  %v1365 = vpop.f32.mrb[0].mxu0
  %v1366 = vadd.f32 %v1291, %v1365
  %v1367 = vpop.f32.mrb[0].mxu0
  %1368 = vdwg.mxu0
  %v1369 = vadd.f32 %v1366, %v211
  %v1370 = vxor.u32 %v1369, 2147483648
  %v1371 = vmul.f32 %v1370, 1.442695
  %v1372 = vpow.pop %v1371
  %v1373 = vadd.f32 %v1372, 1.0
  %v1374 = vrcp.pop %v1373
  %v1375 = vmul.f32 1.0, %v1374
  %v1376 = vtanh.pop %v1369
  %v1377 = vmul.f32 %v1375, %v1117
  %1379 = vrot.lane.b32.xlu0 %v1376, 64
  %v1380 = vpop.permute.xlu0 %1379
  %v1382 = vmul.f32 %v1375, %v1380
  %1384 = vrot.lane.b32.xlu0 %v1382, 32
  %v1385 = vpop.permute.xlu0 %1384
  %v1387 = vadd.f32 %v1377, %v1385
  %v1388 = vtanh.pop %v1387
  %1390 = vrot.lane.b32.xlu0 %v1388, 64
  %v1391 = vpop.permute.xlu0 %1390
  %v1393 = vmul.f32 %v1375, %v1391
  %1394 = vmatprep.subr.mxu0 0.0
  %1395 = vmatpush1.msra.mxu0 %v34
  %1396 = vmatprep.subr.mxu0 0.0
  %1397 = vmatpush1.msra.mxu0 %v35
  %1398 = vmatprep.subr.mxu0 0.0
  %1399 = vmatpush1.msra.mxu0 %v36
  %1400 = vmatprep.subr.mxu0 0.0
  %1401 = vmatpush1.msra.mxu0 %v37
  %1402 = vmatprep.subr.mxu0 0.0
  %1403 = vmatpush1.msra.mxu0 0.0
  %1404 = vmatprep.subr.mxu0 0.0
  %1405 = vmatpush1.msra.mxu0 0.0
  %1406 = vmatprep.subr.mxu0 0.0
  %1407 = vmatpush1.msra.mxu0 0.0
  %1408 = vmatprep.subr.mxu0 0.0
  %1409 = vmatpush1.msra.mxu0 0.0
  %1410 = vmatprep.subr.mxu0 0.0
  %1411 = vmatpush1.msra.mxu0 0.0
  %1412 = vmatprep.subr.mxu0 0.0
  %1413 = vmatpush1.msra.mxu0 0.0
  %1414 = vmatprep.subr.mxu0 0.0
  %1415 = vmatpush1.msra.mxu0 0.0
  %1416 = vmatprep.subr.mxu0 0.0
  %1417 = vmatpush1.msra.mxu0 0.0
  %1418 = vmatprep.subr.mxu0 0.0
  %1419 = vmatpush1.msra.mxu0 0.0
  %1420 = vmatprep.subr.mxu0 0.0
  %1421 = vmatpush1.msra.mxu0 0.0
  %1422 = vmatprep.subr.mxu0 0.0
  %1423 = vmatpush1.msra.mxu0 0.0
  %1424 = vmatprep.subr.mxu0 0.0
  %1425 = vmatpush1.msra.mxu0 0.0
  %1426 = vmatprep.subr.mxu0 0.0
  %1427 = vmatpush1.msra.mxu0 0.0
  %1428 = vmatprep.subr.mxu0 0.0
  %1429 = vmatpush1.msra.mxu0 0.0
  %1430 = vmatprep.subr.mxu0 0.0
  %1431 = vmatpush1.msra.mxu0 0.0
  %1432 = vmatprep.subr.mxu0 0.0
  %1433 = vmatpush1.msra.mxu0 0.0
  %1434 = vmatprep.subr.mxu0 0.0
  %1435 = vmatpush1.msra.mxu0 0.0
  %1436 = vmatprep.subr.mxu0 0.0
  %1437 = vmatpush1.msra.mxu0 0.0
  %1438 = vmatprep.subr.mxu0 0.0
  %1439 = vmatpush1.msra.mxu0 0.0
  %1440 = vmatprep.subr.mxu0 0.0
  %1441 = vmatpush1.msra.mxu0 0.0
  %1442 = vmatprep.subr.mxu0 0.0
  %1443 = vmatpush1.msra.mxu0 0.0
  %1444 = vmatprep.subr.mxu0 0.0
  %1445 = vmatpush1.msra.mxu0 0.0
  %1446 = vmatprep.subr.mxu0 0.0
  %1447 = vmatpush1.msra.mxu0 0.0
  %1448 = vmatprep.subr.mxu0 0.0
  %1449 = vmatpush1.msra.mxu0 0.0
  %1450 = vmatprep.subr.mxu0 0.0
  %1451 = vmatpush1.msra.mxu0 0.0
  %1452 = vmatprep.subr.mxu0 0.0
  %1453 = vmatpush1.msra.mxu0 0.0
  %1454 = vmatprep.subr.mxu0 0.0
  %1455 = vmatpush1.msra.mxu0 0.0
  %1456 = vmatprep.subr.mxu0 0.0
  %1457 = vmatpush1.msra.mxu0 0.0
  %1458 = vmatprep.mubr.f32.mxu0 0.0
  %1459 = vmatmul.mubr.f32.gmra.mrb[0].mxu0 %v1297
  %v1460 = vpop.f32.mrb[0].mxu0
  %v1461 = vadd.f32 0.0, %v1460
  %v1462 = vpop.f32.mrb[0].mxu0
  %1463 = vdwg.mxu0
  %v1464 = vadd.f32 %v177, %v1461
  %v1465 = vxor.u32 %v1464, 2147483648
  %v1466 = vmul.f32 %v1465, 1.442695
  %v1467 = vpow.pop %v1466
  %v1468 = vadd.f32 %v1467, 1.0
  %v1469 = vrcp.pop %v1468
  %v1470 = vmul.f32 1.0, %v1469
  %v1471 = vtanh.pop %v1464
  %v1472 = vmul.f32 %v1470, %v1212
  %1474 = vrot.lane.b32.xlu0 %v1471, 64
  %v1475 = vpop.permute.xlu0 %1474
  %v1477 = vmul.f32 %v1470, %v1475
  %1479 = vrot.lane.b32.xlu0 %v1477, 32
  %v1480 = vpop.permute.xlu0 %1479
  %v1482 = vadd.f32 %v1472, %v1480
  %v1483 = vtanh.pop %v1482
  %1485 = vrot.lane.b32.xlu0 %v1483, 64
  %v1486 = vpop.permute.xlu0 %1485
  %v1488 = vmul.f32 %v1470, %v1486
  %1490 = vrot.lane.b32.xlu0 %v1393, 32
  %v1491 = vpop.permute.xlu0 %1490
  %v1492 = vsel %vm215, %v1491, 0
  %1494 = vmatprep.subr.mxu0 0.0
  %1495 = vmatpush1.msra.mxu0 %v43
  %1496 = vmatprep.subr.mxu0 0.0
  %1497 = vmatpush1.msra.mxu0 %v44
  %1498 = vmatprep.subr.mxu0 0.0
  %1499 = vmatpush1.msra.mxu0 %v45
  %1500 = vmatprep.subr.mxu0 0.0
  %1501 = vmatpush1.msra.mxu0 %v46
  %1502 = vmatprep.subr.mxu0 0.0
  %1503 = vmatpush1.msra.mxu0 0.0
  %1504 = vmatprep.subr.mxu0 0.0
  %1505 = vmatpush1.msra.mxu0 0.0
  %1506 = vmatprep.subr.mxu0 0.0
  %1507 = vmatpush1.msra.mxu0 0.0
  %1508 = vmatprep.subr.mxu0 0.0
  %1509 = vmatpush1.msra.mxu0 0.0
  %1510 = vmatprep.subr.mxu0 0.0
  %1511 = vmatpush1.msra.mxu0 0.0
  %1512 = vmatprep.subr.mxu0 0.0
  %1513 = vmatpush1.msra.mxu0 0.0
  %1514 = vmatprep.subr.mxu0 0.0
  %1515 = vmatpush1.msra.mxu0 0.0
  %1516 = vmatprep.subr.mxu0 0.0
  %1517 = vmatpush1.msra.mxu0 0.0
  %1518 = vmatprep.subr.mxu0 0.0
  %1519 = vmatpush1.msra.mxu0 0.0
  %1520 = vmatprep.subr.mxu0 0.0
  %1521 = vmatpush1.msra.mxu0 0.0
  %1522 = vmatprep.subr.mxu0 0.0
  %1523 = vmatpush1.msra.mxu0 0.0
  %1524 = vmatprep.subr.mxu0 0.0
  %1525 = vmatpush1.msra.mxu0 0.0
  %1526 = vmatprep.subr.mxu0 0.0
  %1527 = vmatpush1.msra.mxu0 0.0
  %1528 = vmatprep.subr.mxu0 0.0
  %1529 = vmatpush1.msra.mxu0 0.0
  %1530 = vmatprep.subr.mxu0 0.0
  %1531 = vmatpush1.msra.mxu0 0.0
  %1532 = vmatprep.subr.mxu0 0.0
  %1533 = vmatpush1.msra.mxu0 0.0
  %1534 = vmatprep.subr.mxu0 0.0
  %1535 = vmatpush1.msra.mxu0 0.0
  %1536 = vmatprep.subr.mxu0 0.0
  %1537 = vmatpush1.msra.mxu0 0.0
  %1538 = vmatprep.subr.mxu0 0.0
  %1539 = vmatpush1.msra.mxu0 0.0
  %1540 = vmatprep.subr.mxu0 0.0
  %1541 = vmatpush1.msra.mxu0 0.0
  %1542 = vmatprep.subr.mxu0 0.0
  %1543 = vmatpush1.msra.mxu0 0.0
  %1544 = vmatprep.subr.mxu0 0.0
  %1545 = vmatpush1.msra.mxu0 0.0
  %1546 = vmatprep.subr.mxu0 0.0
  %1547 = vmatpush1.msra.mxu0 0.0
  %1548 = vmatprep.subr.mxu0 0.0
  %1549 = vmatpush1.msra.mxu0 0.0
  %1550 = vmatprep.subr.mxu0 0.0
  %1551 = vmatpush1.msra.mxu0 0.0
  %1552 = vmatprep.subr.mxu0 0.0
  %1553 = vmatpush1.msra.mxu0 0.0
  %1554 = vmatprep.subr.mxu0 0.0
  %1555 = vmatpush1.msra.mxu0 0.0
  %1556 = vmatprep.subr.mxu0 0.0
  %1557 = vmatpush1.msra.mxu0 0.0
  %1558 = vmatprep.mubr.f32.mxu0 0.0
  %1559 = vmatmul.mubr.f32.gmra.mrb[0].mxu0 %v1492
  %v1560 = vpop.f32.mrb[0].mxu0
  %v1561 = vadd.f32 0.0, %v1560
  %v1562 = vpop.f32.mrb[0].mxu0
  %1563 = vdwg.mxu0
  %1565 = vrot.lane.b32.xlu0 %v1488, 32
  %v1566 = vpop.permute.xlu0 %1565
  %v1567 = vsel %vm215, %v1566, 0
  %1569 = vmatprep.subr.mxu0 0.0
  %1570 = vmatpush1.msra.mxu0 %v39
  %1571 = vmatprep.subr.mxu0 0.0
  %1572 = vmatpush1.msra.mxu0 %v40
  %1573 = vmatprep.subr.mxu0 0.0
  %1574 = vmatpush1.msra.mxu0 %v41
  %1575 = vmatprep.subr.mxu0 0.0
  %1576 = vmatpush1.msra.mxu0 %v42
  %1577 = vmatprep.subr.mxu0 0.0
  %1578 = vmatpush1.msra.mxu0 0.0
  %1579 = vmatprep.subr.mxu0 0.0
  %1580 = vmatpush1.msra.mxu0 0.0
  %1581 = vmatprep.subr.mxu0 0.0
  %1582 = vmatpush1.msra.mxu0 0.0
  %1583 = vmatprep.subr.mxu0 0.0
  %1584 = vmatpush1.msra.mxu0 0.0
  %1585 = vmatprep.subr.mxu0 0.0
  %1586 = vmatpush1.msra.mxu0 0.0
  %1587 = vmatprep.subr.mxu0 0.0
  %1588 = vmatpush1.msra.mxu0 0.0
  %1589 = vmatprep.subr.mxu0 0.0
  %1590 = vmatpush1.msra.mxu0 0.0
  %1591 = vmatprep.subr.mxu0 0.0
  %1592 = vmatpush1.msra.mxu0 0.0
  %1593 = vmatprep.subr.mxu0 0.0
  %1594 = vmatpush1.msra.mxu0 0.0
  %1595 = vmatprep.subr.mxu0 0.0
  %1596 = vmatpush1.msra.mxu0 0.0
  %1597 = vmatprep.subr.mxu0 0.0
  %1598 = vmatpush1.msra.mxu0 0.0
  %1599 = vmatprep.subr.mxu0 0.0
  %1600 = vmatpush1.msra.mxu0 0.0
  %1601 = vmatprep.subr.mxu0 0.0
  %1602 = vmatpush1.msra.mxu0 0.0
  %1603 = vmatprep.subr.mxu0 0.0
  %1604 = vmatpush1.msra.mxu0 0.0
  %1605 = vmatprep.subr.mxu0 0.0
  %1606 = vmatpush1.msra.mxu0 0.0
  %1607 = vmatprep.subr.mxu0 0.0
  %1608 = vmatpush1.msra.mxu0 0.0
  %1609 = vmatprep.subr.mxu0 0.0
  %1610 = vmatpush1.msra.mxu0 0.0
  %1611 = vmatprep.subr.mxu0 0.0
  %1612 = vmatpush1.msra.mxu0 0.0
  %1613 = vmatprep.subr.mxu0 0.0
  %1614 = vmatpush1.msra.mxu0 0.0
  %1615 = vmatprep.subr.mxu0 0.0
  %1616 = vmatpush1.msra.mxu0 0.0
  %1617 = vmatprep.subr.mxu0 0.0
  %1618 = vmatpush1.msra.mxu0 0.0
  %1619 = vmatprep.subr.mxu0 0.0
  %1620 = vmatpush1.msra.mxu0 0.0
  %1621 = vmatprep.subr.mxu0 0.0
  %1622 = vmatpush1.msra.mxu0 0.0
  %1623 = vmatprep.subr.mxu0 0.0
  %1624 = vmatpush1.msra.mxu0 0.0
  %1625 = vmatprep.subr.mxu0 0.0
  %1626 = vmatpush1.msra.mxu0 0.0
  %1627 = vmatprep.subr.mxu0 0.0
  %1628 = vmatpush1.msra.mxu0 0.0
  %1629 = vmatprep.subr.mxu0 0.0
  %1630 = vmatpush1.msra.mxu0 0.0
  %1631 = vmatprep.subr.mxu0 0.0
  %1632 = vmatpush1.msra.mxu0 0.0
  %1633 = vmatprep.mubr.f32.mxu0 0.0
  %1634 = vmatmul.mubr.f32.gmra.mrb[0].mxu0 %v1567
  %v1635 = vpop.f32.mrb[0].mxu0
  %v1636 = vadd.f32 %v1561, %v1635
  %v1637 = vpop.f32.mrb[0].mxu0
  %1638 = vdwg.mxu0
  %v1639 = vadd.f32 %v1636, %v211
  %v1640 = vxor.u32 %v1639, 2147483648
  %v1641 = vmul.f32 %v1640, 1.442695
  %v1642 = vpow.pop %v1641
  %v1643 = vadd.f32 %v1642, 1.0
  %v1644 = vrcp.pop %v1643
  %v1645 = vmul.f32 1.0, %v1644
  %v1646 = vtanh.pop %v1639
  %v1647 = vmul.f32 %v1645, %v1387
  %1649 = vrot.lane.b32.xlu0 %v1646, 64
  %v1650 = vpop.permute.xlu0 %1649
  %v1652 = vmul.f32 %v1645, %v1650
  %1654 = vrot.lane.b32.xlu0 %v1652, 32
  %v1655 = vpop.permute.xlu0 %1654
  %v1657 = vadd.f32 %v1647, %v1655
  %v1658 = vtanh.pop %v1657
  %1660 = vrot.lane.b32.xlu0 %v1658, 64
  %v1661 = vpop.permute.xlu0 %1660
  %v1663 = vmul.f32 %v1645, %v1661
  %1664 = vmatprep.subr.mxu0 0.0
  %1665 = vmatpush1.msra.mxu0 %v34
  %1666 = vmatprep.subr.mxu0 0.0
  %1667 = vmatpush1.msra.mxu0 %v35
  %1668 = vmatprep.subr.mxu0 0.0
  %1669 = vmatpush1.msra.mxu0 %v36
  %1670 = vmatprep.subr.mxu0 0.0
  %1671 = vmatpush1.msra.mxu0 %v37
  %1672 = vmatprep.subr.mxu0 0.0
  %1673 = vmatpush1.msra.mxu0 0.0
  %1674 = vmatprep.subr.mxu0 0.0
  %1675 = vmatpush1.msra.mxu0 0.0
  %1676 = vmatprep.subr.mxu0 0.0
  %1677 = vmatpush1.msra.mxu0 0.0
  %1678 = vmatprep.subr.mxu0 0.0
  %1679 = vmatpush1.msra.mxu0 0.0
  %1680 = vmatprep.subr.mxu0 0.0
  %1681 = vmatpush1.msra.mxu0 0.0
  %1682 = vmatprep.subr.mxu0 0.0
  %1683 = vmatpush1.msra.mxu0 0.0
  %1684 = vmatprep.subr.mxu0 0.0
  %1685 = vmatpush1.msra.mxu0 0.0
  %1686 = vmatprep.subr.mxu0 0.0
  %1687 = vmatpush1.msra.mxu0 0.0
  %1688 = vmatprep.subr.mxu0 0.0
  %1689 = vmatpush1.msra.mxu0 0.0
  %1690 = vmatprep.subr.mxu0 0.0
  %1691 = vmatpush1.msra.mxu0 0.0
  %1692 = vmatprep.subr.mxu0 0.0
  %1693 = vmatpush1.msra.mxu0 0.0
  %1694 = vmatprep.subr.mxu0 0.0
  %1695 = vmatpush1.msra.mxu0 0.0
  %1696 = vmatprep.subr.mxu0 0.0
  %1697 = vmatpush1.msra.mxu0 0.0
  %1698 = vmatprep.subr.mxu0 0.0
  %1699 = vmatpush1.msra.mxu0 0.0
  %1700 = vmatprep.subr.mxu0 0.0
  %1701 = vmatpush1.msra.mxu0 0.0
  %1702 = vmatprep.subr.mxu0 0.0
  %1703 = vmatpush1.msra.mxu0 0.0
  %1704 = vmatprep.subr.mxu0 0.0
  %1705 = vmatpush1.msra.mxu0 0.0
  %1706 = vmatprep.subr.mxu0 0.0
  %1707 = vmatpush1.msra.mxu0 0.0
  %1708 = vmatprep.subr.mxu0 0.0
  %1709 = vmatpush1.msra.mxu0 0.0
  %1710 = vmatprep.subr.mxu0 0.0
  %1711 = vmatpush1.msra.mxu0 0.0
  %1712 = vmatprep.subr.mxu0 0.0
  %1713 = vmatpush1.msra.mxu0 0.0
  %1714 = vmatprep.subr.mxu0 0.0
  %1715 = vmatpush1.msra.mxu0 0.0
  %1716 = vmatprep.subr.mxu0 0.0
  %1717 = vmatpush1.msra.mxu0 0.0
  %1718 = vmatprep.subr.mxu0 0.0
  %1719 = vmatpush1.msra.mxu0 0.0
  %1720 = vmatprep.subr.mxu0 0.0
  %1721 = vmatpush1.msra.mxu0 0.0
  %1722 = vmatprep.subr.mxu0 0.0
  %1723 = vmatpush1.msra.mxu0 0.0
  %1724 = vmatprep.subr.mxu0 0.0
  %1725 = vmatpush1.msra.mxu0 0.0
  %1726 = vmatprep.subr.mxu0 0.0
  %1727 = vmatpush1.msra.mxu0 0.0
  %1728 = vmatprep.mubr.f32.mxu0 0.0
  %1729 = vmatmul.mubr.f32.gmra.mrb[0].mxu0 %v1567
  %v1730 = vpop.f32.mrb[0].mxu0
  %v1731 = vadd.f32 0.0, %v1730
  %v1732 = vpop.f32.mrb[0].mxu0
  %1733 = vdwg.mxu0
  %v1734 = vadd.f32 %v182, %v1731
  %v1735 = vxor.u32 %v1734, 2147483648
  %v1736 = vmul.f32 %v1735, 1.442695
  %v1737 = vpow.pop %v1736
  %v1738 = vadd.f32 %v1737, 1.0
  %v1739 = vrcp.pop %v1738
  %v1740 = vmul.f32 1.0, %v1739
  %v1741 = vtanh.pop %v1734
  %v1742 = vmul.f32 %v1740, %v1482
  %1744 = vrot.lane.b32.xlu0 %v1741, 64
  %v1745 = vpop.permute.xlu0 %1744
  %v1747 = vmul.f32 %v1740, %v1745
  %1749 = vrot.lane.b32.xlu0 %v1747, 32
  %v1750 = vpop.permute.xlu0 %1749
  %v1752 = vadd.f32 %v1742, %v1750
  %v1753 = vtanh.pop %v1752
  %1755 = vrot.lane.b32.xlu0 %v1753, 64
  %v1756 = vpop.permute.xlu0 %1755
  %v1758 = vmul.f32 %v1740, %v1756
  %1760 = vrot.lane.b32.xlu0 %v1663, 32
  %v1761 = vpop.permute.xlu0 %1760
  %v1762 = vsel %vm215, %v1761, 0
  %1764 = vmatprep.subr.mxu0 0.0
  %1765 = vmatpush1.msra.mxu0 %v43
  %1766 = vmatprep.subr.mxu0 0.0
  %1767 = vmatpush1.msra.mxu0 %v44
  %1768 = vmatprep.subr.mxu0 0.0
  %1769 = vmatpush1.msra.mxu0 %v45
  %1770 = vmatprep.subr.mxu0 0.0
  %1771 = vmatpush1.msra.mxu0 %v46
  %1772 = vmatprep.subr.mxu0 0.0
  %1773 = vmatpush1.msra.mxu0 0.0
  %1774 = vmatprep.subr.mxu0 0.0
  %1775 = vmatpush1.msra.mxu0 0.0
  %1776 = vmatprep.subr.mxu0 0.0
  %1777 = vmatpush1.msra.mxu0 0.0
  %1778 = vmatprep.subr.mxu0 0.0
  %1779 = vmatpush1.msra.mxu0 0.0
  %1780 = vmatprep.subr.mxu0 0.0
  %1781 = vmatpush1.msra.mxu0 0.0
  %1782 = vmatprep.subr.mxu0 0.0
  %1783 = vmatpush1.msra.mxu0 0.0
  %1784 = vmatprep.subr.mxu0 0.0
  %1785 = vmatpush1.msra.mxu0 0.0
  %1786 = vmatprep.subr.mxu0 0.0
  %1787 = vmatpush1.msra.mxu0 0.0
  %1788 = vmatprep.subr.mxu0 0.0
  %1789 = vmatpush1.msra.mxu0 0.0
  %1790 = vmatprep.subr.mxu0 0.0
  %1791 = vmatpush1.msra.mxu0 0.0
  %1792 = vmatprep.subr.mxu0 0.0
  %1793 = vmatpush1.msra.mxu0 0.0
  %1794 = vmatprep.subr.mxu0 0.0
  %1795 = vmatpush1.msra.mxu0 0.0
  %1796 = vmatprep.subr.mxu0 0.0
  %1797 = vmatpush1.msra.mxu0 0.0
  %1798 = vmatprep.subr.mxu0 0.0
  %1799 = vmatpush1.msra.mxu0 0.0
  %1800 = vmatprep.subr.mxu0 0.0
  %1801 = vmatpush1.msra.mxu0 0.0
  %1802 = vmatprep.subr.mxu0 0.0
  %1803 = vmatpush1.msra.mxu0 0.0
  %1804 = vmatprep.subr.mxu0 0.0
  %1805 = vmatpush1.msra.mxu0 0.0
  %1806 = vmatprep.subr.mxu0 0.0
  %1807 = vmatpush1.msra.mxu0 0.0
  %1808 = vmatprep.subr.mxu0 0.0
  %1809 = vmatpush1.msra.mxu0 0.0
  %1810 = vmatprep.subr.mxu0 0.0
  %1811 = vmatpush1.msra.mxu0 0.0
  %1812 = vmatprep.subr.mxu0 0.0
  %1813 = vmatpush1.msra.mxu0 0.0
  %1814 = vmatprep.subr.mxu0 0.0
  %1815 = vmatpush1.msra.mxu0 0.0
  %1816 = vmatprep.subr.mxu0 0.0
  %1817 = vmatpush1.msra.mxu0 0.0
  %1818 = vmatprep.subr.mxu0 0.0
  %1819 = vmatpush1.msra.mxu0 0.0
  %1820 = vmatprep.subr.mxu0 0.0
  %1821 = vmatpush1.msra.mxu0 0.0
  %1822 = vmatprep.subr.mxu0 0.0
  %1823 = vmatpush1.msra.mxu0 0.0
  %1824 = vmatprep.subr.mxu0 0.0
  %1825 = vmatpush1.msra.mxu0 0.0
  %1826 = vmatprep.subr.mxu0 0.0
  %1827 = vmatpush1.msra.mxu0 0.0
  %1828 = vmatprep.mubr.f32.mxu0 0.0
  %1829 = vmatmul.mubr.f32.gmra.mrb[0].mxu0 %v1762
  %v1830 = vpop.f32.mrb[0].mxu0
  %v1831 = vadd.f32 0.0, %v1830
  %v1832 = vpop.f32.mrb[0].mxu0
  %1833 = vdwg.mxu0
  %1835 = vrot.lane.b32.xlu0 %v1758, 32
  %v1836 = vpop.permute.xlu0 %1835
  %v1837 = vsel %vm215, %v1836, 0
  %1839 = vmatprep.subr.mxu0 0.0
  %1840 = vmatpush1.msra.mxu0 %v39
  %1841 = vmatprep.subr.mxu0 0.0
  %1842 = vmatpush1.msra.mxu0 %v40
  %1843 = vmatprep.subr.mxu0 0.0
  %1844 = vmatpush1.msra.mxu0 %v41
  %1845 = vmatprep.subr.mxu0 0.0
  %1846 = vmatpush1.msra.mxu0 %v42
  %1847 = vmatprep.subr.mxu0 0.0
  %1848 = vmatpush1.msra.mxu0 0.0
  %1849 = vmatprep.subr.mxu0 0.0
  %1850 = vmatpush1.msra.mxu0 0.0
  %1851 = vmatprep.subr.mxu0 0.0
  %1852 = vmatpush1.msra.mxu0 0.0
  %1853 = vmatprep.subr.mxu0 0.0
  %1854 = vmatpush1.msra.mxu0 0.0
  %1855 = vmatprep.subr.mxu0 0.0
  %1856 = vmatpush1.msra.mxu0 0.0
  %1857 = vmatprep.subr.mxu0 0.0
  %1858 = vmatpush1.msra.mxu0 0.0
  %1859 = vmatprep.subr.mxu0 0.0
  %1860 = vmatpush1.msra.mxu0 0.0
  %1861 = vmatprep.subr.mxu0 0.0
  %1862 = vmatpush1.msra.mxu0 0.0
  %1863 = vmatprep.subr.mxu0 0.0
  %1864 = vmatpush1.msra.mxu0 0.0
  %1865 = vmatprep.subr.mxu0 0.0
  %1866 = vmatpush1.msra.mxu0 0.0
  %1867 = vmatprep.subr.mxu0 0.0
  %1868 = vmatpush1.msra.mxu0 0.0
  %1869 = vmatprep.subr.mxu0 0.0
  %1870 = vmatpush1.msra.mxu0 0.0
  %1871 = vmatprep.subr.mxu0 0.0
  %1872 = vmatpush1.msra.mxu0 0.0
  %1873 = vmatprep.subr.mxu0 0.0
  %1874 = vmatpush1.msra.mxu0 0.0
  %1875 = vmatprep.subr.mxu0 0.0
  %1876 = vmatpush1.msra.mxu0 0.0
  %1877 = vmatprep.subr.mxu0 0.0
  %1878 = vmatpush1.msra.mxu0 0.0
  %1879 = vmatprep.subr.mxu0 0.0
  %1880 = vmatpush1.msra.mxu0 0.0
  %1881 = vmatprep.subr.mxu0 0.0
  %1882 = vmatpush1.msra.mxu0 0.0
  %1883 = vmatprep.subr.mxu0 0.0
  %1884 = vmatpush1.msra.mxu0 0.0
  %1885 = vmatprep.subr.mxu0 0.0
  %1886 = vmatpush1.msra.mxu0 0.0
  %1887 = vmatprep.subr.mxu0 0.0
  %1888 = vmatpush1.msra.mxu0 0.0
  %1889 = vmatprep.subr.mxu0 0.0
  %1890 = vmatpush1.msra.mxu0 0.0
  %1891 = vmatprep.subr.mxu0 0.0
  %1892 = vmatpush1.msra.mxu0 0.0
  %1893 = vmatprep.subr.mxu0 0.0
  %1894 = vmatpush1.msra.mxu0 0.0
  %1895 = vmatprep.subr.mxu0 0.0
  %1896 = vmatpush1.msra.mxu0 0.0
  %1897 = vmatprep.subr.mxu0 0.0
  %1898 = vmatpush1.msra.mxu0 0.0
  %1899 = vmatprep.subr.mxu0 0.0
  %1900 = vmatpush1.msra.mxu0 0.0
  %1901 = vmatprep.subr.mxu0 0.0
  %1902 = vmatpush1.msra.mxu0 0.0
  %1903 = vmatprep.mubr.f32.mxu0 0.0
  %1904 = vmatmul.mubr.f32.gmra.mrb[0].mxu0 %v1837
  %v1905 = vpop.f32.mrb[0].mxu0
  %v1906 = vadd.f32 %v1831, %v1905
  %v1907 = vpop.f32.mrb[0].mxu0
  %1908 = vdwg.mxu0
  %v1909 = vadd.f32 %v1906, %v211
  %v1910 = vxor.u32 %v1909, 2147483648
  %v1911 = vmul.f32 %v1910, 1.442695
  %v1912 = vpow.pop %v1911
  %v1913 = vadd.f32 %v1912, 1.0
  %v1914 = vrcp.pop %v1913
  %v1915 = vmul.f32 1.0, %v1914
  %v1916 = vtanh.pop %v1909
  %v1917 = vmul.f32 %v1915, %v1657
  %1919 = vrot.lane.b32.xlu0 %v1916, 64
  %v1920 = vpop.permute.xlu0 %1919
  %v1922 = vmul.f32 %v1915, %v1920
  %1924 = vrot.lane.b32.xlu0 %v1922, 32
  %v1925 = vpop.permute.xlu0 %1924
  %v1927 = vadd.f32 %v1917, %v1925
  %v1928 = vtanh.pop %v1927
  %1930 = vrot.lane.b32.xlu0 %v1928, 64
  %v1931 = vpop.permute.xlu0 %1930
  %v1933 = vmul.f32 %v1915, %v1931
  %1934 = vmatprep.subr.mxu0 0.0
  %1935 = vmatpush1.msra.mxu0 %v34
  %1936 = vmatprep.subr.mxu0 0.0
  %1937 = vmatpush1.msra.mxu0 %v35
  %1938 = vmatprep.subr.mxu0 0.0
  %1939 = vmatpush1.msra.mxu0 %v36
  %1940 = vmatprep.subr.mxu0 0.0
  %1941 = vmatpush1.msra.mxu0 %v37
  %1942 = vmatprep.subr.mxu0 0.0
  %1943 = vmatpush1.msra.mxu0 0.0
  %1944 = vmatprep.subr.mxu0 0.0
  %1945 = vmatpush1.msra.mxu0 0.0
  %1946 = vmatprep.subr.mxu0 0.0
  %1947 = vmatpush1.msra.mxu0 0.0
  %1948 = vmatprep.subr.mxu0 0.0
  %1949 = vmatpush1.msra.mxu0 0.0
  %1950 = vmatprep.subr.mxu0 0.0
  %1951 = vmatpush1.msra.mxu0 0.0
  %1952 = vmatprep.subr.mxu0 0.0
  %1953 = vmatpush1.msra.mxu0 0.0
  %1954 = vmatprep.subr.mxu0 0.0
  %1955 = vmatpush1.msra.mxu0 0.0
  %1956 = vmatprep.subr.mxu0 0.0
  %1957 = vmatpush1.msra.mxu0 0.0
  %1958 = vmatprep.subr.mxu0 0.0
  %1959 = vmatpush1.msra.mxu0 0.0
  %1960 = vmatprep.subr.mxu0 0.0
  %1961 = vmatpush1.msra.mxu0 0.0
  %1962 = vmatprep.subr.mxu0 0.0
  %1963 = vmatpush1.msra.mxu0 0.0
  %1964 = vmatprep.subr.mxu0 0.0
  %1965 = vmatpush1.msra.mxu0 0.0
  %1966 = vmatprep.subr.mxu0 0.0
  %1967 = vmatpush1.msra.mxu0 0.0
  %1968 = vmatprep.subr.mxu0 0.0
  %1969 = vmatpush1.msra.mxu0 0.0
  %1970 = vmatprep.subr.mxu0 0.0
  %1971 = vmatpush1.msra.mxu0 0.0
  %1972 = vmatprep.subr.mxu0 0.0
  %1973 = vmatpush1.msra.mxu0 0.0
  %1974 = vmatprep.subr.mxu0 0.0
  %1975 = vmatpush1.msra.mxu0 0.0
  %1976 = vmatprep.subr.mxu0 0.0
  %1977 = vmatpush1.msra.mxu0 0.0
  %1978 = vmatprep.subr.mxu0 0.0
  %1979 = vmatpush1.msra.mxu0 0.0
  %1980 = vmatprep.subr.mxu0 0.0
  %1981 = vmatpush1.msra.mxu0 0.0
  %1982 = vmatprep.subr.mxu0 0.0
  %1983 = vmatpush1.msra.mxu0 0.0
  %1984 = vmatprep.subr.mxu0 0.0
  %1985 = vmatpush1.msra.mxu0 0.0
  %1986 = vmatprep.subr.mxu0 0.0
  %1987 = vmatpush1.msra.mxu0 0.0
  %1988 = vmatprep.subr.mxu0 0.0
  %1989 = vmatpush1.msra.mxu0 0.0
  %1990 = vmatprep.subr.mxu0 0.0
  %1991 = vmatpush1.msra.mxu0 0.0
  %1992 = vmatprep.subr.mxu0 0.0
  %1993 = vmatpush1.msra.mxu0 0.0
  %1994 = vmatprep.subr.mxu0 0.0
  %1995 = vmatpush1.msra.mxu0 0.0
  %1996 = vmatprep.subr.mxu0 0.0
  %1997 = vmatpush1.msra.mxu0 0.0
  %1998 = vmatprep.mubr.f32.mxu0 0.0
  %1999 = vmatmul.mubr.f32.gmra.mrb[0].mxu0 %v1837
  %v2000 = vpop.f32.mrb[0].mxu0
  %v2001 = vadd.f32 0.0, %v2000
  %v2002 = vpop.f32.mrb[0].mxu0
  %2003 = vdwg.mxu0
  %v2004 = vadd.f32 %v187, %v2001
  %v2005 = vxor.u32 %v2004, 2147483648
  %v2006 = vmul.f32 %v2005, 1.442695
  %v2007 = vpow.pop %v2006
  %v2008 = vadd.f32 %v2007, 1.0
  %v2009 = vrcp.pop %v2008
  %v2010 = vmul.f32 1.0, %v2009
  %v2011 = vtanh.pop %v2004
  %v2012 = vmul.f32 %v2010, %v1752
  %2014 = vrot.lane.b32.xlu0 %v2011, 64
  %v2015 = vpop.permute.xlu0 %2014
  %v2017 = vmul.f32 %v2010, %v2015
  %2019 = vrot.lane.b32.xlu0 %v2017, 32
  %v2020 = vpop.permute.xlu0 %2019
  %v2022 = vadd.f32 %v2012, %v2020
  %v2023 = vtanh.pop %v2022
  %2025 = vrot.lane.b32.xlu0 %v2023, 64
  %v2026 = vpop.permute.xlu0 %2025
  %v2028 = vmul.f32 %v2010, %v2026
  %2030 = vrot.lane.b32.xlu0 %v1933, 32
  %v2031 = vpop.permute.xlu0 %2030
  %v2032 = vsel %vm215, %v2031, 0
  %2034 = vmatprep.subr.mxu0 0.0
  %2035 = vmatpush1.msra.mxu0 %v43
  %2036 = vmatprep.subr.mxu0 0.0
  %2037 = vmatpush1.msra.mxu0 %v44
  %2038 = vmatprep.subr.mxu0 0.0
  %2039 = vmatpush1.msra.mxu0 %v45
  %2040 = vmatprep.subr.mxu0 0.0
  %2041 = vmatpush1.msra.mxu0 %v46
  %2042 = vmatprep.subr.mxu0 0.0
  %2043 = vmatpush1.msra.mxu0 0.0
  %2044 = vmatprep.subr.mxu0 0.0
  %2045 = vmatpush1.msra.mxu0 0.0
  %2046 = vmatprep.subr.mxu0 0.0
  %2047 = vmatpush1.msra.mxu0 0.0
  %2048 = vmatprep.subr.mxu0 0.0
  %2049 = vmatpush1.msra.mxu0 0.0
  %2050 = vmatprep.subr.mxu0 0.0
  %2051 = vmatpush1.msra.mxu0 0.0
  %2052 = vmatprep.subr.mxu0 0.0
  %2053 = vmatpush1.msra.mxu0 0.0
  %2054 = vmatprep.subr.mxu0 0.0
  %2055 = vmatpush1.msra.mxu0 0.0
  %2056 = vmatprep.subr.mxu0 0.0
  %2057 = vmatpush1.msra.mxu0 0.0
  %2058 = vmatprep.subr.mxu0 0.0
  %2059 = vmatpush1.msra.mxu0 0.0
  %2060 = vmatprep.subr.mxu0 0.0
  %2061 = vmatpush1.msra.mxu0 0.0
  %2062 = vmatprep.subr.mxu0 0.0
  %2063 = vmatpush1.msra.mxu0 0.0
  %2064 = vmatprep.subr.mxu0 0.0
  %2065 = vmatpush1.msra.mxu0 0.0
  %2066 = vmatprep.subr.mxu0 0.0
  %2067 = vmatpush1.msra.mxu0 0.0
  %2068 = vmatprep.subr.mxu0 0.0
  %2069 = vmatpush1.msra.mxu0 0.0
  %2070 = vmatprep.subr.mxu0 0.0
  %2071 = vmatpush1.msra.mxu0 0.0
  %2072 = vmatprep.subr.mxu0 0.0
  %2073 = vmatpush1.msra.mxu0 0.0
  %2074 = vmatprep.subr.mxu0 0.0
  %2075 = vmatpush1.msra.mxu0 0.0
  %2076 = vmatprep.subr.mxu0 0.0
  %2077 = vmatpush1.msra.mxu0 0.0
  %2078 = vmatprep.subr.mxu0 0.0
  %2079 = vmatpush1.msra.mxu0 0.0
  %2080 = vmatprep.subr.mxu0 0.0
  %2081 = vmatpush1.msra.mxu0 0.0
  %2082 = vmatprep.subr.mxu0 0.0
  %2083 = vmatpush1.msra.mxu0 0.0
  %2084 = vmatprep.subr.mxu0 0.0
  %2085 = vmatpush1.msra.mxu0 0.0
  %2086 = vmatprep.subr.mxu0 0.0
  %2087 = vmatpush1.msra.mxu0 0.0
  %2088 = vmatprep.subr.mxu0 0.0
  %2089 = vmatpush1.msra.mxu0 0.0
  %2090 = vmatprep.subr.mxu0 0.0
  %2091 = vmatpush1.msra.mxu0 0.0
  %2092 = vmatprep.subr.mxu0 0.0
  %2093 = vmatpush1.msra.mxu0 0.0
  %2094 = vmatprep.subr.mxu0 0.0
  %2095 = vmatpush1.msra.mxu0 0.0
  %2096 = vmatprep.subr.mxu0 0.0
  %2097 = vmatpush1.msra.mxu0 0.0
  %2098 = vmatprep.mubr.f32.mxu0 0.0
  %2099 = vmatmul.mubr.f32.gmra.mrb[0].mxu0 %v2032
  %v2100 = vpop.f32.mrb[0].mxu0
  %v2101 = vadd.f32 0.0, %v2100
  %v2102 = vpop.f32.mrb[0].mxu0
  %2103 = vdwg.mxu0
  %2105 = vrot.lane.b32.xlu0 %v2028, 32
  %v2106 = vpop.permute.xlu0 %2105
  %v2107 = vsel %vm215, %v2106, 0
  %2109 = vmatprep.subr.mxu0 0.0
  %2110 = vmatpush1.msra.mxu0 %v39
  %2111 = vmatprep.subr.mxu0 0.0
  %2112 = vmatpush1.msra.mxu0 %v40
  %2113 = vmatprep.subr.mxu0 0.0
  %2114 = vmatpush1.msra.mxu0 %v41
  %2115 = vmatprep.subr.mxu0 0.0
  %2116 = vmatpush1.msra.mxu0 %v42
  %2117 = vmatprep.subr.mxu0 0.0
  %2118 = vmatpush1.msra.mxu0 0.0
  %2119 = vmatprep.subr.mxu0 0.0
  %2120 = vmatpush1.msra.mxu0 0.0
  %2121 = vmatprep.subr.mxu0 0.0
  %2122 = vmatpush1.msra.mxu0 0.0
  %2123 = vmatprep.subr.mxu0 0.0
  %2124 = vmatpush1.msra.mxu0 0.0
  %2125 = vmatprep.subr.mxu0 0.0
  %2126 = vmatpush1.msra.mxu0 0.0
  %2127 = vmatprep.subr.mxu0 0.0
  %2128 = vmatpush1.msra.mxu0 0.0
  %2129 = vmatprep.subr.mxu0 0.0
  %2130 = vmatpush1.msra.mxu0 0.0
  %2131 = vmatprep.subr.mxu0 0.0
  %2132 = vmatpush1.msra.mxu0 0.0
  %2133 = vmatprep.subr.mxu0 0.0
  %2134 = vmatpush1.msra.mxu0 0.0
  %2135 = vmatprep.subr.mxu0 0.0
  %2136 = vmatpush1.msra.mxu0 0.0
  %2137 = vmatprep.subr.mxu0 0.0
  %2138 = vmatpush1.msra.mxu0 0.0
  %2139 = vmatprep.subr.mxu0 0.0
  %2140 = vmatpush1.msra.mxu0 0.0
  %2141 = vmatprep.subr.mxu0 0.0
  %2142 = vmatpush1.msra.mxu0 0.0
  %2143 = vmatprep.subr.mxu0 0.0
  %2144 = vmatpush1.msra.mxu0 0.0
  %2145 = vmatprep.subr.mxu0 0.0
  %2146 = vmatpush1.msra.mxu0 0.0
  %2147 = vmatprep.subr.mxu0 0.0
  %2148 = vmatpush1.msra.mxu0 0.0
  %2149 = vmatprep.subr.mxu0 0.0
  %2150 = vmatpush1.msra.mxu0 0.0
  %2151 = vmatprep.subr.mxu0 0.0
  %2152 = vmatpush1.msra.mxu0 0.0
  %2153 = vmatprep.subr.mxu0 0.0
  %2154 = vmatpush1.msra.mxu0 0.0
  %2155 = vmatprep.subr.mxu0 0.0
  %2156 = vmatpush1.msra.mxu0 0.0
  %2157 = vmatprep.subr.mxu0 0.0
  %2158 = vmatpush1.msra.mxu0 0.0
  %2159 = vmatprep.subr.mxu0 0.0
  %2160 = vmatpush1.msra.mxu0 0.0
  %2161 = vmatprep.subr.mxu0 0.0
  %2162 = vmatpush1.msra.mxu0 0.0
  %2163 = vmatprep.subr.mxu0 0.0
  %2164 = vmatpush1.msra.mxu0 0.0
  %2165 = vmatprep.subr.mxu0 0.0
  %2166 = vmatpush1.msra.mxu0 0.0
  %2167 = vmatprep.subr.mxu0 0.0
  %2168 = vmatpush1.msra.mxu0 0.0
  %2169 = vmatprep.subr.mxu0 0.0
  %2170 = vmatpush1.msra.mxu0 0.0
  %2171 = vmatprep.subr.mxu0 0.0
  %2172 = vmatpush1.msra.mxu0 0.0
  %2173 = vmatprep.mubr.f32.mxu0 0.0
  %2174 = vmatmul.mubr.f32.gmra.mrb[0].mxu0 %v2107
  %v2175 = vpop.f32.mrb[0].mxu0
  %v2176 = vadd.f32 %v2101, %v2175
  %v2177 = vpop.f32.mrb[0].mxu0
  %2178 = vdwg.mxu0
  %v2179 = vadd.f32 %v2176, %v211
  %v2180 = vxor.u32 %v2179, 2147483648
  %v2181 = vmul.f32 %v2180, 1.442695
  %v2182 = vpow.pop %v2181
  %v2183 = vadd.f32 %v2182, 1.0
  %v2184 = vrcp.pop %v2183
  %v2185 = vmul.f32 1.0, %v2184
  %v2186 = vtanh.pop %v2179
  %v2187 = vmul.f32 %v2185, %v1927
  %2189 = vrot.lane.b32.xlu0 %v2186, 64
  %v2190 = vpop.permute.xlu0 %2189
  %v2192 = vmul.f32 %v2185, %v2190
  %2194 = vrot.lane.b32.xlu0 %v2192, 32
  %v2195 = vpop.permute.xlu0 %2194
  %v2197 = vadd.f32 %v2187, %v2195
  %v2198 = vtanh.pop %v2197
  %2200 = vrot.lane.b32.xlu0 %v2198, 64
  %v2201 = vpop.permute.xlu0 %2200
  %v2203 = vmul.f32 %v2185, %v2201
  %v2204 = vld [vmem:[%s5] sm:$0xff]
  %v2205 = vld [vmem:[%s5 + $0x8] sm:$0xff]
  %v2206 = vld [vmem:[%s5 + $0x10] sm:$0xff]
  %v2207 = vld [vmem:[%s5 + $0x18] sm:$0xff]
  %v2208 = vld [vmem:[%s5 + $0x20] sm:$0xff]
  %v2209 = vld [vmem:[%s5 + $0x28] sm:$0xff]
  %v2210 = vld [vmem:[%s5 + $0x30] sm:$0xff]
  %v2211 = vld [vmem:[%s5 + $0x38] sm:$0xff]
  %v2212 = vld [vmem:[%s5 + $0x40] sm:$0xff]
  %v2213 = vld [vmem:[%s5 + $0x48] sm:$0xff]
  %v2214 = vld [vmem:[%s5 + $0x50] sm:$0xff]
  %v2215 = vld [vmem:[%s5 + $0x58] sm:$0xff]
  %v2216 = vld [vmem:[%s5 + $0x60] sm:$0xff]
  %v2217 = vld [vmem:[%s5 + $0x68] sm:$0xff]
  %v2218 = vld [vmem:[%s5 + $0x70] sm:$0xff]
  %v2219 = vld [vmem:[%s5 + $0x78] sm:$0xff]
  %v2220 = vld [vmem:[%s5 + $0x80] sm:$0xff]
  %v2221 = vld [vmem:[%s5 + $0x88] sm:$0xff]
  %v2222 = vld [vmem:[%s5 + $0x90] sm:$0xff]
  %v2223 = vld [vmem:[%s5 + $0x98] sm:$0xff]
  %v2224 = vld [vmem:[%s5 + $0xa0] sm:$0xff]
  %v2225 = vld [vmem:[%s5 + $0xa8] sm:$0xff]
  %v2226 = vld [vmem:[%s5 + $0xb0] sm:$0xff]
  %v2227 = vld [vmem:[%s5 + $0xb8] sm:$0xff]
  %s2228 = scalar_lea.vmem %s5, 192
  %v2229 = vld [vmem:[%s2228] ss:$8 sm:$0x7]
  %v2230 = vld [vmem:[%s1] sm:$0xff]
  %v2232 = vsel %vm215, %v2230, 0
  %2234 = vmatprep.subr.mxu0 %v2217
  %2235 = vmatpush1.msra.mxu0 %v2216
  %2236 = vmatprep.subr.mxu0 %v2220
  %2237 = vmatpush1.msra.mxu0 %v2219
  %2238 = vmatprep.subr.mxu0 %v2223
  %2239 = vmatpush1.msra.mxu0 %v2222
  %2240 = vmatprep.subr.mxu0 %v2226
  %2241 = vmatpush1.msra.mxu0 %v2225
  %2242 = vmatprep.subr.mxu0 0.0
  %2243 = vmatpush1.msra.mxu0 0.0
  %2244 = vmatprep.subr.mxu0 0.0
  %2245 = vmatpush1.msra.mxu0 0.0
  %2246 = vmatprep.subr.mxu0 0.0
  %2247 = vmatpush1.msra.mxu0 0.0
  %2248 = vmatprep.subr.mxu0 0.0
  %2249 = vmatpush1.msra.mxu0 0.0
  %2250 = vmatprep.subr.mxu0 0.0
  %2251 = vmatpush1.msra.mxu0 0.0
  %2252 = vmatprep.subr.mxu0 0.0
  %2253 = vmatpush1.msra.mxu0 0.0
  %2254 = vmatprep.subr.mxu0 0.0
  %2255 = vmatpush1.msra.mxu0 0.0
  %2256 = vmatprep.subr.mxu0 0.0
  %2257 = vmatpush1.msra.mxu0 0.0
  %2258 = vmatprep.subr.mxu0 0.0
  %2259 = vmatpush1.msra.mxu0 0.0
  %2260 = vmatprep.subr.mxu0 0.0
  %2261 = vmatpush1.msra.mxu0 0.0
  %2262 = vmatprep.subr.mxu0 0.0
  %2263 = vmatpush1.msra.mxu0 0.0
  %2264 = vmatprep.subr.mxu0 0.0
  %2265 = vmatpush1.msra.mxu0 0.0
  %2266 = vmatprep.subr.mxu0 0.0
  %2267 = vmatpush1.msra.mxu0 0.0
  %2268 = vmatprep.subr.mxu0 0.0
  %2269 = vmatpush1.msra.mxu0 0.0
  %2270 = vmatprep.subr.mxu0 0.0
  %2271 = vmatpush1.msra.mxu0 0.0
  %2272 = vmatprep.subr.mxu0 0.0
  %2273 = vmatpush1.msra.mxu0 0.0
  %2274 = vmatprep.subr.mxu0 0.0
  %2275 = vmatpush1.msra.mxu0 0.0
  %2276 = vmatprep.subr.mxu0 0.0
  %2277 = vmatpush1.msra.mxu0 0.0
  %2278 = vmatprep.subr.mxu0 0.0
  %2279 = vmatpush1.msra.mxu0 0.0
  %2280 = vmatprep.subr.mxu0 0.0
  %2281 = vmatpush1.msra.mxu0 0.0
  %2282 = vmatprep.subr.mxu0 0.0
  %2283 = vmatpush1.msra.mxu0 0.0
  %2284 = vmatprep.subr.mxu0 0.0
  %2285 = vmatpush1.msra.mxu0 0.0
  %2286 = vmatprep.subr.mxu0 0.0
  %2287 = vmatpush1.msra.mxu0 0.0
  %2288 = vmatprep.subr.mxu0 0.0
  %2289 = vmatpush1.msra.mxu0 0.0
  %2290 = vmatprep.subr.mxu0 0.0
  %2291 = vmatpush1.msra.mxu0 0.0
  %2292 = vmatprep.subr.mxu0 0.0
  %2293 = vmatpush1.msra.mxu0 0.0
  %2294 = vmatprep.subr.mxu0 0.0
  %2295 = vmatpush1.msra.mxu0 0.0
  %2296 = vmatprep.subr.mxu0 0.0
  %2297 = vmatpush1.msra.mxu0 0.0
  %2298 = vmatprep.mubr.f32.mxu0 0.0
  %2299 = vmatmul.mubr.f32.gmra.mrb[0].mxu0 %v2232
  %v2300 = vpop.f32.mrb[0].mxu0
  %v2301 = vadd.f32 0.0, %v2300
  %v2302 = vpop.f32.mrb[0].mxu0
  %v2303 = vadd.f32 0.0, %v2302
  %2304 = vdwg.mxu0
  %2305 = vmatprep.subr.mxu0 0.0
  %2306 = vmatpush1.msra.mxu0 %v2218
  %2307 = vmatprep.subr.mxu0 0.0
  %2308 = vmatpush1.msra.mxu0 %v2221
  %2309 = vmatprep.subr.mxu0 0.0
  %2310 = vmatpush1.msra.mxu0 %v2224
  %2311 = vmatprep.subr.mxu0 0.0
  %2312 = vmatpush1.msra.mxu0 %v2227
  %2313 = vmatprep.subr.mxu0 0.0
  %2314 = vmatpush1.msra.mxu0 0.0
  %2315 = vmatprep.subr.mxu0 0.0
  %2316 = vmatpush1.msra.mxu0 0.0
  %2317 = vmatprep.subr.mxu0 0.0
  %2318 = vmatpush1.msra.mxu0 0.0
  %2319 = vmatprep.subr.mxu0 0.0
  %2320 = vmatpush1.msra.mxu0 0.0
  %2321 = vmatprep.subr.mxu0 0.0
  %2322 = vmatpush1.msra.mxu0 0.0
  %2323 = vmatprep.subr.mxu0 0.0
  %2324 = vmatpush1.msra.mxu0 0.0
  %2325 = vmatprep.subr.mxu0 0.0
  %2326 = vmatpush1.msra.mxu0 0.0
  %2327 = vmatprep.subr.mxu0 0.0
  %2328 = vmatpush1.msra.mxu0 0.0
  %2329 = vmatprep.subr.mxu0 0.0
  %2330 = vmatpush1.msra.mxu0 0.0
  %2331 = vmatprep.subr.mxu0 0.0
  %2332 = vmatpush1.msra.mxu0 0.0
  %2333 = vmatprep.subr.mxu0 0.0
  %2334 = vmatpush1.msra.mxu0 0.0
  %2335 = vmatprep.subr.mxu0 0.0
  %2336 = vmatpush1.msra.mxu0 0.0
  %2337 = vmatprep.subr.mxu0 0.0
  %2338 = vmatpush1.msra.mxu0 0.0
  %2339 = vmatprep.subr.mxu0 0.0
  %2340 = vmatpush1.msra.mxu0 0.0
  %2341 = vmatprep.subr.mxu0 0.0
  %2342 = vmatpush1.msra.mxu0 0.0
  %2343 = vmatprep.subr.mxu0 0.0
  %2344 = vmatpush1.msra.mxu0 0.0
  %2345 = vmatprep.subr.mxu0 0.0
  %2346 = vmatpush1.msra.mxu0 0.0
  %2347 = vmatprep.subr.mxu0 0.0
  %2348 = vmatpush1.msra.mxu0 0.0
  %2349 = vmatprep.subr.mxu0 0.0
  %2350 = vmatpush1.msra.mxu0 0.0
  %2351 = vmatprep.subr.mxu0 0.0
  %2352 = vmatpush1.msra.mxu0 0.0
  %2353 = vmatprep.subr.mxu0 0.0
  %2354 = vmatpush1.msra.mxu0 0.0
  %2355 = vmatprep.subr.mxu0 0.0
  %2356 = vmatpush1.msra.mxu0 0.0
  %2357 = vmatprep.subr.mxu0 0.0
  %2358 = vmatpush1.msra.mxu0 0.0
  %2359 = vmatprep.subr.mxu0 0.0
  %2360 = vmatpush1.msra.mxu0 0.0
  %2361 = vmatprep.subr.mxu0 0.0
  %2362 = vmatpush1.msra.mxu0 0.0
  %2363 = vmatprep.subr.mxu0 0.0
  %2364 = vmatpush1.msra.mxu0 0.0
  %2365 = vmatprep.subr.mxu0 0.0
  %2366 = vmatpush1.msra.mxu0 0.0
  %2367 = vmatprep.subr.mxu0 0.0
  %2368 = vmatpush1.msra.mxu0 0.0
  %2369 = vmatprep.mubr.f32.mxu0 0.0
  %2370 = vmatmul.mubr.f32.gmra.mrb[0].mxu0 %v2232
  %v2371 = vpop.f32.mrb[0].mxu0
  %v2372 = vadd.f32 0.0, %v2371
  %v2373 = vpop.f32.mrb[0].mxu0
  %2374 = vdwg.mxu0
  %2376 = vrot.lane.b32.xlu0 %v2203, 32
  %v2377 = vpop.permute.xlu0 %2376
  %v2378 = vsel %vm215, %v2377, 0
  %2380 = vmatprep.subr.mxu0 %v2205
  %2381 = vmatpush1.msra.mxu0 %v2204
  %2382 = vmatprep.subr.mxu0 %v2208
  %2383 = vmatpush1.msra.mxu0 %v2207
  %2384 = vmatprep.subr.mxu0 %v2211
  %2385 = vmatpush1.msra.mxu0 %v2210
  %2386 = vmatprep.subr.mxu0 %v2214
  %2387 = vmatpush1.msra.mxu0 %v2213
  %2388 = vmatprep.subr.mxu0 0.0
  %2389 = vmatpush1.msra.mxu0 0.0
  %2390 = vmatprep.subr.mxu0 0.0
  %2391 = vmatpush1.msra.mxu0 0.0
  %2392 = vmatprep.subr.mxu0 0.0
  %2393 = vmatpush1.msra.mxu0 0.0
  %2394 = vmatprep.subr.mxu0 0.0
  %2395 = vmatpush1.msra.mxu0 0.0
  %2396 = vmatprep.subr.mxu0 0.0
  %2397 = vmatpush1.msra.mxu0 0.0
  %2398 = vmatprep.subr.mxu0 0.0
  %2399 = vmatpush1.msra.mxu0 0.0
  %2400 = vmatprep.subr.mxu0 0.0
  %2401 = vmatpush1.msra.mxu0 0.0
  %2402 = vmatprep.subr.mxu0 0.0
  %2403 = vmatpush1.msra.mxu0 0.0
  %2404 = vmatprep.subr.mxu0 0.0
  %2405 = vmatpush1.msra.mxu0 0.0
  %2406 = vmatprep.subr.mxu0 0.0
  %2407 = vmatpush1.msra.mxu0 0.0
  %2408 = vmatprep.subr.mxu0 0.0
  %2409 = vmatpush1.msra.mxu0 0.0
  %2410 = vmatprep.subr.mxu0 0.0
  %2411 = vmatpush1.msra.mxu0 0.0
  %2412 = vmatprep.subr.mxu0 0.0
  %2413 = vmatpush1.msra.mxu0 0.0
  %2414 = vmatprep.subr.mxu0 0.0
  %2415 = vmatpush1.msra.mxu0 0.0
  %2416 = vmatprep.subr.mxu0 0.0
  %2417 = vmatpush1.msra.mxu0 0.0
  %2418 = vmatprep.subr.mxu0 0.0
  %2419 = vmatpush1.msra.mxu0 0.0
  %2420 = vmatprep.subr.mxu0 0.0
  %2421 = vmatpush1.msra.mxu0 0.0
  %2422 = vmatprep.subr.mxu0 0.0
  %2423 = vmatpush1.msra.mxu0 0.0
  %2424 = vmatprep.subr.mxu0 0.0
  %2425 = vmatpush1.msra.mxu0 0.0
  %2426 = vmatprep.subr.mxu0 0.0
  %2427 = vmatpush1.msra.mxu0 0.0
  %2428 = vmatprep.subr.mxu0 0.0
  %2429 = vmatpush1.msra.mxu0 0.0
  %2430 = vmatprep.subr.mxu0 0.0
  %2431 = vmatpush1.msra.mxu0 0.0
  %2432 = vmatprep.subr.mxu0 0.0
  %2433 = vmatpush1.msra.mxu0 0.0
  %2434 = vmatprep.subr.mxu0 0.0
  %2435 = vmatpush1.msra.mxu0 0.0
  %2436 = vmatprep.subr.mxu0 0.0
  %2437 = vmatpush1.msra.mxu0 0.0
  %2438 = vmatprep.subr.mxu0 0.0
  %2439 = vmatpush1.msra.mxu0 0.0
  %2440 = vmatprep.subr.mxu0 0.0
  %2441 = vmatpush1.msra.mxu0 0.0
  %2442 = vmatprep.subr.mxu0 0.0
  %2443 = vmatpush1.msra.mxu0 0.0
  %2444 = vmatprep.mubr.f32.mxu0 0.0
  %2445 = vmatmul.mubr.f32.gmra.mrb[0].mxu0 %v2378
  %v2446 = vpop.f32.mrb[0].mxu0
  %v2447 = vadd.f32 %v2301, %v2446
  %v2448 = vpop.f32.mrb[0].mxu0
  %v2449 = vadd.f32 %v2303, %v2448
  %2450 = vdwg.mxu0
  %2451 = vmatprep.subr.mxu0 0.0
  %2452 = vmatpush1.msra.mxu0 %v2206
  %2453 = vmatprep.subr.mxu0 0.0
  %2454 = vmatpush1.msra.mxu0 %v2209
  %2455 = vmatprep.subr.mxu0 0.0
  %2456 = vmatpush1.msra.mxu0 %v2212
  %2457 = vmatprep.subr.mxu0 0.0
  %2458 = vmatpush1.msra.mxu0 %v2215
  %2459 = vmatprep.subr.mxu0 0.0
  %2460 = vmatpush1.msra.mxu0 0.0
  %2461 = vmatprep.subr.mxu0 0.0
  %2462 = vmatpush1.msra.mxu0 0.0
  %2463 = vmatprep.subr.mxu0 0.0
  %2464 = vmatpush1.msra.mxu0 0.0
  %2465 = vmatprep.subr.mxu0 0.0
  %2466 = vmatpush1.msra.mxu0 0.0
  %2467 = vmatprep.subr.mxu0 0.0
  %2468 = vmatpush1.msra.mxu0 0.0
  %2469 = vmatprep.subr.mxu0 0.0
  %2470 = vmatpush1.msra.mxu0 0.0
  %2471 = vmatprep.subr.mxu0 0.0
  %2472 = vmatpush1.msra.mxu0 0.0
  %2473 = vmatprep.subr.mxu0 0.0
  %2474 = vmatpush1.msra.mxu0 0.0
  %2475 = vmatprep.subr.mxu0 0.0
  %2476 = vmatpush1.msra.mxu0 0.0
  %2477 = vmatprep.subr.mxu0 0.0
  %2478 = vmatpush1.msra.mxu0 0.0
  %2479 = vmatprep.subr.mxu0 0.0
  %2480 = vmatpush1.msra.mxu0 0.0
  %2481 = vmatprep.subr.mxu0 0.0
  %2482 = vmatpush1.msra.mxu0 0.0
  %2483 = vmatprep.subr.mxu0 0.0
  %2484 = vmatpush1.msra.mxu0 0.0
  %2485 = vmatprep.subr.mxu0 0.0
  %2486 = vmatpush1.msra.mxu0 0.0
  %2487 = vmatprep.subr.mxu0 0.0
  %2488 = vmatpush1.msra.mxu0 0.0
  %2489 = vmatprep.subr.mxu0 0.0
  %2490 = vmatpush1.msra.mxu0 0.0
  %2491 = vmatprep.subr.mxu0 0.0
  %2492 = vmatpush1.msra.mxu0 0.0
  %2493 = vmatprep.subr.mxu0 0.0
  %2494 = vmatpush1.msra.mxu0 0.0
  %2495 = vmatprep.subr.mxu0 0.0
  %2496 = vmatpush1.msra.mxu0 0.0
  %2497 = vmatprep.subr.mxu0 0.0
  %2498 = vmatpush1.msra.mxu0 0.0
  %2499 = vmatprep.subr.mxu0 0.0
  %2500 = vmatpush1.msra.mxu0 0.0
  %2501 = vmatprep.subr.mxu0 0.0
  %2502 = vmatpush1.msra.mxu0 0.0
  %2503 = vmatprep.subr.mxu0 0.0
  %2504 = vmatpush1.msra.mxu0 0.0
  %2505 = vmatprep.subr.mxu0 0.0
  %2506 = vmatpush1.msra.mxu0 0.0
  %2507 = vmatprep.subr.mxu0 0.0
  %2508 = vmatpush1.msra.mxu0 0.0
  %2509 = vmatprep.subr.mxu0 0.0
  %2510 = vmatpush1.msra.mxu0 0.0
  %2511 = vmatprep.subr.mxu0 0.0
  %2512 = vmatpush1.msra.mxu0 0.0
  %2513 = vmatprep.subr.mxu0 0.0
  %2514 = vmatpush1.msra.mxu0 0.0
  %2515 = vmatprep.mubr.f32.mxu0 0.0
  %2516 = vmatmul.mubr.f32.gmra.mrb[0].mxu0 %v2378
  %v2517 = vpop.f32.mrb[0].mxu0
  %v2518 = vadd.f32 %v2372, %v2517
  %v2519 = vpop.f32.mrb[0].mxu0
  %2520 = vdwg.mxu0
  %v2522 = vlaneseq
  %v2523 = vshrl.u32 %v2522, 7
  %v2524 = vsub.s32 0, %v2523
  %v2525 = vrot.slane %v2229, %v2524
  %v2526 = vlaneseq
  %v2527 = vshrl.u32 %v2526, 7
  %v2528 = vsub.s32 1, %v2527
  %v2529 = vrot.slane %v2229, %v2528
  %v2530 = vlaneseq
  %v2531 = vshrl.u32 %v2530, 7
  %v2532 = vsub.s32 2, %v2531
  %v2533 = vrot.slane %v2229, %v2532
  %v2537 = vadd.f32 %v2447, %v2525
  %v2538 = vadd.f32 %v2449, %v2529
  %v2539 = vadd.f32 %v2518, %v2533
  %v2540 = vld [vmem:[%s6] sm:$0xff]
  %v2541 = vld [vmem:[%s6 + $0x8] sm:$0xff]
  %v2542 = vld [vmem:[%s6 + $0x10] sm:$0xff]
  %v2543 = vld [vmem:[%s6 + $0x18] sm:$0xff]
  %v2544 = vld [vmem:[%s6 + $0x20] sm:$0xff]
  %v2545 = vld [vmem:[%s6 + $0x28] sm:$0xff]
  %v2546 = vld [vmem:[%s6 + $0x30] sm:$0xff]
  %v2547 = vld [vmem:[%s6 + $0x38] sm:$0xff]
  %v2548 = vld [vmem:[%s6 + $0x40] sm:$0xff]
  %v2549 = vld [vmem:[%s6 + $0x48] sm:$0x1]
  %v2550 = vld [vmem:[%s7] sm:$0xff]
  %v2551 = vld [vmem:[%s7 + $0x8] sm:$0xff]
  %v2552 = vld [vmem:[%s7 + $0x10] sm:$0xff]
  %v2553 = vld [vmem:[%s7 + $0x18] sm:$0xff]
  %v2554 = vld [vmem:[%s7 + $0x20] sm:$0xff]
  %v2555 = vld [vmem:[%s7 + $0x28] sm:$0xff]
  %v2556 = vld [vmem:[%s7 + $0x30] sm:$0xff]
  %v2557 = vld [vmem:[%s7 + $0x38] sm:$0xff]
  %v2558 = vld [vmem:[%s7 + $0x40] sm:$0x1]
  %v2559 = vld [vmem:[%s8] sm:$0xff]
  %v2560 = vld [vmem:[%s8 + $0x8] sm:$0xff]
  %v2561 = vld [vmem:[%s8 + $0x10] sm:$0xff]
  %v2562 = vld [vmem:[%s8 + $0x18] sm:$0xff]
  %v2563 = vld [vmem:[%s8 + $0x20] sm:$0x1]
  %2565 = vrot.lane.b32.xlu0 %v2537, 96
  %v2566 = vpop.permute.xlu0 %2565
  %2567 = vrot.lane.b32.xlu0 %v2537, 64
  %v2568 = vpop.permute.xlu0 %2567
  %2570 = vrot.lane.b32.xlu0 %v2538, 32
  %v2571 = vpop.permute.xlu0 %2570
  %2572 = vrot.lane.b32.xlu0 %v2538, 96
  %v2573 = vpop.permute.xlu0 %2572
  %2574 = vrot.lane.b32.xlu0 %v2538, 64
  %v2575 = vpop.permute.xlu0 %2574
  %2577 = vrot.lane.b32.xlu0 %v2539, 32
  %v2578 = vpop.permute.xlu0 %2577
  %v2579 = vsel %vm215, %v2537, 0
  %v2581 = vsel %vm215, %v2573, 0
  %2583 = vmatprep.subr.mxu0 0.0
  %2584 = vmatpush1.msra.mxu0 %v2540
  %2585 = vmatprep.subr.mxu0 0.0
  %2586 = vmatpush1.msra.mxu0 %v2541
  %2587 = vmatprep.subr.mxu0 0.0
  %2588 = vmatpush1.msra.mxu0 %v2542
  %2589 = vmatprep.subr.mxu0 0.0
  %2590 = vmatpush1.msra.mxu0 %v2543
  %2591 = vmatprep.subr.mxu0 0.0
  %2592 = vmatpush1.msra.mxu0 0.0
  %2593 = vmatprep.subr.mxu0 0.0
  %2594 = vmatpush1.msra.mxu0 0.0
  %2595 = vmatprep.subr.mxu0 0.0
  %2596 = vmatpush1.msra.mxu0 0.0
  %2597 = vmatprep.subr.mxu0 0.0
  %2598 = vmatpush1.msra.mxu0 0.0
  %2599 = vmatprep.subr.mxu0 0.0
  %2600 = vmatpush1.msra.mxu0 0.0
  %2601 = vmatprep.subr.mxu0 0.0
  %2602 = vmatpush1.msra.mxu0 0.0
  %2603 = vmatprep.subr.mxu0 0.0
  %2604 = vmatpush1.msra.mxu0 0.0
  %2605 = vmatprep.subr.mxu0 0.0
  %2606 = vmatpush1.msra.mxu0 0.0
  %2607 = vmatprep.subr.mxu0 0.0
  %2608 = vmatpush1.msra.mxu0 0.0
  %2609 = vmatprep.subr.mxu0 0.0
  %2610 = vmatpush1.msra.mxu0 0.0
  %2611 = vmatprep.subr.mxu0 0.0
  %2612 = vmatpush1.msra.mxu0 0.0
  %2613 = vmatprep.subr.mxu0 0.0
  %2614 = vmatpush1.msra.mxu0 0.0
  %2615 = vmatprep.subr.mxu0 0.0
  %2616 = vmatpush1.msra.mxu0 0.0
  %2617 = vmatprep.subr.mxu0 0.0
  %2618 = vmatpush1.msra.mxu0 0.0
  %2619 = vmatprep.subr.mxu0 0.0
  %2620 = vmatpush1.msra.mxu0 0.0
  %2621 = vmatprep.subr.mxu0 0.0
  %2622 = vmatpush1.msra.mxu0 0.0
  %2623 = vmatprep.subr.mxu0 0.0
  %2624 = vmatpush1.msra.mxu0 0.0
  %2625 = vmatprep.subr.mxu0 0.0
  %2626 = vmatpush1.msra.mxu0 0.0
  %2627 = vmatprep.subr.mxu0 0.0
  %2628 = vmatpush1.msra.mxu0 0.0
  %2629 = vmatprep.subr.mxu0 0.0
  %2630 = vmatpush1.msra.mxu0 0.0
  %2631 = vmatprep.subr.mxu0 0.0
  %2632 = vmatpush1.msra.mxu0 0.0
  %2633 = vmatprep.subr.mxu0 0.0
  %2634 = vmatpush1.msra.mxu0 0.0
  %2635 = vmatprep.subr.mxu0 0.0
  %2636 = vmatpush1.msra.mxu0 0.0
  %2637 = vmatprep.subr.mxu0 0.0
  %2638 = vmatpush1.msra.mxu0 0.0
  %2639 = vmatprep.subr.mxu0 0.0
  %2640 = vmatpush1.msra.mxu0 0.0
  %2641 = vmatprep.subr.mxu0 0.0
  %2642 = vmatpush1.msra.mxu0 0.0
  %2643 = vmatprep.subr.mxu0 0.0
  %2644 = vmatpush1.msra.mxu0 0.0
  %2645 = vmatprep.subr.mxu0 0.0
  %2646 = vmatpush1.msra.mxu0 0.0
  %2647 = vmatprep.mubr.f32.mxu0 0.0
  %2648 = vmatmul.mubr.f32.gmra.mrb[0].mxu0 %v2579
  %v2649 = vpop.f32.mrb[0].mxu0
  %v2650 = vadd.f32 0.0, %v2649
  %v2651 = vpop.f32.mrb[0].mxu0
  %2652 = vmatprep.mubr.f32.mxu0 0.0
  %2653 = vmatmul.mubr.f32.gmra.mrb[0].mxu0 %v2581
  %v2654 = vpop.f32.mrb[0].mxu0
  %v2655 = vadd.f32 0.0, %v2654
  %v2656 = vpop.f32.mrb[0].mxu0
  %2657 = vdwg.mxu0
  %v2658 = vld [vmem:[%s2] sm:$0xff]
  %v2659 = vld [vmem:[%s2 + $0x8] sm:$0xff]
  %v2660 = vld [vmem:[%s2 + $0x10] sm:$0xff]
  %v2661 = vld [vmem:[%s2 + $0x18] sm:$0xff]
  %vm2662 = vcmask 64512
  %v2664 = vsel %vm2662, %v2658, 0
  %v2667 = vsel %vm2662, %v2659, 0
  %v2670 = vsel %vm2662, %v2660, 0
  %v2673 = vsel %vm2662, %v2661, 0
  %2675 = vmatprep.subr.mxu0 0.0
  %2676 = vmatpush1.msra.mxu0 %v2548
  %2677 = vmatprep.subr.mxu0 0.0
  %2678 = vmatpush1.msra.mxu0 0.0
  %2679 = vmatprep.subr.mxu0 0.0
  %2680 = vmatpush1.msra.mxu0 0.0
  %2681 = vmatprep.subr.mxu0 0.0
  %2682 = vmatpush1.msra.mxu0 0.0
  %2683 = vmatprep.subr.mxu0 0.0
  %2684 = vmatpush1.msra.mxu0 0.0
  %2685 = vmatprep.subr.mxu0 0.0
  %2686 = vmatpush1.msra.mxu0 0.0
  %2687 = vmatprep.subr.mxu0 0.0
  %2688 = vmatpush1.msra.mxu0 0.0
  %2689 = vmatprep.subr.mxu0 0.0
  %2690 = vmatpush1.msra.mxu0 0.0
  %2691 = vmatprep.subr.mxu0 0.0
  %2692 = vmatpush1.msra.mxu0 0.0
  %2693 = vmatprep.subr.mxu0 0.0
  %2694 = vmatpush1.msra.mxu0 0.0
  %2695 = vmatprep.subr.mxu0 0.0
  %2696 = vmatpush1.msra.mxu0 0.0
  %2697 = vmatprep.subr.mxu0 0.0
  %2698 = vmatpush1.msra.mxu0 0.0
  %2699 = vmatprep.subr.mxu0 0.0
  %2700 = vmatpush1.msra.mxu0 0.0
  %2701 = vmatprep.subr.mxu0 0.0
  %2702 = vmatpush1.msra.mxu0 0.0
  %2703 = vmatprep.subr.mxu0 0.0
  %2704 = vmatpush1.msra.mxu0 0.0
  %2705 = vmatprep.subr.mxu0 0.0
  %2706 = vmatpush1.msra.mxu0 0.0
  %2707 = vmatprep.subr.mxu0 0.0
  %2708 = vmatpush1.msra.mxu0 0.0
  %2709 = vmatprep.subr.mxu0 0.0
  %2710 = vmatpush1.msra.mxu0 0.0
  %2711 = vmatprep.subr.mxu0 0.0
  %2712 = vmatpush1.msra.mxu0 0.0
  %2713 = vmatprep.subr.mxu0 0.0
  %2714 = vmatpush1.msra.mxu0 0.0
  %2715 = vmatprep.subr.mxu0 0.0
  %2716 = vmatpush1.msra.mxu0 0.0
  %2717 = vmatprep.subr.mxu0 0.0
  %2718 = vmatpush1.msra.mxu0 0.0
  %2719 = vmatprep.subr.mxu0 0.0
  %2720 = vmatpush1.msra.mxu0 0.0
  %2721 = vmatprep.subr.mxu0 0.0
  %2722 = vmatpush1.msra.mxu0 0.0
  %2723 = vmatprep.subr.mxu0 0.0
  %2724 = vmatpush1.msra.mxu0 0.0
  %2725 = vmatprep.subr.mxu0 0.0
  %2726 = vmatpush1.msra.mxu0 0.0
  %2727 = vmatprep.subr.mxu0 0.0
  %2728 = vmatpush1.msra.mxu0 0.0
  %2729 = vmatprep.subr.mxu0 0.0
  %2730 = vmatpush1.msra.mxu0 0.0
  %2731 = vmatprep.subr.mxu0 0.0
  %2732 = vmatpush1.msra.mxu0 0.0
  %2733 = vmatprep.subr.mxu0 0.0
  %2734 = vmatpush1.msra.mxu0 0.0
  %2735 = vmatprep.subr.mxu0 0.0
  %2736 = vmatpush1.msra.mxu0 0.0
  %2737 = vmatprep.subr.mxu0 0.0
  %2738 = vmatpush1.msra.mxu0 0.0
  %2739 = vmatprep.mubr.f32.mxu0 0.0
  %2740 = vmatmul.mubr.f32.gmra.mrb[0].mxu0 %v2664
  %v2741 = vpop.f32.mrb[0].mxu0
  %v2742 = vadd.f32 0.0, %v2741
  %v2743 = vpop.f32.mrb[0].mxu0
  %2744 = vmatprep.mubr.f32.mxu0 0.0
  %2745 = vmatmul.mubr.f32.gmra.mrb[0].mxu0 %v2667
  %v2746 = vpop.f32.mrb[0].mxu0
  %v2747 = vadd.f32 0.0, %v2746
  %v2748 = vpop.f32.mrb[0].mxu0
  %2749 = vmatprep.mubr.f32.mxu0 0.0
  %2750 = vmatmul.mubr.f32.gmra.mrb[0].mxu0 %v2670
  %v2751 = vpop.f32.mrb[0].mxu0
  %v2752 = vadd.f32 0.0, %v2751
  %v2753 = vpop.f32.mrb[0].mxu0
  %2754 = vmatprep.mubr.f32.mxu0 0.0
  %2755 = vmatmul.mubr.f32.gmra.mrb[0].mxu0 %v2673
  %v2756 = vpop.f32.mrb[0].mxu0
  %v2757 = vadd.f32 0.0, %v2756
  %v2758 = vpop.f32.mrb[0].mxu0
  %2759 = vdwg.mxu0
  %2760 = vrot.lane.b32.xlu0 %v2566, 96
  %v2761 = vpop.permute.xlu0 %2760
  %2762 = vrot.lane.b32.xlu0 %v2568, 96
  %v2763 = vpop.permute.xlu0 %2762
  %2764 = vrot.lane.b32.xlu0 %v2571, 96
  %v2765 = vpop.permute.xlu0 %2764
  %2766 = vrot.lane.b32.xlu0 %v2573, 96
  %v2767 = vpop.permute.xlu0 %2766
  %2768 = vrot.lane.b32.xlu0 %v2575, 96
  %v2769 = vpop.permute.xlu0 %2768
  %2770 = vrot.lane.b32.xlu0 %v2578, 96
  %v2771 = vpop.permute.xlu0 %2770
  %2772 = vrot.lane.b32.xlu0 %v2539, 96
  %v2773 = vpop.permute.xlu0 %2772
  %v2774 = vsel %vm215, %v2566, 0
  %v2776 = vsel %vm215, %v2761, 0
  %v2778 = vsel %vm215, %v2763, 0
  %v2780 = vsel %vm215, %v2765, 0
  %v2782 = vsel %vm215, %v2767, 0
  %v2784 = vsel %vm215, %v2769, 0
  %v2786 = vsel %vm215, %v2771, 0
  %v2788 = vsel %vm215, %v2773, 0
  %2790 = vmatprep.subr.mxu0 0.0
  %2791 = vmatpush1.msra.mxu0 %v2544
  %2792 = vmatprep.subr.mxu0 0.0
  %2793 = vmatpush1.msra.mxu0 %v2545
  %2794 = vmatprep.subr.mxu0 0.0
  %2795 = vmatpush1.msra.mxu0 %v2546
  %2796 = vmatprep.subr.mxu0 0.0
  %2797 = vmatpush1.msra.mxu0 %v2547
  %2798 = vmatprep.subr.mxu0 0.0
  %2799 = vmatpush1.msra.mxu0 0.0
  %2800 = vmatprep.subr.mxu0 0.0
  %2801 = vmatpush1.msra.mxu0 0.0
  %2802 = vmatprep.subr.mxu0 0.0
  %2803 = vmatpush1.msra.mxu0 0.0
  %2804 = vmatprep.subr.mxu0 0.0
  %2805 = vmatpush1.msra.mxu0 0.0
  %2806 = vmatprep.subr.mxu0 0.0
  %2807 = vmatpush1.msra.mxu0 0.0
  %2808 = vmatprep.subr.mxu0 0.0
  %2809 = vmatpush1.msra.mxu0 0.0
  %2810 = vmatprep.subr.mxu0 0.0
  %2811 = vmatpush1.msra.mxu0 0.0
  %2812 = vmatprep.subr.mxu0 0.0
  %2813 = vmatpush1.msra.mxu0 0.0
  %2814 = vmatprep.subr.mxu0 0.0
  %2815 = vmatpush1.msra.mxu0 0.0
  %2816 = vmatprep.subr.mxu0 0.0
  %2817 = vmatpush1.msra.mxu0 0.0
  %2818 = vmatprep.subr.mxu0 0.0
  %2819 = vmatpush1.msra.mxu0 0.0
  %2820 = vmatprep.subr.mxu0 0.0
  %2821 = vmatpush1.msra.mxu0 0.0
  %2822 = vmatprep.subr.mxu0 0.0
  %2823 = vmatpush1.msra.mxu0 0.0
  %2824 = vmatprep.subr.mxu0 0.0
  %2825 = vmatpush1.msra.mxu0 0.0
  %2826 = vmatprep.subr.mxu0 0.0
  %2827 = vmatpush1.msra.mxu0 0.0
  %2828 = vmatprep.subr.mxu0 0.0
  %2829 = vmatpush1.msra.mxu0 0.0
  %2830 = vmatprep.subr.mxu0 0.0
  %2831 = vmatpush1.msra.mxu0 0.0
  %2832 = vmatprep.subr.mxu0 0.0
  %2833 = vmatpush1.msra.mxu0 0.0
  %2834 = vmatprep.subr.mxu0 0.0
  %2835 = vmatpush1.msra.mxu0 0.0
  %2836 = vmatprep.subr.mxu0 0.0
  %2837 = vmatpush1.msra.mxu0 0.0
  %2838 = vmatprep.subr.mxu0 0.0
  %2839 = vmatpush1.msra.mxu0 0.0
  %2840 = vmatprep.subr.mxu0 0.0
  %2841 = vmatpush1.msra.mxu0 0.0
  %2842 = vmatprep.subr.mxu0 0.0
  %2843 = vmatpush1.msra.mxu0 0.0
  %2844 = vmatprep.subr.mxu0 0.0
  %2845 = vmatpush1.msra.mxu0 0.0
  %2846 = vmatprep.subr.mxu0 0.0
  %2847 = vmatpush1.msra.mxu0 0.0
  %2848 = vmatprep.subr.mxu0 0.0
  %2849 = vmatpush1.msra.mxu0 0.0
  %2850 = vmatprep.subr.mxu0 0.0
  %2851 = vmatpush1.msra.mxu0 0.0
  %2852 = vmatprep.subr.mxu0 0.0
  %2853 = vmatpush1.msra.mxu0 0.0
  %2854 = vmatprep.mubr.f32.mxu0 0.0
  %2855 = vmatmul.mubr.f32.gmra.mrb[0].mxu0 %v2774
  %v2856 = vpop.f32.mrb[0].mxu0
  %v2857 = vadd.f32 %v2650, %v2856
  %v2858 = vpop.f32.mrb[0].mxu0
  %2859 = vmatprep.mubr.f32.mxu0 0.0
  %2860 = vmatmul.mubr.f32.gmra.mrb[0].mxu0 %v2776
  %v2861 = vpop.f32.mrb[0].mxu0
  %v2862 = vadd.f32 %v2650, %v2861
  %v2863 = vpop.f32.mrb[0].mxu0
  %2864 = vmatprep.mubr.f32.mxu0 0.0
  %2865 = vmatmul.mubr.f32.gmra.mrb[0].mxu0 %v2778
  %v2866 = vpop.f32.mrb[0].mxu0
  %v2867 = vadd.f32 %v2650, %v2866
  %v2868 = vpop.f32.mrb[0].mxu0
  %2869 = vmatprep.mubr.f32.mxu0 0.0
  %2870 = vmatmul.mubr.f32.gmra.mrb[0].mxu0 %v2780
  %v2871 = vpop.f32.mrb[0].mxu0
  %v2872 = vadd.f32 %v2650, %v2871
  %v2873 = vpop.f32.mrb[0].mxu0
  %2874 = vmatprep.mubr.f32.mxu0 0.0
  %2875 = vmatmul.mubr.f32.gmra.mrb[0].mxu0 %v2782
  %v2876 = vpop.f32.mrb[0].mxu0
  %v2877 = vadd.f32 %v2655, %v2876
  %v2878 = vpop.f32.mrb[0].mxu0
  %2879 = vmatprep.mubr.f32.mxu0 0.0
  %2880 = vmatmul.mubr.f32.gmra.mrb[0].mxu0 %v2784
  %v2881 = vpop.f32.mrb[0].mxu0
  %v2882 = vadd.f32 %v2655, %v2881
  %v2883 = vpop.f32.mrb[0].mxu0
  %2884 = vmatprep.mubr.f32.mxu0 0.0
  %2885 = vmatmul.mubr.f32.gmra.mrb[0].mxu0 %v2786
  %v2886 = vpop.f32.mrb[0].mxu0
  %v2887 = vadd.f32 %v2655, %v2886
  %v2888 = vpop.f32.mrb[0].mxu0
  %2889 = vmatprep.mubr.f32.mxu0 0.0
  %2890 = vmatmul.mubr.f32.gmra.mrb[0].mxu0 %v2788
  %v2891 = vpop.f32.mrb[0].mxu0
  %v2892 = vadd.f32 %v2655, %v2891
  %v2893 = vpop.f32.mrb[0].mxu0
  %2894 = vdwg.mxu0
  %v2895 = vadd.f32 %v2857, %v2742
  %v2896 = vadd.f32 %v2862, %v2747
  %v2897 = vadd.f32 %v2867, %v2752
  %v2898 = vadd.f32 %v2872, %v2757
  %v2899 = vadd.f32 %v2877, %v2742
  %v2900 = vadd.f32 %v2882, %v2747
  %v2901 = vadd.f32 %v2887, %v2752
  %v2902 = vadd.f32 %v2892, %v2757
  %v2903 = vlaneseq
  %v2904 = vshrl.u32 %v2903, 7
  %v2905 = vsub.s32 0, %v2904
  %v2906 = vrot.slane %v2549, %v2905
  %v2907 = vadd.f32 %v2895, %v2906
  %v2908 = vadd.f32 %v2896, %v2906
  %v2909 = vadd.f32 %v2897, %v2906
  %v2910 = vadd.f32 %v2898, %v2906
  %v2911 = vadd.f32 %v2899, %v2906
  %v2912 = vadd.f32 %v2900, %v2906
  %v2913 = vadd.f32 %v2901, %v2906
  %v2914 = vadd.f32 %v2902, %v2906
  %v2915 = vlaneseq
  %v2916 = vshrl.u32 %v2915, 7
  %v2917 = vsub.s32 0, %v2916
  %v2918 = vrot.slane %v2558, %v2917
  %vm2919 = vcmask 523264
  %v2921 = vsel %vm2919, %v2907, 0
  %v2924 = vsel %vm2919, %v2908, 0
  %v2927 = vsel %vm2919, %v2909, 0
  %v2930 = vsel %vm2919, %v2910, 0
  %v2933 = vsel %vm2919, %v2911, 0
  %v2936 = vsel %vm2919, %v2912, 0
  %v2939 = vsel %vm2919, %v2913, 0
  %v2942 = vsel %vm2919, %v2914, 0
  %2944 = vmatprep.subr.mxu0 0.0
  %2945 = vmatpush1.msra.mxu0 %v2550
  %2946 = vmatprep.subr.mxu0 0.0
  %2947 = vmatpush1.msra.mxu0 %v2551
  %2948 = vmatprep.subr.mxu0 0.0
  %2949 = vmatpush1.msra.mxu0 %v2552
  %2950 = vmatprep.subr.mxu0 0.0
  %2951 = vmatpush1.msra.mxu0 %v2553
  %2952 = vmatprep.subr.mxu0 0.0
  %2953 = vmatpush1.msra.mxu0 %v2554
  %2954 = vmatprep.subr.mxu0 0.0
  %2955 = vmatpush1.msra.mxu0 %v2555
  %2956 = vmatprep.subr.mxu0 0.0
  %2957 = vmatpush1.msra.mxu0 %v2556
  %2958 = vmatprep.subr.mxu0 0.0
  %2959 = vmatpush1.msra.mxu0 %v2557
  %2960 = vmatprep.subr.mxu0 0.0
  %2961 = vmatpush1.msra.mxu0 0.0
  %2962 = vmatprep.subr.mxu0 0.0
  %2963 = vmatpush1.msra.mxu0 0.0
  %2964 = vmatprep.subr.mxu0 0.0
  %2965 = vmatpush1.msra.mxu0 0.0
  %2966 = vmatprep.subr.mxu0 0.0
  %2967 = vmatpush1.msra.mxu0 0.0
  %2968 = vmatprep.subr.mxu0 0.0
  %2969 = vmatpush1.msra.mxu0 0.0
  %2970 = vmatprep.subr.mxu0 0.0
  %2971 = vmatpush1.msra.mxu0 0.0
  %2972 = vmatprep.subr.mxu0 0.0
  %2973 = vmatpush1.msra.mxu0 0.0
  %2974 = vmatprep.subr.mxu0 0.0
  %2975 = vmatpush1.msra.mxu0 0.0
  %2976 = vmatprep.subr.mxu0 0.0
  %2977 = vmatpush1.msra.mxu0 0.0
  %2978 = vmatprep.subr.mxu0 0.0
  %2979 = vmatpush1.msra.mxu0 0.0
  %2980 = vmatprep.subr.mxu0 0.0
  %2981 = vmatpush1.msra.mxu0 0.0
  %2982 = vmatprep.subr.mxu0 0.0
  %2983 = vmatpush1.msra.mxu0 0.0
  %2984 = vmatprep.subr.mxu0 0.0
  %2985 = vmatpush1.msra.mxu0 0.0
  %2986 = vmatprep.subr.mxu0 0.0
  %2987 = vmatpush1.msra.mxu0 0.0
  %2988 = vmatprep.subr.mxu0 0.0
  %2989 = vmatpush1.msra.mxu0 0.0
  %2990 = vmatprep.subr.mxu0 0.0
  %2991 = vmatpush1.msra.mxu0 0.0
  %2992 = vmatprep.subr.mxu0 0.0
  %2993 = vmatpush1.msra.mxu0 0.0
  %2994 = vmatprep.subr.mxu0 0.0
  %2995 = vmatpush1.msra.mxu0 0.0
  %2996 = vmatprep.subr.mxu0 0.0
  %2997 = vmatpush1.msra.mxu0 0.0
  %2998 = vmatprep.subr.mxu0 0.0
  %2999 = vmatpush1.msra.mxu0 0.0
  %3000 = vmatprep.subr.mxu0 0.0
  %3001 = vmatpush1.msra.mxu0 0.0
  %3002 = vmatprep.subr.mxu0 0.0
  %3003 = vmatpush1.msra.mxu0 0.0
  %3004 = vmatprep.subr.mxu0 0.0
  %3005 = vmatpush1.msra.mxu0 0.0
  %3006 = vmatprep.subr.mxu0 0.0
  %3007 = vmatpush1.msra.mxu0 0.0
  %3008 = vmatprep.mubr.f32.mxu0 0.0
  %3009 = vmatmul.mubr.f32.gmra.mrb[0].mxu0 %v2921
  %v3010 = vpop.f32.mrb[0].mxu0
  %v3011 = vadd.f32 %v2918, %v3010
  %v3012 = vpop.f32.mrb[0].mxu0
  %3013 = vmatprep.mubr.f32.mxu0 0.0
  %3014 = vmatmul.mubr.f32.gmra.mrb[0].mxu0 %v2924
  %v3015 = vpop.f32.mrb[0].mxu0
  %v3016 = vadd.f32 %v2918, %v3015
  %v3017 = vpop.f32.mrb[0].mxu0
  %3018 = vmatprep.mubr.f32.mxu0 0.0
  %3019 = vmatmul.mubr.f32.gmra.mrb[0].mxu0 %v2927
  %v3020 = vpop.f32.mrb[0].mxu0
  %v3021 = vadd.f32 %v2918, %v3020
  %v3022 = vpop.f32.mrb[0].mxu0
  %3023 = vmatprep.mubr.f32.mxu0 0.0
  %3024 = vmatmul.mubr.f32.gmra.mrb[0].mxu0 %v2930
  %v3025 = vpop.f32.mrb[0].mxu0
  %v3026 = vadd.f32 %v2918, %v3025
  %v3027 = vpop.f32.mrb[0].mxu0
  %3028 = vmatprep.mubr.f32.mxu0 0.0
  %3029 = vmatmul.mubr.f32.gmra.mrb[0].mxu0 %v2933
  %v3030 = vpop.f32.mrb[0].mxu0
  %v3031 = vadd.f32 %v2918, %v3030
  %v3032 = vpop.f32.mrb[0].mxu0
  %3033 = vmatprep.mubr.f32.mxu0 0.0
  %3034 = vmatmul.mubr.f32.gmra.mrb[0].mxu0 %v2936
  %v3035 = vpop.f32.mrb[0].mxu0
  %v3036 = vadd.f32 %v2918, %v3035
  %v3037 = vpop.f32.mrb[0].mxu0
  %3038 = vmatprep.mubr.f32.mxu0 0.0
  %3039 = vmatmul.mubr.f32.gmra.mrb[0].mxu0 %v2939
  %v3040 = vpop.f32.mrb[0].mxu0
  %v3041 = vadd.f32 %v2918, %v3040
  %v3042 = vpop.f32.mrb[0].mxu0
  %3043 = vmatprep.mubr.f32.mxu0 0.0
  %3044 = vmatmul.mubr.f32.gmra.mrb[0].mxu0 %v2942
  %v3045 = vpop.f32.mrb[0].mxu0
  %v3046 = vadd.f32 %v2918, %v3045
  %v3047 = vpop.f32.mrb[0].mxu0
  %3048 = vdwg.mxu0
  %v3049 = vlaneseq
  %v3050 = vshrl.u32 %v3049, 7
  %v3051 = vsub.s32 0, %v3050
  %v3052 = vrot.slane %v2563, %v3051
  %v3054 = vsel %vm215, %v3011, 0
  %v3057 = vsel %vm215, %v3016, 0
  %v3060 = vsel %vm215, %v3021, 0
  %v3063 = vsel %vm215, %v3026, 0
  %v3066 = vsel %vm215, %v3031, 0
  %v3069 = vsel %vm215, %v3036, 0
  %v3072 = vsel %vm215, %v3041, 0
  %v3075 = vsel %vm215, %v3046, 0
  %3077 = vmatprep.subr.mxu0 0.0
  %3078 = vmatpush1.msra.mxu0 %v2559
  %3079 = vmatprep.subr.mxu0 0.0
  %3080 = vmatpush1.msra.mxu0 %v2560
  %3081 = vmatprep.subr.mxu0 0.0
  %3082 = vmatpush1.msra.mxu0 %v2561
  %3083 = vmatprep.subr.mxu0 0.0
  %3084 = vmatpush1.msra.mxu0 %v2562
  %3085 = vmatprep.subr.mxu0 0.0
  %3086 = vmatpush1.msra.mxu0 0.0
  %3087 = vmatprep.subr.mxu0 0.0
  %3088 = vmatpush1.msra.mxu0 0.0
  %3089 = vmatprep.subr.mxu0 0.0
  %3090 = vmatpush1.msra.mxu0 0.0
  %3091 = vmatprep.subr.mxu0 0.0
  %3092 = vmatpush1.msra.mxu0 0.0
  %3093 = vmatprep.subr.mxu0 0.0
  %3094 = vmatpush1.msra.mxu0 0.0
  %3095 = vmatprep.subr.mxu0 0.0
  %3096 = vmatpush1.msra.mxu0 0.0
  %3097 = vmatprep.subr.mxu0 0.0
  %3098 = vmatpush1.msra.mxu0 0.0
  %3099 = vmatprep.subr.mxu0 0.0
  %3100 = vmatpush1.msra.mxu0 0.0
  %3101 = vmatprep.subr.mxu0 0.0
  %3102 = vmatpush1.msra.mxu0 0.0
  %3103 = vmatprep.subr.mxu0 0.0
  %3104 = vmatpush1.msra.mxu0 0.0
  %3105 = vmatprep.subr.mxu0 0.0
  %3106 = vmatpush1.msra.mxu0 0.0
  %3107 = vmatprep.subr.mxu0 0.0
  %3108 = vmatpush1.msra.mxu0 0.0
  %3109 = vmatprep.subr.mxu0 0.0
  %3110 = vmatpush1.msra.mxu0 0.0
  %3111 = vmatprep.subr.mxu0 0.0
  %3112 = vmatpush1.msra.mxu0 0.0
  %3113 = vmatprep.subr.mxu0 0.0
  %3114 = vmatpush1.msra.mxu0 0.0
  %3115 = vmatprep.subr.mxu0 0.0
  %3116 = vmatpush1.msra.mxu0 0.0
  %3117 = vmatprep.subr.mxu0 0.0
  %3118 = vmatpush1.msra.mxu0 0.0
  %3119 = vmatprep.subr.mxu0 0.0
  %3120 = vmatpush1.msra.mxu0 0.0
  %3121 = vmatprep.subr.mxu0 0.0
  %3122 = vmatpush1.msra.mxu0 0.0
  %3123 = vmatprep.subr.mxu0 0.0
  %3124 = vmatpush1.msra.mxu0 0.0
  %3125 = vmatprep.subr.mxu0 0.0
  %3126 = vmatpush1.msra.mxu0 0.0
  %3127 = vmatprep.subr.mxu0 0.0
  %3128 = vmatpush1.msra.mxu0 0.0
  %3129 = vmatprep.subr.mxu0 0.0
  %3130 = vmatpush1.msra.mxu0 0.0
  %3131 = vmatprep.subr.mxu0 0.0
  %3132 = vmatpush1.msra.mxu0 0.0
  %3133 = vmatprep.subr.mxu0 0.0
  %3134 = vmatpush1.msra.mxu0 0.0
  %3135 = vmatprep.subr.mxu0 0.0
  %3136 = vmatpush1.msra.mxu0 0.0
  %3137 = vmatprep.subr.mxu0 0.0
  %3138 = vmatpush1.msra.mxu0 0.0
  %3139 = vmatprep.subr.mxu0 0.0
  %3140 = vmatpush1.msra.mxu0 0.0
  %3141 = vmatprep.mubr.f32.mxu0 0.0
  %3142 = vmatmul.mubr.f32.gmra.mrb[0].mxu0 %v3054
  %v3143 = vpop.f32.mrb[0].mxu0
  %v3144 = vadd.f32 %v3052, %v3143
  %v3145 = vpop.f32.mrb[0].mxu0
  %3146 = vmatprep.mubr.f32.mxu0 0.0
  %3147 = vmatmul.mubr.f32.gmra.mrb[0].mxu0 %v3057
  %v3148 = vpop.f32.mrb[0].mxu0
  %v3149 = vadd.f32 %v3052, %v3148
  %v3150 = vpop.f32.mrb[0].mxu0
  %3151 = vmatprep.mubr.f32.mxu0 0.0
  %3152 = vmatmul.mubr.f32.gmra.mrb[0].mxu0 %v3060
  %v3153 = vpop.f32.mrb[0].mxu0
  %v3154 = vadd.f32 %v3052, %v3153
  %v3155 = vpop.f32.mrb[0].mxu0
  %3156 = vmatprep.mubr.f32.mxu0 0.0
  %3157 = vmatmul.mubr.f32.gmra.mrb[0].mxu0 %v3063
  %v3158 = vpop.f32.mrb[0].mxu0
  %v3159 = vadd.f32 %v3052, %v3158
  %v3160 = vpop.f32.mrb[0].mxu0
  %3161 = vmatprep.mubr.f32.mxu0 0.0
  %3162 = vmatmul.mubr.f32.gmra.mrb[0].mxu0 %v3066
  %v3163 = vpop.f32.mrb[0].mxu0
  %v3164 = vadd.f32 %v3052, %v3163
  %v3165 = vpop.f32.mrb[0].mxu0
  %3166 = vmatprep.mubr.f32.mxu0 0.0
  %3167 = vmatmul.mubr.f32.gmra.mrb[0].mxu0 %v3069
  %v3168 = vpop.f32.mrb[0].mxu0
  %v3169 = vadd.f32 %v3052, %v3168
  %v3170 = vpop.f32.mrb[0].mxu0
  %3171 = vmatprep.mubr.f32.mxu0 0.0
  %3172 = vmatmul.mubr.f32.gmra.mrb[0].mxu0 %v3072
  %v3173 = vpop.f32.mrb[0].mxu0
  %v3174 = vadd.f32 %v3052, %v3173
  %v3175 = vpop.f32.mrb[0].mxu0
  %3176 = vmatprep.mubr.f32.mxu0 0.0
  %3177 = vmatmul.mubr.f32.gmra.mrb[0].mxu0 %v3075
  %v3178 = vpop.f32.mrb[0].mxu0
  %v3179 = vadd.f32 %v3052, %v3178
  %v3180 = vpop.f32.mrb[0].mxu0
  %3181 = vdwg.mxu0
  %3182 = vst [vmem:[%s9] sm:$0xff] %v3144
  %3183 = vst [vmem:[%s9 + $0x8] sm:$0xff] %v3149
  %3184 = vst [vmem:[%s9 + $0x10] sm:$0xff] %v3154
  %3185 = vst [vmem:[%s9 + $0x18] sm:$0xff] %v3159
  %3186 = vst [vmem:[%s9 + $0x20] sm:$0xff] %v3164
  %3187 = vst [vmem:[%s9 + $0x28] sm:$0xff] %v3169
  %3188 = vst [vmem:[%s9 + $0x30] sm:$0xff] %v3174
  %3189 = vst [vmem:[%s9 + $0x38] sm:$0xff] %v3179
  // Predicated region
  $region38: #{mqrnn_forward_pallas.1} parent=0 // pred_check
    _
  $region39: #{mqrnn_forward_pallas.1} parent=0 // pred_check_branch
    %3191 = sbr.rel (0) target = $region41
  $region40: #{mqrnn_forward_pallas.1} parent=0 // pred_region
    _
  $region41: #{mqrnn_forward_pallas.1} parent=0 // pred_fallthru
    _
  // Predicated region
  $region42: #{mqrnn_forward_pallas.1} parent=0 // pred_check
    _
  $region43: #{mqrnn_forward_pallas.1} parent=0 // pred_check_branch
    %3193 = sbr.rel (0) target = $region45
  $region44: #{mqrnn_forward_pallas.1} parent=0 // pred_region
    _
  $region45: #{mqrnn_forward_pallas.1} parent=0 // pred_fallthru
    _

</llo_original>
